<compile_context>
chip_gen: v6e
topology: v6e:2x2x1
jax: 0.10.0
libtpu: 0.0.40
codegen_flags: <defaults>
</compile_context>

<pallas_src>
import jax
import jax.numpy as jnp
from jax.experimental import pallas as pl
from jax.experimental.pallas import tpu as pltpu


def _conv1x1_kernel(x_ref, w_ref, o_ref):
    # x_ref: (1, Cin, HW)   w_ref: (tn, Cin)   o_ref: (1, tn, HW)
    o_ref[0] = jnp.dot(
        w_ref[...], x_ref[0], preferred_element_type=jnp.float32
    ).astype(o_ref.dtype)


def _pick_cout_tile(cout: int) -> int:
    # Prefer a tile that evenly divides Cout, is a multiple of 8 (sublane
    # alignment), and is large (256-512) so per-grid-step overhead is small.
    for cand in (512, 464, 384, 256, 232, 128):
        if cand <= cout and cout % cand == 0:
            return cand
    return min(cout, 256)


def conv2d_1x1(x_nchw, weight_oihw):
    """1x1 conv, stride 1, no bias.  x_nchw: (N, Cin, H, W), weight: (Cout, Cin, 1, 1)."""
    N, Cin, H, W = x_nchw.shape
    Cout = weight_oihw.shape[0]
    HW = H * W

    x3d = x_nchw.reshape(N, Cin, HW)        # contiguous for NCHW, no transpose
    w2d = weight_oihw.reshape(Cout, Cin)    # no transpose

    tn = _pick_cout_tile(Cout)
    grid = (N, pl.cdiv(Cout, tn))

    y3d = pl.pallas_call(
        _conv1x1_kernel,
        out_shape=jax.ShapeDtypeStruct((N, Cout, HW), x_nchw.dtype),
        grid_spec=pltpu.PrefetchScalarGridSpec(
            num_scalar_prefetch=0,
            grid=grid,
            in_specs=[
                # X stays VMEM-resident across the Cout axis (block idx fixed).
                pl.BlockSpec((1, Cin, HW), lambda b, j: (b, 0, 0)),
                # Weight tiles over Cout -> double-buffered DMA overlaps MXU.
                pl.BlockSpec((tn, Cin), lambda b, j: (j, 0)),
            ],
            out_specs=pl.BlockSpec((1, tn, HW), lambda b, j: (b, j, 0)),
        ),
        compiler_params=pltpu.CompilerParams(
            dimension_semantics=("parallel", "parallel"),
        ),
    )(x3d, w2d)

    return y3d.reshape(N, Cout, H, W)


if __name__ == "__main__":
    key = jax.random.PRNGKey(0)
    kx, kw = jax.random.split(key)

    # Shapes implied by the module's forward: Conv2d(1392, 1392, 1) on [1, 1392, 14, 14].
    N, Cin, H, W = 1, 1392, 14, 14
    Cout = 1392

    x = jax.random.normal(kx, (N, Cin, H, W), dtype=jnp.float32)
    weight = jax.random.normal(kw, (Cout, Cin, 1, 1), dtype=jnp.float32) * 0.02

    out = jax.block_until_ready(conv2d_1x1(x, weight))

    # Reference check against XLA conv (f32 accumulation preserved in-kernel).
    ref = jax.lax.conv_general_dilated(
        x, weight, window_strides=(1, 1), padding="VALID",
        dimension_numbers=("NCHW", "OIHW", "NCHW"),
    )
    assert out.shape == (N, Cout, H, W)
    assert jnp.allclose(out, ref, atol=1e-3, rtol=1e-3)

    print("KERNEL_OK")
</pallas_src>

<mosaic_0001>
module attributes {stable_mosaic.version = 11 : i64} {
  func.func @_conv1x1_kernel(%arg0: i32, %arg1: i32, %arg2: memref<1x1392x196xf32, #tpu.memory_space<vmem>>, %arg3: memref<464x1392xf32, #tpu.memory_space<vmem>>, %arg4: memref<1x464x196xf32, #tpu.memory_space<vmem>>) attributes {dimension_semantics = [#tpu.dimension_semantics<parallel>, #tpu.dimension_semantics<parallel>], iteration_bounds = array<i64: 1, 3>, scalar_prefetch = 0 : i64, scratch_operands = 0 : i64, tpu.core_type = #tpu.core_type<tc>, window_params = [{transform_indices = @transform_0, window_bounds = array<i64: 1, 1392, 196>}, {transform_indices = @transform_1, window_bounds = array<i64: 464, 1392>}, {transform_indices = @transform_2, window_bounds = array<i64: 1, 464, 196>}]} {
    %c0 = arith.constant 0 : index
    %c0_0 = arith.constant 0 : index
    %0 = vector.load %arg3[%c0, %c0_0] : memref<464x1392xf32, #tpu.memory_space<vmem>>, vector<464x1392xf32>
    %c0_1 = arith.constant 0 : index
    %c0_2 = arith.constant 0 : index
    %c0_3 = arith.constant 0 : index
    %1 = vector.load %arg2[%c0_1, %c0_2, %c0_3] : memref<1x1392x196xf32, #tpu.memory_space<vmem>>, vector<1x1392x196xf32>
    %2 = vector.shape_cast %1 : vector<1x1392x196xf32> to vector<1392x196xf32>
    %cst = arith.constant dense<0.000000e+00> : vector<464x196xf32>
    %3 = tpu.matmul %0, %2, %cst {dimension_numbers = #tpu.dot_dimension_numbers<[1], [0], [0], [1], [0, 0, 1, 1], [], []>} : vector<464x1392xf32>, vector<1392x196xf32>, vector<464x196xf32> -> vector<464x196xf32>
    %c0_4 = arith.constant 0 : index
    %c0_5 = arith.constant 0 : index
    %c0_6 = arith.constant 0 : index
    %4 = vector.load %arg4[%c0_4, %c0_5, %c0_6] : memref<1x464x196xf32, #tpu.memory_space<vmem>>, vector<1x464x196xf32>
    %5 = vector.shape_cast %4 : vector<1x464x196xf32> to vector<464x196xf32>
    %6 = vector.shape_cast %3 : vector<464x196xf32> to vector<1x464x196xf32>
    tpu.vector_store %arg4[%c0_4, %c0_5, %c0_6], %6 {strides = array<i32>} : memref<1x464x196xf32, #tpu.memory_space<vmem>>, vector<1x464x196xf32>,
    return
  }
  func.func @transform_0(%arg0: i32, %arg1: i32) -> (i32, i32, i32) {
    %c0_i32 = arith.constant 0 : i32
    %c0_i32_0 = arith.constant 0 : i32
    %c0_i32_1 = arith.constant 0 : i32
    return %arg0, %c0_i32, %c0_i32_0 : i32, i32, i32
  }
  func.func @transform_1(%arg0: i32, %arg1: i32) -> (i32, i32) {
    %c0_i32 = arith.constant 0 : i32
    %c0_i32_0 = arith.constant 0 : i32
    return %arg1, %c0_i32 : i32, i32
  }
  func.func @transform_2(%arg0: i32, %arg1: i32) -> (i32, i32, i32) {
    %c0_i32 = arith.constant 0 : i32
    %c0_i32_0 = arith.constant 0 : i32
    return %arg0, %arg1, %c0_i32 : i32, i32, i32
  }
}

</mosaic_0001>

<llo_original>
// kernel: tpu_custom_call.1
$region0: #{tpu_custom_call.1}
  #allocation0 [shape = 'u32[]', space=smem, size = 0x4, offset = 0x4, fixed_abs, tag = 'smem constant byte address 0x4 - core index']
  #allocation1 [shape = 'u32[144,128]{1,0:T(1,128)}', space=vmem, size = 0x12000, scoped, tag = 'internal scratch']
  %s0 = inlined_call_operand.vmem [shape: f32[1,1392,196], index: 0, kind: input, shape index: {}]
  %s1 = inlined_call_operand.hbm [shape: f32[1392,1392], index: 1, kind: input, shape index: {}]
  %s2 = inlined_call_operand.vmem [shape: f32[1,1392,196], index: 2, kind: output, shape index: {}]
  %s3 = sld [smem:[#allocation0]]
  $region45: #{tpu_custom_call.1} parent=0
    _
  %s5 = ssub.s32 1, %s3
  %s6 = scalar_select 0, %s5, %s3
  $region1: #{tpu_custom_call.1} parent=0
    #allocation2 [shape = 'u8[5226496]{0}', space=vmem, size = 0x4fc000, scoped, tag = 'input window, operand 1']
    #allocation3 [shape = 's32[2]{0}', space=sflag, size = 0x8, scoped, tag = 'scoped memory for tpu_custom_call.1']
    %7 = vsyncpa [#allocation3], 0
    %s8 = scalar_lea.sflag [#allocation3], 1
    %9 = vsyncpa %s8, 0
    loop: start=0, step=1, limit=5
    $region2: #{tpu_custom_call.1} parent=1 // loop_pre_header
      _
    $region3: #{tpu_custom_call.1} parent=1 // loop_header
      %s11 = sphi 0, %s15
      %p12 = scmp.ge.s32.totalorder %s11, 5
      %s18 = sphi 0, %s30
      %s19 = sphi 0, %s26
      %s20 = sphi 0, %s18
      %s21 = sphi 0, %s19
      %s22 = sphi 0, %s20
      %s23 = sphi 0, %s21
      %s33 = sphi 0, %s35
      %s36 = sphi 0, %s33
      %s37 = sphi 0, %s36
      %s53 = sphi 0, %s37
      %s59 = sphi 0, %s61
      %s62 = sphi 0, %s59
      %s63 = sphi 0, %s62
      %s79 = sphi 0, %s63
      %s87 = sphi 0, %s89
      %s90 = sphi 0, %s87
      %s91 = sphi 0, %s90
      %s107 = sphi 0, %s91
    $region4: #{tpu_custom_call.1} parent=1 // loop_header_branch
      %14 = sbr.rel (%p12) target = $region8
    $region5: #{tpu_custom_call.1} parent=1 // loop_body
      %s16 = ssub.s32 %s11, 1
      %s17 = ssub.s32 %s11, 2
      %s24 = sadd.s32 1, %s19
      %p25 = scmp.ge.s32.totalorder %s24, 3
      %s26 = scalar_select %p25, 0, %s24
      %s27 = sadd.s32 1, %s18
      %s28 = scalar_select %p25, %s27, %s18
      %p29 = scmp.ge.s32.totalorder %s28, 1
      %s30 = scalar_select %p29, 0, %s28
      %s31 = ssub.s32 %s18, %s30
      %p32 = scmp.eq.s32.totalorder %s31, 0
      %s34 = sadd.s32 %s33, 1
      %s35 = scalar_select %p32, %s33, %s34
      %p38 = pneg %p32
      %p39 = scmp.eq.s32.totalorder %s11, 2
      %p40 = por %p38, %p39
      %p41 = scmp.ne.s32.totalorder %s33, %s36
      %p42 = scmp.eq.s32.totalorder %s11, 0
      %p43 = por %p41, %p42
      %p44 = scmp.ne.s32.totalorder %s33, %s36
      %p45 = scmp.eq.s32.totalorder %s16, 2
      %p46 = por %p44, %p45
      %p47 = scmp.ne.s32.totalorder %s36, %s37
      %p48 = scmp.eq.s32.totalorder %s16, 0
      %p49 = por %p47, %p48
      %p50 = scmp.ne.s32.totalorder %s36, %s37
      %p51 = scmp.eq.s32.totalorder %s17, 2
      %p52 = por %p50, %p51
      %p54 = scmp.ne.s32.totalorder %s37, %s53
      %p55 = scmp.eq.s32.totalorder %s17, 0
      %p56 = por %p54, %p55
      %s57 = ssub.s32 %s19, %s26
      %p58 = scmp.eq.s32.totalorder %s57, 0
      %s60 = sadd.s32 %s59, 1
      %s61 = scalar_select %p58, %s59, %s60
      %p64 = pneg %p58
      %p65 = scmp.eq.s32.totalorder %s11, 2
      %p66 = por %p64, %p65
      %p67 = scmp.ne.s32.totalorder %s59, %s62
      %p68 = scmp.eq.s32.totalorder %s11, 0
      %p69 = por %p67, %p68
      %p70 = scmp.ne.s32.totalorder %s59, %s62
      %p71 = scmp.eq.s32.totalorder %s16, 2
      %p72 = por %p70, %p71
      %p73 = scmp.ne.s32.totalorder %s62, %s63
      %p74 = scmp.eq.s32.totalorder %s16, 0
      %p75 = por %p73, %p74
      %p76 = scmp.ne.s32.totalorder %s62, %s63
      %p77 = scmp.eq.s32.totalorder %s17, 2
      %p78 = por %p76, %p77
      %p80 = scmp.ne.s32.totalorder %s63, %s79
      %p81 = scmp.eq.s32.totalorder %s17, 0
      %p82 = por %p80, %p81
      %s83 = ssub.s32 %s18, %s30
      %s84 = ssub.s32 %s19, %s26
      %s85 = sor.u32 %s83, %s84
      %p86 = scmp.eq.s32.totalorder %s85, 0
      %s88 = sadd.s32 %s87, 1
      %s89 = scalar_select %p86, %s87, %s88
      %p92 = pneg %p86
      %p93 = scmp.eq.s32.totalorder %s11, 2
      %p94 = por %p92, %p93
      %p95 = scmp.ne.s32.totalorder %s87, %s90
      %p96 = scmp.eq.s32.totalorder %s11, 0
      %p97 = por %p95, %p96
      %p98 = scmp.ne.s32.totalorder %s87, %s90
      %p99 = scmp.eq.s32.totalorder %s16, 2
      %p100 = por %p98, %p99
      %p101 = scmp.ne.s32.totalorder %s90, %s91
      %p102 = scmp.eq.s32.totalorder %s16, 0
      %p103 = por %p101, %p102
      %p104 = scmp.ne.s32.totalorder %s90, %s91
      %p105 = scmp.eq.s32.totalorder %s17, 2
      %p106 = por %p104, %p105
      %p108 = scmp.ne.s32.totalorder %s91, %s107
      %p109 = scmp.eq.s32.totalorder %s17, 0
      %p110 = por %p108, %p109
      %p111 = scmp.le.s32.totalorder 1, %s11
      %p112 = scmp.lt.s32.totalorder %s11, 4
      %p113 = pnand %p111, %p112
      %p114 = pneg %p113
      // Predicated region
      $region9: #{tpu_custom_call.1} parent=5 // pred_check
        _
      $region10: #{tpu_custom_call.1} parent=5 // pred_check_branch
        %116 = sbr.rel (%p113) target = $region12
      $region11: #{tpu_custom_call.1} parent=5 // pred_region
        %s117 = ssub.s32 %s11, 1
        // Predicated region
        $region13: #{tpu_custom_call.1} parent=11 // pred_check
          %p118 = pneg %p49
        $region14: #{tpu_custom_call.1} parent=11 // pred_check_branch
          %120 = sbr.rel (%p118) target = $region16
        $region15: #{tpu_custom_call.1} parent=11 // pred_region
          %p121 = scmp.lt.s32.totalorder %s20, 0
          %s122 = scalar_select %p121, %s20, 0
          %s123 = smul.addr %s122, 348
          %s124 = smul.addr %s123, 8
          %s125 = scalar_lea.vmem %s0, %s124
        $region16: #{tpu_custom_call.1} parent=11 // pred_fallthru
          _
      $region12: #{tpu_custom_call.1} parent=5 // pred_fallthru
        _
      %p126 = scmp.lt.s32.totalorder %s11, 3
      // Predicated region
      $region17: #{tpu_custom_call.1} parent=5 // pred_check
        %p127 = pneg %p126
      $region18: #{tpu_custom_call.1} parent=5 // pred_check_branch
        %129 = sbr.rel (%p127) target = $region20
      $region19: #{tpu_custom_call.1} parent=5 // pred_region
        // Predicated region
        $region21: #{tpu_custom_call.1} parent=19 // pred_check
          %p130 = pneg %p69
        $region22: #{tpu_custom_call.1} parent=19 // pred_check_branch
          %132 = sbr.rel (%p130) target = $region24
        $region23: #{tpu_custom_call.1} parent=19 // pred_region
          %s133 = sand.u32 %s59, 1
          %s134 = scalar_lea.sflag [#allocation3], %s133
          %s135 = sand.u32 %s59, 1
          %s136 = smul.addr %s135, 5104
          %s137 = scalar_lea.vmem [#allocation2], %s136
          %s138 = smul.u32 58, %s19
          %s140 = ssub.s32 81664, 81664
          %141 = vsyncadd %s134, %s140
          %s142 = smul.addr %s138, 11
          %s143 = smul.addr %s142, 128
          %s144 = scalar_lea.hbm %s1, %s143
          %s145 = sshll.u32 %s137, 4
          %s146 = int_to_ptr.vmem [resolvable:$true] %s145
          %151 = dma.hbm_to_vmem [thread:$0]  %s144, 81664, %s146, %s134, 1408, 1408, 88
        $region24: #{tpu_custom_call.1} parent=19 // pred_fallthru
          _
      $region20: #{tpu_custom_call.1} parent=5 // pred_fallthru
        _
      %p152 = scmp.le.s32.totalorder 1, %s11
      %p153 = scmp.lt.s32.totalorder %s11, 4
      %p154 = pnand %p152, %p153
      %p155 = pneg %p154
      // Predicated region
      $region25: #{tpu_custom_call.1} parent=5 // pred_check
        _
      $region26: #{tpu_custom_call.1} parent=5 // pred_check_branch
        %157 = sbr.rel (%p154) target = $region28
      $region27: #{tpu_custom_call.1} parent=5 // pred_region
        %s158 = ssub.s32 %s11, 1
        %s159 = sand.u32 %s62, 1
        %s160 = scalar_lea.sflag [#allocation3], %s159
        %s161 = sand.u32 %s62, 1
        %s162 = smul.addr %s161, 5104
        %s163 = scalar_lea.vmem [#allocation2], %s162
        // Predicated region
        $region29: #{tpu_custom_call.1} parent=27 // pred_check
          %p164 = pneg %p75
        $region30: #{tpu_custom_call.1} parent=27 // pred_check_branch
          %166 = sbr.rel (%p164) target = $region32
        $region31: #{tpu_custom_call.1} parent=27 // pred_region
          %167 = dma.done %s160, 81664
        $region32: #{tpu_custom_call.1} parent=27 // pred_fallthru
          _
        %p168 = scmp.lt.s32.totalorder %s20, 0
        %s169 = scalar_select %p168, %s20, 0
        %s170 = smul.addr %s169, 348
        %s171 = smul.addr %s170, 8
        %s172 = scalar_lea.vmem %s0, %s171
        %p173 = pneg %p49
        %p174 = pneg %p46
        %s175 = sand.u32 %s62, 1
        %s176 = scalar_lea.sflag [#allocation3], %s175
        %s177 = sand.u32 %s62, 1
        %s178 = smul.addr %s177, 5104
        %s179 = scalar_lea.vmem [#allocation2], %s178
        %p180 = pneg %p75
        %p181 = pneg %p72
        %p182 = pneg %p103
        %p183 = pneg %p100
        %s184 = smul.u32 58, %s21
        %p185 = scmp.lt.s32.totalorder %s20, 0
        %s186 = scalar_select %p185, %s20, 0
        %p187 = scmp.lt.s32.totalorder %s184, 173
        %s188 = scalar_select %p187, %s184, 173
        %s189 = smul.addr %s188, 2
        %s190 = smul.addr %s186, 348
        %s191 = sadd.s32 %s189, %s190
        %s192 = smul.addr %s191, 8
        %s193 = scalar_lea.vmem %s2, %s192
        %p194 = scmp.lt.s32.totalorder %s20, 0
        %s195 = scalar_select %p194, %s20, 0
        %s196 = smul.addr %s195, 348
        %s197 = smul.addr %s196, 8
        %s198 = scalar_lea.vmem %s0, %s197
        %s199 = smul.u32 58, %s21
        %s200 = smul.u32 58, %s21
        %p201 = scmp.lt.s32.totalorder %s20, 0
        %s202 = scalar_select %p201, %s20, 0
        %p203 = scmp.lt.s32.totalorder %s200, 173
        %s204 = scalar_select %p203, %s200, 173
        %s205 = smul.addr %s204, 2
        %s206 = smul.addr %s202, 348
        %s207 = sadd.s32 %s205, %s206
        %s208 = smul.addr %s207, 8
        %s209 = scalar_lea.vmem %s2, %s208
        %s210 = smul.u32 58, %s21
        %v211 = vld [vmem:[%s163] sm:$0xff]
        %v212 = vld [vmem:[%s163 + $0x8] sm:$0xff]
        %v213 = vld [vmem:[%s163 + $0x10] sm:$0xff]
        %v214 = vld [vmem:[%s163 + $0x18] sm:$0xff]
        %v215 = vld [vmem:[%s163 + $0x20] sm:$0xff]
        %v216 = vld [vmem:[%s163 + $0x28] sm:$0xff]
        %v217 = vld [vmem:[%s163 + $0x30] sm:$0xff]
        %v218 = vld [vmem:[%s163 + $0x38] sm:$0xff]
        %v219 = vld [vmem:[%s163 + $0x40] sm:$0xff]
        %v220 = vld [vmem:[%s163 + $0x48] sm:$0xff]
        %v221 = vld [vmem:[%s163 + $0x50] sm:$0xff]
        %v222 = vld [vmem:[%s163 + $0x58] sm:$0xff]
        %v223 = vld [vmem:[%s163 + $0x60] sm:$0xff]
        %v224 = vld [vmem:[%s163 + $0x68] sm:$0xff]
        %v225 = vld [vmem:[%s163 + $0x70] sm:$0xff]
        %v226 = vld [vmem:[%s163 + $0x78] sm:$0xff]
        %v227 = vld [vmem:[%s163 + $0x80] sm:$0xff]
        %v228 = vld [vmem:[%s163 + $0x88] sm:$0xff]
        %v229 = vld [vmem:[%s163 + $0x90] sm:$0xff]
        %v230 = vld [vmem:[%s163 + $0x98] sm:$0xff]
        %v231 = vld [vmem:[%s163 + $0xa0] sm:$0xff]
        %v232 = vld [vmem:[%s163 + $0xa8] sm:$0xff]
        %v233 = vld [vmem:[%s163 + $0xb0] sm:$0xff]
        %v234 = vld [vmem:[%s163 + $0xb8] sm:$0xff]
        %v235 = vld [vmem:[%s163 + $0xc0] sm:$0xff]
        %v236 = vld [vmem:[%s163 + $0xc8] sm:$0xff]
        %v237 = vld [vmem:[%s163 + $0xd0] sm:$0xff]
        %v238 = vld [vmem:[%s163 + $0xd8] sm:$0xff]
        %v239 = vld [vmem:[%s163 + $0xe0] sm:$0xff]
        %v240 = vld [vmem:[%s163 + $0xe8] sm:$0xff]
        %v241 = vld [vmem:[%s163 + $0xf0] sm:$0xff]
        %v242 = vld [vmem:[%s163 + $0xf8] sm:$0xff]
        %v243 = vld [vmem:[%s163 + $0x100] sm:$0xff]
        %v244 = vld [vmem:[%s163 + $0x108] sm:$0xff]
        %v245 = vld [vmem:[%s163 + $0x110] sm:$0xff]
        %v246 = vld [vmem:[%s163 + $0x118] sm:$0xff]
        %v247 = vld [vmem:[%s163 + $0x120] sm:$0xff]
        %v248 = vld [vmem:[%s163 + $0x128] sm:$0xff]
        %v249 = vld [vmem:[%s163 + $0x130] sm:$0xff]
        %v250 = vld [vmem:[%s163 + $0x138] sm:$0xff]
        %v251 = vld [vmem:[%s163 + $0x140] sm:$0xff]
        %v252 = vld [vmem:[%s163 + $0x148] sm:$0xff]
        %v253 = vld [vmem:[%s163 + $0x150] sm:$0xff]
        %v254 = vld [vmem:[%s163 + $0x158] sm:$0xff]
        %v255 = vld [vmem:[%s163 + $0x160] sm:$0xff]
        %v256 = vld [vmem:[%s163 + $0x168] sm:$0xff]
        %v257 = vld [vmem:[%s163 + $0x170] sm:$0xff]
        %v258 = vld [vmem:[%s163 + $0x178] sm:$0xff]
        %v259 = vld [vmem:[%s163 + $0x180] sm:$0xff]
        %v260 = vld [vmem:[%s163 + $0x188] sm:$0xff]
        %v261 = vld [vmem:[%s163 + $0x190] sm:$0xff]
        %v262 = vld [vmem:[%s163 + $0x198] sm:$0xff]
        %v263 = vld [vmem:[%s163 + $0x1a0] sm:$0xff]
        %v264 = vld [vmem:[%s163 + $0x1a8] sm:$0xff]
        %v265 = vld [vmem:[%s163 + $0x1b0] sm:$0xff]
        %v266 = vld [vmem:[%s163 + $0x1b8] sm:$0xff]
        %v267 = vld [vmem:[%s163 + $0x1c0] sm:$0xff]
        %v268 = vld [vmem:[%s163 + $0x1c8] sm:$0xff]
        %v269 = vld [vmem:[%s163 + $0x1d0] sm:$0xff]
        %v270 = vld [vmem:[%s163 + $0x1d8] sm:$0xff]
        %v271 = vld [vmem:[%s163 + $0x1e0] sm:$0xff]
        %v272 = vld [vmem:[%s163 + $0x1e8] sm:$0xff]
        %v273 = vld [vmem:[%s163 + $0x1f0] sm:$0xff]
        %v274 = vld [vmem:[%s163 + $0x1f8] sm:$0xff]
        %v275 = vld [vmem:[%s163 + $0x200] sm:$0xff]
        %v276 = vld [vmem:[%s163 + $0x208] sm:$0xff]
        %v277 = vld [vmem:[%s163 + $0x210] sm:$0xff]
        %v278 = vld [vmem:[%s163 + $0x218] sm:$0xff]
        %v279 = vld [vmem:[%s163 + $0x220] sm:$0xff]
        %v280 = vld [vmem:[%s163 + $0x228] sm:$0xff]
        %v281 = vld [vmem:[%s163 + $0x230] sm:$0xff]
        %v282 = vld [vmem:[%s163 + $0x238] sm:$0xff]
        %v283 = vld [vmem:[%s163 + $0x240] sm:$0xff]
        %v284 = vld [vmem:[%s163 + $0x248] sm:$0xff]
        %v285 = vld [vmem:[%s163 + $0x250] sm:$0xff]
        %v286 = vld [vmem:[%s163 + $0x258] sm:$0xff]
        %v287 = vld [vmem:[%s163 + $0x260] sm:$0xff]
        %v288 = vld [vmem:[%s163 + $0x268] sm:$0xff]
        %v289 = vld [vmem:[%s163 + $0x270] sm:$0xff]
        %v290 = vld [vmem:[%s163 + $0x278] sm:$0xff]
        %v291 = vld [vmem:[%s163 + $0x280] sm:$0xff]
        %v292 = vld [vmem:[%s163 + $0x288] sm:$0xff]
        %v293 = vld [vmem:[%s163 + $0x290] sm:$0xff]
        %v294 = vld [vmem:[%s163 + $0x298] sm:$0xff]
        %v295 = vld [vmem:[%s163 + $0x2a0] sm:$0xff]
        %v296 = vld [vmem:[%s163 + $0x2a8] sm:$0xff]
        %v297 = vld [vmem:[%s163 + $0x2b0] sm:$0xff]
        %v298 = vld [vmem:[%s163 + $0x2b8] sm:$0xff]
        %v299 = vld [vmem:[%s163 + $0x2c0] sm:$0xff]
        %v300 = vld [vmem:[%s163 + $0x2c8] sm:$0xff]
        %v301 = vld [vmem:[%s163 + $0x2d0] sm:$0xff]
        %v302 = vld [vmem:[%s163 + $0x2d8] sm:$0xff]
        %v303 = vld [vmem:[%s163 + $0x2e0] sm:$0xff]
        %v304 = vld [vmem:[%s163 + $0x2e8] sm:$0xff]
        %v305 = vld [vmem:[%s163 + $0x2f0] sm:$0xff]
        %v306 = vld [vmem:[%s163 + $0x2f8] sm:$0xff]
        %v307 = vld [vmem:[%s163 + $0x300] sm:$0xff]
        %v308 = vld [vmem:[%s163 + $0x308] sm:$0xff]
        %v309 = vld [vmem:[%s163 + $0x310] sm:$0xff]
        %v310 = vld [vmem:[%s163 + $0x318] sm:$0xff]
        %v311 = vld [vmem:[%s163 + $0x320] sm:$0xff]
        %v312 = vld [vmem:[%s163 + $0x328] sm:$0xff]
        %v313 = vld [vmem:[%s163 + $0x330] sm:$0xff]
        %v314 = vld [vmem:[%s163 + $0x338] sm:$0xff]
        %v315 = vld [vmem:[%s163 + $0x340] sm:$0xff]
        %v316 = vld [vmem:[%s163 + $0x348] sm:$0xff]
        %v317 = vld [vmem:[%s163 + $0x350] sm:$0xff]
        %v318 = vld [vmem:[%s163 + $0x358] sm:$0xff]
        %v319 = vld [vmem:[%s163 + $0x360] sm:$0xff]
        %v320 = vld [vmem:[%s163 + $0x368] sm:$0xff]
        %v321 = vld [vmem:[%s163 + $0x370] sm:$0xff]
        %v322 = vld [vmem:[%s163 + $0x378] sm:$0xff]
        %v323 = vld [vmem:[%s163 + $0x380] sm:$0xff]
        %v324 = vld [vmem:[%s163 + $0x388] sm:$0xff]
        %v325 = vld [vmem:[%s163 + $0x390] sm:$0xff]
        %v326 = vld [vmem:[%s163 + $0x398] sm:$0xff]
        %v327 = vld [vmem:[%s163 + $0x3a0] sm:$0xff]
        %v328 = vld [vmem:[%s163 + $0x3a8] sm:$0xff]
        %v329 = vld [vmem:[%s163 + $0x3b0] sm:$0xff]
        %v330 = vld [vmem:[%s163 + $0x3b8] sm:$0xff]
        %v331 = vld [vmem:[%s163 + $0x3c0] sm:$0xff]
        %v332 = vld [vmem:[%s163 + $0x3c8] sm:$0xff]
        %v333 = vld [vmem:[%s163 + $0x3d0] sm:$0xff]
        %v334 = vld [vmem:[%s163 + $0x3d8] sm:$0xff]
        %v335 = vld [vmem:[%s163 + $0x3e0] sm:$0xff]
        %v336 = vld [vmem:[%s163 + $0x3e8] sm:$0xff]
        %v337 = vld [vmem:[%s163 + $0x3f0] sm:$0xff]
        %v338 = vld [vmem:[%s163 + $0x3f8] sm:$0xff]
        %v339 = vld [vmem:[%s163 + $0x400] sm:$0xff]
        %v340 = vld [vmem:[%s163 + $0x408] sm:$0xff]
        %v341 = vld [vmem:[%s163 + $0x410] sm:$0xff]
        %v342 = vld [vmem:[%s163 + $0x418] sm:$0xff]
        %v343 = vld [vmem:[%s163 + $0x420] sm:$0xff]
        %v344 = vld [vmem:[%s163 + $0x428] sm:$0xff]
        %v345 = vld [vmem:[%s163 + $0x430] sm:$0xff]
        %v346 = vld [vmem:[%s163 + $0x438] sm:$0xff]
        %v347 = vld [vmem:[%s163 + $0x440] sm:$0xff]
        %v348 = vld [vmem:[%s163 + $0x448] sm:$0xff]
        %v349 = vld [vmem:[%s163 + $0x450] sm:$0xff]
        %v350 = vld [vmem:[%s163 + $0x458] sm:$0xff]
        %v351 = vld [vmem:[%s163 + $0x460] sm:$0xff]
        %v352 = vld [vmem:[%s163 + $0x468] sm:$0xff]
        %v353 = vld [vmem:[%s163 + $0x470] sm:$0xff]
        %v354 = vld [vmem:[%s163 + $0x478] sm:$0xff]
        %v355 = vld [vmem:[%s163 + $0x480] sm:$0xff]
        %v356 = vld [vmem:[%s163 + $0x488] sm:$0xff]
        %v357 = vld [vmem:[%s163 + $0x490] sm:$0xff]
        %v358 = vld [vmem:[%s163 + $0x498] sm:$0xff]
        %v359 = vld [vmem:[%s163 + $0x4a0] sm:$0xff]
        %v360 = vld [vmem:[%s163 + $0x4a8] sm:$0xff]
        %v361 = vld [vmem:[%s163 + $0x4b0] sm:$0xff]
        %v362 = vld [vmem:[%s163 + $0x4b8] sm:$0xff]
        %v363 = vld [vmem:[%s163 + $0x4c0] sm:$0xff]
        %v364 = vld [vmem:[%s163 + $0x4c8] sm:$0xff]
        %v365 = vld [vmem:[%s163 + $0x4d0] sm:$0xff]
        %v366 = vld [vmem:[%s163 + $0x4d8] sm:$0xff]
        %v367 = vld [vmem:[%s163 + $0x4e0] sm:$0xff]
        %v368 = vld [vmem:[%s163 + $0x4e8] sm:$0xff]
        %v369 = vld [vmem:[%s163 + $0x4f0] sm:$0xff]
        %v370 = vld [vmem:[%s163 + $0x4f8] sm:$0xff]
        %v371 = vld [vmem:[%s163 + $0x500] sm:$0xff]
        %v372 = vld [vmem:[%s163 + $0x508] sm:$0xff]
        %v373 = vld [vmem:[%s163 + $0x510] sm:$0xff]
        %v374 = vld [vmem:[%s163 + $0x518] sm:$0xff]
        %v375 = vld [vmem:[%s163 + $0x520] sm:$0xff]
        %v376 = vld [vmem:[%s163 + $0x528] sm:$0xff]
        %v377 = vld [vmem:[%s163 + $0x530] sm:$0xff]
        %v378 = vld [vmem:[%s163 + $0x538] sm:$0xff]
        %v379 = vld [vmem:[%s163 + $0x540] sm:$0xff]
        %v380 = vld [vmem:[%s163 + $0x548] sm:$0xff]
        %v381 = vld [vmem:[%s163 + $0x550] sm:$0xff]
        %v382 = vld [vmem:[%s163 + $0x558] sm:$0xff]
        %v383 = vld [vmem:[%s163 + $0x560] sm:$0xff]
        %v384 = vld [vmem:[%s163 + $0x568] sm:$0xff]
        %v385 = vld [vmem:[%s163 + $0x570] sm:$0xff]
        %v386 = vld [vmem:[%s163 + $0x578] sm:$0xff]
        %v387 = vld [vmem:[%s163 + $0x580] sm:$0xff]
        %v388 = vld [vmem:[%s163 + $0x588] sm:$0xff]
        %v389 = vld [vmem:[%s163 + $0x590] sm:$0xff]
        %v390 = vld [vmem:[%s163 + $0x598] sm:$0xff]
        %v391 = vld [vmem:[%s163 + $0x5a0] sm:$0xff]
        %v392 = vld [vmem:[%s163 + $0x5a8] sm:$0xff]
        %v393 = vld [vmem:[%s163 + $0x5b0] sm:$0xff]
        %v394 = vld [vmem:[%s163 + $0x5b8] sm:$0xff]
        %v395 = vld [vmem:[%s163 + $0x5c0] sm:$0xff]
        %v396 = vld [vmem:[%s163 + $0x5c8] sm:$0xff]
        %v397 = vld [vmem:[%s163 + $0x5d0] sm:$0xff]
        %v398 = vld [vmem:[%s163 + $0x5d8] sm:$0xff]
        %v399 = vld [vmem:[%s163 + $0x5e0] sm:$0xff]
        %v400 = vld [vmem:[%s163 + $0x5e8] sm:$0xff]
        %v401 = vld [vmem:[%s163 + $0x5f0] sm:$0xff]
        %v402 = vld [vmem:[%s163 + $0x5f8] sm:$0xff]
        %v403 = vld [vmem:[%s163 + $0x600] sm:$0xff]
        %v404 = vld [vmem:[%s163 + $0x608] sm:$0xff]
        %v405 = vld [vmem:[%s163 + $0x610] sm:$0xff]
        %v406 = vld [vmem:[%s163 + $0x618] sm:$0xff]
        %v407 = vld [vmem:[%s163 + $0x620] sm:$0xff]
        %v408 = vld [vmem:[%s163 + $0x628] sm:$0xff]
        %v409 = vld [vmem:[%s163 + $0x630] sm:$0xff]
        %v410 = vld [vmem:[%s163 + $0x638] sm:$0xff]
        %v411 = vld [vmem:[%s163 + $0x640] sm:$0xff]
        %v412 = vld [vmem:[%s163 + $0x648] sm:$0xff]
        %v413 = vld [vmem:[%s163 + $0x650] sm:$0xff]
        %v414 = vld [vmem:[%s163 + $0x658] sm:$0xff]
        %v415 = vld [vmem:[%s163 + $0x660] sm:$0xff]
        %v416 = vld [vmem:[%s163 + $0x668] sm:$0xff]
        %v417 = vld [vmem:[%s163 + $0x670] sm:$0xff]
        %v418 = vld [vmem:[%s163 + $0x678] sm:$0xff]
        %v419 = vld [vmem:[%s163 + $0x680] sm:$0xff]
        %v420 = vld [vmem:[%s163 + $0x688] sm:$0xff]
        %v421 = vld [vmem:[%s163 + $0x690] sm:$0xff]
        %v422 = vld [vmem:[%s163 + $0x698] sm:$0xff]
        %v423 = vld [vmem:[%s163 + $0x6a0] sm:$0xff]
        %v424 = vld [vmem:[%s163 + $0x6a8] sm:$0xff]
        %v425 = vld [vmem:[%s163 + $0x6b0] sm:$0xff]
        %v426 = vld [vmem:[%s163 + $0x6b8] sm:$0xff]
        %v427 = vld [vmem:[%s163 + $0x6c0] sm:$0xff]
        %v428 = vld [vmem:[%s163 + $0x6c8] sm:$0xff]
        %v429 = vld [vmem:[%s163 + $0x6d0] sm:$0xff]
        %v430 = vld [vmem:[%s163 + $0x6d8] sm:$0xff]
        %v431 = vld [vmem:[%s163 + $0x6e0] sm:$0xff]
        %v432 = vld [vmem:[%s163 + $0x6e8] sm:$0xff]
        %v433 = vld [vmem:[%s163 + $0x6f0] sm:$0xff]
        %v434 = vld [vmem:[%s163 + $0x6f8] sm:$0xff]
        %v435 = vld [vmem:[%s163 + $0x700] sm:$0xff]
        %v436 = vld [vmem:[%s163 + $0x708] sm:$0xff]
        %v437 = vld [vmem:[%s163 + $0x710] sm:$0xff]
        %v438 = vld [vmem:[%s163 + $0x718] sm:$0xff]
        %v439 = vld [vmem:[%s163 + $0x720] sm:$0xff]
        %v440 = vld [vmem:[%s163 + $0x728] sm:$0xff]
        %v441 = vld [vmem:[%s163 + $0x730] sm:$0xff]
        %v442 = vld [vmem:[%s163 + $0x738] sm:$0xff]
        %v443 = vld [vmem:[%s163 + $0x740] sm:$0xff]
        %v444 = vld [vmem:[%s163 + $0x748] sm:$0xff]
        %v445 = vld [vmem:[%s163 + $0x750] sm:$0xff]
        %v446 = vld [vmem:[%s163 + $0x758] sm:$0xff]
        %v447 = vld [vmem:[%s163 + $0x760] sm:$0xff]
        %v448 = vld [vmem:[%s163 + $0x768] sm:$0xff]
        %v449 = vld [vmem:[%s163 + $0x770] sm:$0xff]
        %v450 = vld [vmem:[%s163 + $0x778] sm:$0xff]
        %v451 = vld [vmem:[%s163 + $0x780] sm:$0xff]
        %v452 = vld [vmem:[%s163 + $0x788] sm:$0xff]
        %v453 = vld [vmem:[%s163 + $0x790] sm:$0xff]
        %v454 = vld [vmem:[%s163 + $0x798] sm:$0xff]
        %v455 = vld [vmem:[%s163 + $0x7a0] sm:$0xff]
        %v456 = vld [vmem:[%s163 + $0x7a8] sm:$0xff]
        %v457 = vld [vmem:[%s163 + $0x7b0] sm:$0xff]
        %v458 = vld [vmem:[%s163 + $0x7b8] sm:$0xff]
        %v459 = vld [vmem:[%s163 + $0x7c0] sm:$0xff]
        %v460 = vld [vmem:[%s163 + $0x7c8] sm:$0xff]
        %v461 = vld [vmem:[%s163 + $0x7d0] sm:$0xff]
        %v462 = vld [vmem:[%s163 + $0x7d8] sm:$0xff]
        %v463 = vld [vmem:[%s163 + $0x7e0] sm:$0xff]
        %v464 = vld [vmem:[%s163 + $0x7e8] sm:$0xff]
        %v465 = vld [vmem:[%s163 + $0x7f0] sm:$0xff]
        %v466 = vld [vmem:[%s163 + $0x7f8] sm:$0xff]
        %v467 = vld [vmem:[%s163 + $0x800] sm:$0xff]
        %v468 = vld [vmem:[%s163 + $0x808] sm:$0xff]
        %v469 = vld [vmem:[%s163 + $0x810] sm:$0xff]
        %v470 = vld [vmem:[%s163 + $0x818] sm:$0xff]
        %v471 = vld [vmem:[%s163 + $0x820] sm:$0xff]
        %v472 = vld [vmem:[%s163 + $0x828] sm:$0xff]
        %v473 = vld [vmem:[%s163 + $0x830] sm:$0xff]
        %v474 = vld [vmem:[%s163 + $0x838] sm:$0xff]
        %v475 = vld [vmem:[%s163 + $0x840] sm:$0xff]
        %v476 = vld [vmem:[%s163 + $0x848] sm:$0xff]
        %v477 = vld [vmem:[%s163 + $0x850] sm:$0xff]
        %v478 = vld [vmem:[%s163 + $0x858] sm:$0xff]
        %v479 = vld [vmem:[%s163 + $0x860] sm:$0xff]
        %v480 = vld [vmem:[%s163 + $0x868] sm:$0xff]
        %v481 = vld [vmem:[%s163 + $0x870] sm:$0xff]
        %v482 = vld [vmem:[%s163 + $0x878] sm:$0xff]
        %v483 = vld [vmem:[%s163 + $0x880] sm:$0xff]
        %v484 = vld [vmem:[%s163 + $0x888] sm:$0xff]
        %v485 = vld [vmem:[%s163 + $0x890] sm:$0xff]
        %v486 = vld [vmem:[%s163 + $0x898] sm:$0xff]
        %v487 = vld [vmem:[%s163 + $0x8a0] sm:$0xff]
        %v488 = vld [vmem:[%s163 + $0x8a8] sm:$0xff]
        %v489 = vld [vmem:[%s163 + $0x8b0] sm:$0xff]
        %v490 = vld [vmem:[%s163 + $0x8b8] sm:$0xff]
        %v491 = vld [vmem:[%s163 + $0x8c0] sm:$0xff]
        %v492 = vld [vmem:[%s163 + $0x8c8] sm:$0xff]
        %v493 = vld [vmem:[%s163 + $0x8d0] sm:$0xff]
        %v494 = vld [vmem:[%s163 + $0x8d8] sm:$0xff]
        %v495 = vld [vmem:[%s163 + $0x8e0] sm:$0xff]
        %v496 = vld [vmem:[%s163 + $0x8e8] sm:$0xff]
        %v497 = vld [vmem:[%s163 + $0x8f0] sm:$0xff]
        %v498 = vld [vmem:[%s163 + $0x8f8] sm:$0xff]
        %v499 = vld [vmem:[%s163 + $0x900] sm:$0xff]
        %v500 = vld [vmem:[%s163 + $0x908] sm:$0xff]
        %v501 = vld [vmem:[%s163 + $0x910] sm:$0xff]
        %v502 = vld [vmem:[%s163 + $0x918] sm:$0xff]
        %v503 = vld [vmem:[%s163 + $0x920] sm:$0xff]
        %v504 = vld [vmem:[%s163 + $0x928] sm:$0xff]
        %v505 = vld [vmem:[%s163 + $0x930] sm:$0xff]
        %v506 = vld [vmem:[%s163 + $0x938] sm:$0xff]
        %v507 = vld [vmem:[%s163 + $0x940] sm:$0xff]
        %v508 = vld [vmem:[%s163 + $0x948] sm:$0xff]
        %v509 = vld [vmem:[%s163 + $0x950] sm:$0xff]
        %v510 = vld [vmem:[%s163 + $0x958] sm:$0xff]
        %v511 = vld [vmem:[%s163 + $0x960] sm:$0xff]
        %v512 = vld [vmem:[%s163 + $0x968] sm:$0xff]
        %v513 = vld [vmem:[%s163 + $0x970] sm:$0xff]
        %v514 = vld [vmem:[%s163 + $0x978] sm:$0xff]
        %v515 = vld [vmem:[%s163 + $0x980] sm:$0xff]
        %v516 = vld [vmem:[%s163 + $0x988] sm:$0xff]
        %v517 = vld [vmem:[%s163 + $0x990] sm:$0xff]
        %v518 = vld [vmem:[%s163 + $0x998] sm:$0xff]
        %v519 = vld [vmem:[%s163 + $0x9a0] sm:$0xff]
        %v520 = vld [vmem:[%s163 + $0x9a8] sm:$0xff]
        %v521 = vld [vmem:[%s163 + $0x9b0] sm:$0xff]
        %v522 = vld [vmem:[%s163 + $0x9b8] sm:$0xff]
        %v523 = vld [vmem:[%s163 + $0x9c0] sm:$0xff]
        %v524 = vld [vmem:[%s163 + $0x9c8] sm:$0xff]
        %v525 = vld [vmem:[%s163 + $0x9d0] sm:$0xff]
        %v526 = vld [vmem:[%s163 + $0x9d8] sm:$0xff]
        %v527 = vld [vmem:[%s163 + $0x9e0] sm:$0xff]
        %v528 = vld [vmem:[%s163 + $0x9e8] sm:$0xff]
        %v529 = vld [vmem:[%s163 + $0x9f0] sm:$0xff]
        %v530 = vld [vmem:[%s163 + $0x9f8] sm:$0xff]
        %v531 = vld [vmem:[%s163 + $0xa00] sm:$0xff]
        %v532 = vld [vmem:[%s163 + $0xa08] sm:$0xff]
        %v533 = vld [vmem:[%s163 + $0xa10] sm:$0xff]
        %v534 = vld [vmem:[%s163 + $0xa18] sm:$0xff]
        %v535 = vld [vmem:[%s163 + $0xa20] sm:$0xff]
        %v536 = vld [vmem:[%s163 + $0xa28] sm:$0xff]
        %v537 = vld [vmem:[%s163 + $0xa30] sm:$0xff]
        %v538 = vld [vmem:[%s163 + $0xa38] sm:$0xff]
        %v539 = vld [vmem:[%s163 + $0xa40] sm:$0xff]
        %v540 = vld [vmem:[%s163 + $0xa48] sm:$0xff]
        %v541 = vld [vmem:[%s163 + $0xa50] sm:$0xff]
        %v542 = vld [vmem:[%s163 + $0xa58] sm:$0xff]
        %v543 = vld [vmem:[%s163 + $0xa60] sm:$0xff]
        %v544 = vld [vmem:[%s163 + $0xa68] sm:$0xff]
        %v545 = vld [vmem:[%s163 + $0xa70] sm:$0xff]
        %v546 = vld [vmem:[%s163 + $0xa78] sm:$0xff]
        %v547 = vld [vmem:[%s163 + $0xa80] sm:$0xff]
        %v548 = vld [vmem:[%s163 + $0xa88] sm:$0xff]
        %v549 = vld [vmem:[%s163 + $0xa90] sm:$0xff]
        %v550 = vld [vmem:[%s163 + $0xa98] sm:$0xff]
        %v551 = vld [vmem:[%s163 + $0xaa0] sm:$0xff]
        %v552 = vld [vmem:[%s163 + $0xaa8] sm:$0xff]
        %v553 = vld [vmem:[%s163 + $0xab0] sm:$0xff]
        %v554 = vld [vmem:[%s163 + $0xab8] sm:$0xff]
        %v555 = vld [vmem:[%s163 + $0xac0] sm:$0xff]
        %v556 = vld [vmem:[%s163 + $0xac8] sm:$0xff]
        %v557 = vld [vmem:[%s163 + $0xad0] sm:$0xff]
        %v558 = vld [vmem:[%s163 + $0xad8] sm:$0xff]
        %v559 = vld [vmem:[%s163 + $0xae0] sm:$0xff]
        %v560 = vld [vmem:[%s163 + $0xae8] sm:$0xff]
        %v561 = vld [vmem:[%s163 + $0xaf0] sm:$0xff]
        %v562 = vld [vmem:[%s163 + $0xaf8] sm:$0xff]
        %v563 = vld [vmem:[%s163 + $0xb00] sm:$0xff]
        %v564 = vld [vmem:[%s163 + $0xb08] sm:$0xff]
        %v565 = vld [vmem:[%s163 + $0xb10] sm:$0xff]
        %v566 = vld [vmem:[%s163 + $0xb18] sm:$0xff]
        %v567 = vld [vmem:[%s163 + $0xb20] sm:$0xff]
        %v568 = vld [vmem:[%s163 + $0xb28] sm:$0xff]
        %v569 = vld [vmem:[%s163 + $0xb30] sm:$0xff]
        %v570 = vld [vmem:[%s163 + $0xb38] sm:$0xff]
        %v571 = vld [vmem:[%s163 + $0xb40] sm:$0xff]
        %v572 = vld [vmem:[%s163 + $0xb48] sm:$0xff]
        %v573 = vld [vmem:[%s163 + $0xb50] sm:$0xff]
        %v574 = vld [vmem:[%s163 + $0xb58] sm:$0xff]
        %v575 = vld [vmem:[%s163 + $0xb60] sm:$0xff]
        %v576 = vld [vmem:[%s163 + $0xb68] sm:$0xff]
        %v577 = vld [vmem:[%s163 + $0xb70] sm:$0xff]
        %v578 = vld [vmem:[%s163 + $0xb78] sm:$0xff]
        %v579 = vld [vmem:[%s163 + $0xb80] sm:$0xff]
        %v580 = vld [vmem:[%s163 + $0xb88] sm:$0xff]
        %v581 = vld [vmem:[%s163 + $0xb90] sm:$0xff]
        %v582 = vld [vmem:[%s163 + $0xb98] sm:$0xff]
        %v583 = vld [vmem:[%s163 + $0xba0] sm:$0xff]
        %v584 = vld [vmem:[%s163 + $0xba8] sm:$0xff]
        %v585 = vld [vmem:[%s163 + $0xbb0] sm:$0xff]
        %v586 = vld [vmem:[%s163 + $0xbb8] sm:$0xff]
        %v587 = vld [vmem:[%s163 + $0xbc0] sm:$0xff]
        %v588 = vld [vmem:[%s163 + $0xbc8] sm:$0xff]
        %v589 = vld [vmem:[%s163 + $0xbd0] sm:$0xff]
        %v590 = vld [vmem:[%s163 + $0xbd8] sm:$0xff]
        %v591 = vld [vmem:[%s163 + $0xbe0] sm:$0xff]
        %v592 = vld [vmem:[%s163 + $0xbe8] sm:$0xff]
        %v593 = vld [vmem:[%s163 + $0xbf0] sm:$0xff]
        %v594 = vld [vmem:[%s163 + $0xbf8] sm:$0xff]
        %v595 = vld [vmem:[%s163 + $0xc00] sm:$0xff]
        %v596 = vld [vmem:[%s163 + $0xc08] sm:$0xff]
        %v597 = vld [vmem:[%s163 + $0xc10] sm:$0xff]
        %v598 = vld [vmem:[%s163 + $0xc18] sm:$0xff]
        %v599 = vld [vmem:[%s163 + $0xc20] sm:$0xff]
        %v600 = vld [vmem:[%s163 + $0xc28] sm:$0xff]
        %v601 = vld [vmem:[%s163 + $0xc30] sm:$0xff]
        %v602 = vld [vmem:[%s163 + $0xc38] sm:$0xff]
        %v603 = vld [vmem:[%s163 + $0xc40] sm:$0xff]
        %v604 = vld [vmem:[%s163 + $0xc48] sm:$0xff]
        %v605 = vld [vmem:[%s163 + $0xc50] sm:$0xff]
        %v606 = vld [vmem:[%s163 + $0xc58] sm:$0xff]
        %v607 = vld [vmem:[%s163 + $0xc60] sm:$0xff]
        %v608 = vld [vmem:[%s163 + $0xc68] sm:$0xff]
        %v609 = vld [vmem:[%s163 + $0xc70] sm:$0xff]
        %v610 = vld [vmem:[%s163 + $0xc78] sm:$0xff]
        %v611 = vld [vmem:[%s163 + $0xc80] sm:$0xff]
        %v612 = vld [vmem:[%s163 + $0xc88] sm:$0xff]
        %v613 = vld [vmem:[%s163 + $0xc90] sm:$0xff]
        %v614 = vld [vmem:[%s163 + $0xc98] sm:$0xff]
        %v615 = vld [vmem:[%s163 + $0xca0] sm:$0xff]
        %v616 = vld [vmem:[%s163 + $0xca8] sm:$0xff]
        %v617 = vld [vmem:[%s163 + $0xcb0] sm:$0xff]
        %v618 = vld [vmem:[%s163 + $0xcb8] sm:$0xff]
        %v619 = vld [vmem:[%s163 + $0xcc0] sm:$0xff]
        %v620 = vld [vmem:[%s163 + $0xcc8] sm:$0xff]
        %v621 = vld [vmem:[%s163 + $0xcd0] sm:$0xff]
        %v622 = vld [vmem:[%s163 + $0xcd8] sm:$0xff]
        %v623 = vld [vmem:[%s163 + $0xce0] sm:$0xff]
        %v624 = vld [vmem:[%s163 + $0xce8] sm:$0xff]
        %v625 = vld [vmem:[%s163 + $0xcf0] sm:$0xff]
        %v626 = vld [vmem:[%s163 + $0xcf8] sm:$0xff]
        %v627 = vld [vmem:[%s163 + $0xd00] sm:$0xff]
        %v628 = vld [vmem:[%s163 + $0xd08] sm:$0xff]
        %v629 = vld [vmem:[%s163 + $0xd10] sm:$0xff]
        %v630 = vld [vmem:[%s163 + $0xd18] sm:$0xff]
        %v631 = vld [vmem:[%s163 + $0xd20] sm:$0xff]
        %v632 = vld [vmem:[%s163 + $0xd28] sm:$0xff]
        %v633 = vld [vmem:[%s163 + $0xd30] sm:$0xff]
        %v634 = vld [vmem:[%s163 + $0xd38] sm:$0xff]
        %v635 = vld [vmem:[%s163 + $0xd40] sm:$0xff]
        %v636 = vld [vmem:[%s163 + $0xd48] sm:$0xff]
        %v637 = vld [vmem:[%s163 + $0xd50] sm:$0xff]
        %v638 = vld [vmem:[%s163 + $0xd58] sm:$0xff]
        %v639 = vld [vmem:[%s163 + $0xd60] sm:$0xff]
        %v640 = vld [vmem:[%s163 + $0xd68] sm:$0xff]
        %v641 = vld [vmem:[%s163 + $0xd70] sm:$0xff]
        %v642 = vld [vmem:[%s163 + $0xd78] sm:$0xff]
        %v643 = vld [vmem:[%s163 + $0xd80] sm:$0xff]
        %v644 = vld [vmem:[%s163 + $0xd88] sm:$0xff]
        %v645 = vld [vmem:[%s163 + $0xd90] sm:$0xff]
        %v646 = vld [vmem:[%s163 + $0xd98] sm:$0xff]
        %v647 = vld [vmem:[%s163 + $0xda0] sm:$0xff]
        %v648 = vld [vmem:[%s163 + $0xda8] sm:$0xff]
        %v649 = vld [vmem:[%s163 + $0xdb0] sm:$0xff]
        %v650 = vld [vmem:[%s163 + $0xdb8] sm:$0xff]
        %v651 = vld [vmem:[%s163 + $0xdc0] sm:$0xff]
        %v652 = vld [vmem:[%s163 + $0xdc8] sm:$0xff]
        %v653 = vld [vmem:[%s163 + $0xdd0] sm:$0xff]
        %v654 = vld [vmem:[%s163 + $0xdd8] sm:$0xff]
        %v655 = vld [vmem:[%s163 + $0xde0] sm:$0xff]
        %v656 = vld [vmem:[%s163 + $0xde8] sm:$0xff]
        %v657 = vld [vmem:[%s163 + $0xdf0] sm:$0xff]
        %v658 = vld [vmem:[%s163 + $0xdf8] sm:$0xff]
        %v659 = vld [vmem:[%s163 + $0xe00] sm:$0xff]
        %v660 = vld [vmem:[%s163 + $0xe08] sm:$0xff]
        %v661 = vld [vmem:[%s163 + $0xe10] sm:$0xff]
        %v662 = vld [vmem:[%s163 + $0xe18] sm:$0xff]
        %v663 = vld [vmem:[%s163 + $0xe20] sm:$0xff]
        %v664 = vld [vmem:[%s163 + $0xe28] sm:$0xff]
        %v665 = vld [vmem:[%s163 + $0xe30] sm:$0xff]
        %v666 = vld [vmem:[%s163 + $0xe38] sm:$0xff]
        %v667 = vld [vmem:[%s163 + $0xe40] sm:$0xff]
        %v668 = vld [vmem:[%s163 + $0xe48] sm:$0xff]
        %v669 = vld [vmem:[%s163 + $0xe50] sm:$0xff]
        %v670 = vld [vmem:[%s163 + $0xe58] sm:$0xff]
        %v671 = vld [vmem:[%s163 + $0xe60] sm:$0xff]
        %v672 = vld [vmem:[%s163 + $0xe68] sm:$0xff]
        %v673 = vld [vmem:[%s163 + $0xe70] sm:$0xff]
        %v674 = vld [vmem:[%s163 + $0xe78] sm:$0xff]
        %v675 = vld [vmem:[%s163 + $0xe80] sm:$0xff]
        %v676 = vld [vmem:[%s163 + $0xe88] sm:$0xff]
        %v677 = vld [vmem:[%s163 + $0xe90] sm:$0xff]
        %v678 = vld [vmem:[%s163 + $0xe98] sm:$0xff]
        %v679 = vld [vmem:[%s163 + $0xea0] sm:$0xff]
        %v680 = vld [vmem:[%s163 + $0xea8] sm:$0xff]
        %v681 = vld [vmem:[%s163 + $0xeb0] sm:$0xff]
        %v682 = vld [vmem:[%s163 + $0xeb8] sm:$0xff]
        %v683 = vld [vmem:[%s163 + $0xec0] sm:$0xff]
        %v684 = vld [vmem:[%s163 + $0xec8] sm:$0xff]
        %v685 = vld [vmem:[%s163 + $0xed0] sm:$0xff]
        %v686 = vld [vmem:[%s163 + $0xed8] sm:$0xff]
        %v687 = vld [vmem:[%s163 + $0xee0] sm:$0xff]
        %v688 = vld [vmem:[%s163 + $0xee8] sm:$0xff]
        %v689 = vld [vmem:[%s163 + $0xef0] sm:$0xff]
        %v690 = vld [vmem:[%s163 + $0xef8] sm:$0xff]
        %v691 = vld [vmem:[%s163 + $0xf00] sm:$0xff]
        %v692 = vld [vmem:[%s163 + $0xf08] sm:$0xff]
        %v693 = vld [vmem:[%s163 + $0xf10] sm:$0xff]
        %v694 = vld [vmem:[%s163 + $0xf18] sm:$0xff]
        %v695 = vld [vmem:[%s163 + $0xf20] sm:$0xff]
        %v696 = vld [vmem:[%s163 + $0xf28] sm:$0xff]
        %v697 = vld [vmem:[%s163 + $0xf30] sm:$0xff]
        %v698 = vld [vmem:[%s163 + $0xf38] sm:$0xff]
        %v699 = vld [vmem:[%s163 + $0xf40] sm:$0xff]
        %v700 = vld [vmem:[%s163 + $0xf48] sm:$0xff]
        %v701 = vld [vmem:[%s163 + $0xf50] sm:$0xff]
        %v702 = vld [vmem:[%s163 + $0xf58] sm:$0xff]
        %v703 = vld [vmem:[%s163 + $0xf60] sm:$0xff]
        %v704 = vld [vmem:[%s163 + $0xf68] sm:$0xff]
        %v705 = vld [vmem:[%s163 + $0xf70] sm:$0xff]
        %v706 = vld [vmem:[%s163 + $0xf78] sm:$0xff]
        %v707 = vld [vmem:[%s163 + $0xf80] sm:$0xff]
        %v708 = vld [vmem:[%s163 + $0xf88] sm:$0xff]
        %v709 = vld [vmem:[%s163 + $0xf90] sm:$0xff]
        %v710 = vld [vmem:[%s163 + $0xf98] sm:$0xff]
        %v711 = vld [vmem:[%s163 + $0xfa0] sm:$0xff]
        %v712 = vld [vmem:[%s163 + $0xfa8] sm:$0xff]
        %v713 = vld [vmem:[%s163 + $0xfb0] sm:$0xff]
        %v714 = vld [vmem:[%s163 + $0xfb8] sm:$0xff]
        %v715 = vld [vmem:[%s163 + $0xfc0] sm:$0xff]
        %v716 = vld [vmem:[%s163 + $0xfc8] sm:$0xff]
        %v717 = vld [vmem:[%s163 + $0xfd0] sm:$0xff]
        %v718 = vld [vmem:[%s163 + $0xfd8] sm:$0xff]
        %v719 = vld [vmem:[%s163 + $0xfe0] sm:$0xff]
        %v720 = vld [vmem:[%s163 + $0xfe8] sm:$0xff]
        %v721 = vld [vmem:[%s163 + $0xff0] sm:$0xff]
        %v722 = vld [vmem:[%s163 + $0xff8] sm:$0xff]
        %v723 = vld [vmem:[%s163 + $0x1000] sm:$0xff]
        %v724 = vld [vmem:[%s163 + $0x1008] sm:$0xff]
        %v725 = vld [vmem:[%s163 + $0x1010] sm:$0xff]
        %v726 = vld [vmem:[%s163 + $0x1018] sm:$0xff]
        %v727 = vld [vmem:[%s163 + $0x1020] sm:$0xff]
        %v728 = vld [vmem:[%s163 + $0x1028] sm:$0xff]
        %v729 = vld [vmem:[%s163 + $0x1030] sm:$0xff]
        %v730 = vld [vmem:[%s163 + $0x1038] sm:$0xff]
        %v731 = vld [vmem:[%s163 + $0x1040] sm:$0xff]
        %v732 = vld [vmem:[%s163 + $0x1048] sm:$0xff]
        %v733 = vld [vmem:[%s163 + $0x1050] sm:$0xff]
        %v734 = vld [vmem:[%s163 + $0x1058] sm:$0xff]
        %v735 = vld [vmem:[%s163 + $0x1060] sm:$0xff]
        %v736 = vld [vmem:[%s163 + $0x1068] sm:$0xff]
        %v737 = vld [vmem:[%s163 + $0x1070] sm:$0xff]
        %v738 = vld [vmem:[%s163 + $0x1078] sm:$0xff]
        %v739 = vld [vmem:[%s163 + $0x1080] sm:$0xff]
        %v740 = vld [vmem:[%s163 + $0x1088] sm:$0xff]
        %v741 = vld [vmem:[%s163 + $0x1090] sm:$0xff]
        %v742 = vld [vmem:[%s163 + $0x1098] sm:$0xff]
        %v743 = vld [vmem:[%s163 + $0x10a0] sm:$0xff]
        %v744 = vld [vmem:[%s163 + $0x10a8] sm:$0xff]
        %v745 = vld [vmem:[%s163 + $0x10b0] sm:$0xff]
        %v746 = vld [vmem:[%s163 + $0x10b8] sm:$0xff]
        %v747 = vld [vmem:[%s163 + $0x10c0] sm:$0xff]
        %v748 = vld [vmem:[%s163 + $0x10c8] sm:$0xff]
        %v749 = vld [vmem:[%s163 + $0x10d0] sm:$0xff]
        %v750 = vld [vmem:[%s163 + $0x10d8] sm:$0xff]
        %v751 = vld [vmem:[%s163 + $0x10e0] sm:$0xff]
        %v752 = vld [vmem:[%s163 + $0x10e8] sm:$0xff]
        %v753 = vld [vmem:[%s163 + $0x10f0] sm:$0xff]
        %v754 = vld [vmem:[%s163 + $0x10f8] sm:$0xff]
        %v755 = vld [vmem:[%s163 + $0x1100] sm:$0xff]
        %v756 = vld [vmem:[%s163 + $0x1108] sm:$0xff]
        %v757 = vld [vmem:[%s163 + $0x1110] sm:$0xff]
        %v758 = vld [vmem:[%s163 + $0x1118] sm:$0xff]
        %v759 = vld [vmem:[%s163 + $0x1120] sm:$0xff]
        %v760 = vld [vmem:[%s163 + $0x1128] sm:$0xff]
        %v761 = vld [vmem:[%s163 + $0x1130] sm:$0xff]
        %v762 = vld [vmem:[%s163 + $0x1138] sm:$0xff]
        %v763 = vld [vmem:[%s163 + $0x1140] sm:$0xff]
        %v764 = vld [vmem:[%s163 + $0x1148] sm:$0xff]
        %v765 = vld [vmem:[%s163 + $0x1150] sm:$0xff]
        %v766 = vld [vmem:[%s163 + $0x1158] sm:$0xff]
        %v767 = vld [vmem:[%s163 + $0x1160] sm:$0xff]
        %v768 = vld [vmem:[%s163 + $0x1168] sm:$0xff]
        %v769 = vld [vmem:[%s163 + $0x1170] sm:$0xff]
        %v770 = vld [vmem:[%s163 + $0x1178] sm:$0xff]
        %v771 = vld [vmem:[%s163 + $0x1180] sm:$0xff]
        %v772 = vld [vmem:[%s163 + $0x1188] sm:$0xff]
        %v773 = vld [vmem:[%s163 + $0x1190] sm:$0xff]
        %v774 = vld [vmem:[%s163 + $0x1198] sm:$0xff]
        %v775 = vld [vmem:[%s163 + $0x11a0] sm:$0xff]
        %v776 = vld [vmem:[%s163 + $0x11a8] sm:$0xff]
        %v777 = vld [vmem:[%s163 + $0x11b0] sm:$0xff]
        %v778 = vld [vmem:[%s163 + $0x11b8] sm:$0xff]
        %v779 = vld [vmem:[%s163 + $0x11c0] sm:$0xff]
        %v780 = vld [vmem:[%s163 + $0x11c8] sm:$0xff]
        %v781 = vld [vmem:[%s163 + $0x11d0] sm:$0xff]
        %v782 = vld [vmem:[%s163 + $0x11d8] sm:$0xff]
        %v783 = vld [vmem:[%s163 + $0x11e0] sm:$0xff]
        %v784 = vld [vmem:[%s163 + $0x11e8] sm:$0xff]
        %v785 = vld [vmem:[%s163 + $0x11f0] sm:$0xff]
        %v786 = vld [vmem:[%s163 + $0x11f8] sm:$0xff]
        %v787 = vld [vmem:[%s163 + $0x1200] sm:$0xff]
        %v788 = vld [vmem:[%s163 + $0x1208] sm:$0xff]
        %v789 = vld [vmem:[%s163 + $0x1210] sm:$0xff]
        %v790 = vld [vmem:[%s163 + $0x1218] sm:$0xff]
        %v791 = vld [vmem:[%s163 + $0x1220] sm:$0xff]
        %v792 = vld [vmem:[%s163 + $0x1228] sm:$0xff]
        %v793 = vld [vmem:[%s163 + $0x1230] sm:$0xff]
        %v794 = vld [vmem:[%s163 + $0x1238] sm:$0xff]
        %v795 = vld [vmem:[%s163 + $0x1240] sm:$0xff]
        %v796 = vld [vmem:[%s163 + $0x1248] sm:$0xff]
        %v797 = vld [vmem:[%s163 + $0x1250] sm:$0xff]
        %v798 = vld [vmem:[%s163 + $0x1258] sm:$0xff]
        %v799 = vld [vmem:[%s163 + $0x1260] sm:$0xff]
        %v800 = vld [vmem:[%s163 + $0x1268] sm:$0xff]
        %v801 = vld [vmem:[%s163 + $0x1270] sm:$0xff]
        %v802 = vld [vmem:[%s163 + $0x1278] sm:$0xff]
        %v803 = vld [vmem:[%s163 + $0x1280] sm:$0xff]
        %v804 = vld [vmem:[%s163 + $0x1288] sm:$0xff]
        %v805 = vld [vmem:[%s163 + $0x1290] sm:$0xff]
        %v806 = vld [vmem:[%s163 + $0x1298] sm:$0xff]
        %v807 = vld [vmem:[%s163 + $0x12a0] sm:$0xff]
        %v808 = vld [vmem:[%s163 + $0x12a8] sm:$0xff]
        %v809 = vld [vmem:[%s163 + $0x12b0] sm:$0xff]
        %v810 = vld [vmem:[%s163 + $0x12b8] sm:$0xff]
        %v811 = vld [vmem:[%s163 + $0x12c0] sm:$0xff]
        %v812 = vld [vmem:[%s163 + $0x12c8] sm:$0xff]
        %v813 = vld [vmem:[%s163 + $0x12d0] sm:$0xff]
        %v814 = vld [vmem:[%s163 + $0x12d8] sm:$0xff]
        %v815 = vld [vmem:[%s163 + $0x12e0] sm:$0xff]
        %v816 = vld [vmem:[%s163 + $0x12e8] sm:$0xff]
        %v817 = vld [vmem:[%s163 + $0x12f0] sm:$0xff]
        %v818 = vld [vmem:[%s163 + $0x12f8] sm:$0xff]
        %v819 = vld [vmem:[%s163 + $0x1300] sm:$0xff]
        %v820 = vld [vmem:[%s163 + $0x1308] sm:$0xff]
        %v821 = vld [vmem:[%s163 + $0x1310] sm:$0xff]
        %v822 = vld [vmem:[%s163 + $0x1318] sm:$0xff]
        %v823 = vld [vmem:[%s163 + $0x1320] sm:$0xff]
        %v824 = vld [vmem:[%s163 + $0x1328] sm:$0xff]
        %v825 = vld [vmem:[%s163 + $0x1330] sm:$0xff]
        %v826 = vld [vmem:[%s163 + $0x1338] sm:$0xff]
        %v827 = vld [vmem:[%s163 + $0x1340] sm:$0xff]
        %v828 = vld [vmem:[%s163 + $0x1348] sm:$0xff]
        %v829 = vld [vmem:[%s163 + $0x1350] sm:$0xff]
        %v830 = vld [vmem:[%s163 + $0x1358] sm:$0xff]
        %v831 = vld [vmem:[%s163 + $0x1360] sm:$0xff]
        %v832 = vld [vmem:[%s163 + $0x1368] sm:$0xff]
        %v833 = vld [vmem:[%s163 + $0x1370] sm:$0xff]
        %v834 = vld [vmem:[%s163 + $0x1378] sm:$0xff]
        %v835 = vld [vmem:[%s163 + $0x1380] sm:$0xff]
        %v836 = vld [vmem:[%s163 + $0x1388] sm:$0xff]
        %v837 = vld [vmem:[%s163 + $0x1390] sm:$0xff]
        %v838 = vld [vmem:[%s163 + $0x1398] sm:$0xff]
        %v839 = vld [vmem:[%s163 + $0x13a0] sm:$0xff]
        %v840 = vld [vmem:[%s163 + $0x13a8] sm:$0xff]
        %v841 = vld [vmem:[%s163 + $0x13b0] sm:$0xff]
        %v842 = vld [vmem:[%s163 + $0x13b8] sm:$0xff]
        %v843 = vld [vmem:[%s163 + $0x13c0] sm:$0xff]
        %v844 = vld [vmem:[%s163 + $0x13c8] sm:$0xff]
        %v845 = vld [vmem:[%s163 + $0x13d0] sm:$0xff]
        %v846 = vld [vmem:[%s163 + $0x13d8] sm:$0xff]
        %v847 = vld [vmem:[%s163 + $0x13e0] sm:$0xff]
        %v848 = vld [vmem:[%s163 + $0x13e8] sm:$0xff]
        %v849 = vld [vmem:[%s198] sm:$0xff]
        %v850 = vld [vmem:[%s198 + $0x8] sm:$0xff]
        %v851 = vld [vmem:[%s198 + $0x10] sm:$0xff]
        %v852 = vld [vmem:[%s198 + $0x18] sm:$0xff]
        %v853 = vld [vmem:[%s198 + $0x20] sm:$0xff]
        %v854 = vld [vmem:[%s198 + $0x28] sm:$0xff]
        %v855 = vld [vmem:[%s198 + $0x30] sm:$0xff]
        %v856 = vld [vmem:[%s198 + $0x38] sm:$0xff]
        %v857 = vld [vmem:[%s198 + $0x40] sm:$0xff]
        %v858 = vld [vmem:[%s198 + $0x48] sm:$0xff]
        %v859 = vld [vmem:[%s198 + $0x50] sm:$0xff]
        %v860 = vld [vmem:[%s198 + $0x58] sm:$0xff]
        %v861 = vld [vmem:[%s198 + $0x60] sm:$0xff]
        %v862 = vld [vmem:[%s198 + $0x68] sm:$0xff]
        %v863 = vld [vmem:[%s198 + $0x70] sm:$0xff]
        %v864 = vld [vmem:[%s198 + $0x78] sm:$0xff]
        %v865 = vld [vmem:[%s198 + $0x80] sm:$0xff]
        %v866 = vld [vmem:[%s198 + $0x88] sm:$0xff]
        %v867 = vld [vmem:[%s198 + $0x90] sm:$0xff]
        %v868 = vld [vmem:[%s198 + $0x98] sm:$0xff]
        %v869 = vld [vmem:[%s198 + $0xa0] sm:$0xff]
        %v870 = vld [vmem:[%s198 + $0xa8] sm:$0xff]
        %v871 = vld [vmem:[%s198 + $0xb0] sm:$0xff]
        %v872 = vld [vmem:[%s198 + $0xb8] sm:$0xff]
        %v873 = vld [vmem:[%s198 + $0xc0] sm:$0xff]
        %v874 = vld [vmem:[%s198 + $0xc8] sm:$0xff]
        %v875 = vld [vmem:[%s198 + $0xd0] sm:$0xff]
        %v876 = vld [vmem:[%s198 + $0xd8] sm:$0xff]
        %v877 = vld [vmem:[%s198 + $0xe0] sm:$0xff]
        %v878 = vld [vmem:[%s198 + $0xe8] sm:$0xff]
        %v879 = vld [vmem:[%s198 + $0xf0] sm:$0xff]
        %v880 = vld [vmem:[%s198 + $0xf8] sm:$0xff]
        %v881 = vld [vmem:[%s198 + $0x100] sm:$0xff]
        %v882 = vld [vmem:[%s198 + $0x108] sm:$0xff]
        %v883 = vld [vmem:[%s198 + $0x110] sm:$0xff]
        %v884 = vld [vmem:[%s198 + $0x118] sm:$0xff]
        %v885 = vld [vmem:[%s198 + $0x120] sm:$0xff]
        %v886 = vld [vmem:[%s198 + $0x128] sm:$0xff]
        %v887 = vld [vmem:[%s198 + $0x130] sm:$0xff]
        %v888 = vld [vmem:[%s198 + $0x138] sm:$0xff]
        %v889 = vld [vmem:[%s198 + $0x140] sm:$0xff]
        %v890 = vld [vmem:[%s198 + $0x148] sm:$0xff]
        %v891 = vld [vmem:[%s198 + $0x150] sm:$0xff]
        %v892 = vld [vmem:[%s198 + $0x158] sm:$0xff]
        %v893 = vld [vmem:[%s198 + $0x160] sm:$0xff]
        %v894 = vld [vmem:[%s198 + $0x168] sm:$0xff]
        %v895 = vld [vmem:[%s198 + $0x170] sm:$0xff]
        %v896 = vld [vmem:[%s198 + $0x178] sm:$0xff]
        %v897 = vld [vmem:[%s198 + $0x180] sm:$0xff]
        %v898 = vld [vmem:[%s198 + $0x188] sm:$0xff]
        %v899 = vld [vmem:[%s198 + $0x190] sm:$0xff]
        %v900 = vld [vmem:[%s198 + $0x198] sm:$0xff]
        %v901 = vld [vmem:[%s198 + $0x1a0] sm:$0xff]
        %v902 = vld [vmem:[%s198 + $0x1a8] sm:$0xff]
        %v903 = vld [vmem:[%s198 + $0x1b0] sm:$0xff]
        %v904 = vld [vmem:[%s198 + $0x1b8] sm:$0xff]
        %v905 = vld [vmem:[%s198 + $0x1c0] sm:$0xff]
        %v906 = vld [vmem:[%s198 + $0x1c8] sm:$0xff]
        %v907 = vld [vmem:[%s198 + $0x1d0] sm:$0xff]
        %v908 = vld [vmem:[%s198 + $0x1d8] sm:$0xff]
        %v909 = vld [vmem:[%s198 + $0x1e0] sm:$0xff]
        %v910 = vld [vmem:[%s198 + $0x1e8] sm:$0xff]
        %v911 = vld [vmem:[%s198 + $0x1f0] sm:$0xff]
        %v912 = vld [vmem:[%s198 + $0x1f8] sm:$0xff]
        %v913 = vld [vmem:[%s198 + $0x200] sm:$0xff]
        %v914 = vld [vmem:[%s198 + $0x208] sm:$0xff]
        %v915 = vld [vmem:[%s198 + $0x210] sm:$0xff]
        %v916 = vld [vmem:[%s198 + $0x218] sm:$0xff]
        %v917 = vld [vmem:[%s198 + $0x220] sm:$0xff]
        %v918 = vld [vmem:[%s198 + $0x228] sm:$0xff]
        %v919 = vld [vmem:[%s198 + $0x230] sm:$0xff]
        %v920 = vld [vmem:[%s198 + $0x238] sm:$0xff]
        %v921 = vld [vmem:[%s198 + $0x240] sm:$0xff]
        %v922 = vld [vmem:[%s198 + $0x248] sm:$0xff]
        %v923 = vld [vmem:[%s198 + $0x250] sm:$0xff]
        %v924 = vld [vmem:[%s198 + $0x258] sm:$0xff]
        %v925 = vld [vmem:[%s198 + $0x260] sm:$0xff]
        %v926 = vld [vmem:[%s198 + $0x268] sm:$0xff]
        %v927 = vld [vmem:[%s198 + $0x270] sm:$0xff]
        %v928 = vld [vmem:[%s198 + $0x278] sm:$0xff]
        %v929 = vld [vmem:[%s198 + $0x280] sm:$0xff]
        %v930 = vld [vmem:[%s198 + $0x288] sm:$0xff]
        %v931 = vld [vmem:[%s198 + $0x290] sm:$0xff]
        %v932 = vld [vmem:[%s198 + $0x298] sm:$0xff]
        %v933 = vld [vmem:[%s198 + $0x2a0] sm:$0xff]
        %v934 = vld [vmem:[%s198 + $0x2a8] sm:$0xff]
        %v935 = vld [vmem:[%s198 + $0x2b0] sm:$0xff]
        %v936 = vld [vmem:[%s198 + $0x2b8] sm:$0xff]
        %v937 = vld [vmem:[%s198 + $0x2c0] sm:$0xff]
        %v938 = vld [vmem:[%s198 + $0x2c8] sm:$0xff]
        %v939 = vld [vmem:[%s198 + $0x2d0] sm:$0xff]
        %v940 = vld [vmem:[%s198 + $0x2d8] sm:$0xff]
        %v941 = vld [vmem:[%s198 + $0x2e0] sm:$0xff]
        %v942 = vld [vmem:[%s198 + $0x2e8] sm:$0xff]
        %v943 = vld [vmem:[%s198 + $0x2f0] sm:$0xff]
        %v944 = vld [vmem:[%s198 + $0x2f8] sm:$0xff]
        %v945 = vld [vmem:[%s198 + $0x300] sm:$0xff]
        %v946 = vld [vmem:[%s198 + $0x308] sm:$0xff]
        %v947 = vld [vmem:[%s198 + $0x310] sm:$0xff]
        %v948 = vld [vmem:[%s198 + $0x318] sm:$0xff]
        %v949 = vld [vmem:[%s198 + $0x320] sm:$0xff]
        %v950 = vld [vmem:[%s198 + $0x328] sm:$0xff]
        %v951 = vld [vmem:[%s198 + $0x330] sm:$0xff]
        %v952 = vld [vmem:[%s198 + $0x338] sm:$0xff]
        %v953 = vld [vmem:[%s198 + $0x340] sm:$0xff]
        %v954 = vld [vmem:[%s198 + $0x348] sm:$0xff]
        %v955 = vld [vmem:[%s198 + $0x350] sm:$0xff]
        %v956 = vld [vmem:[%s198 + $0x358] sm:$0xff]
        %v957 = vld [vmem:[%s198 + $0x360] sm:$0xff]
        %v958 = vld [vmem:[%s198 + $0x368] sm:$0xff]
        %v959 = vld [vmem:[%s198 + $0x370] sm:$0xff]
        %v960 = vld [vmem:[%s198 + $0x378] sm:$0xff]
        %v961 = vld [vmem:[%s198 + $0x380] sm:$0xff]
        %v962 = vld [vmem:[%s198 + $0x388] sm:$0xff]
        %v963 = vld [vmem:[%s198 + $0x390] sm:$0xff]
        %v964 = vld [vmem:[%s198 + $0x398] sm:$0xff]
        %v965 = vld [vmem:[%s198 + $0x3a0] sm:$0xff]
        %v966 = vld [vmem:[%s198 + $0x3a8] sm:$0xff]
        %v967 = vld [vmem:[%s198 + $0x3b0] sm:$0xff]
        %v968 = vld [vmem:[%s198 + $0x3b8] sm:$0xff]
        %v969 = vld [vmem:[%s198 + $0x3c0] sm:$0xff]
        %v970 = vld [vmem:[%s198 + $0x3c8] sm:$0xff]
        %v971 = vld [vmem:[%s198 + $0x3d0] sm:$0xff]
        %v972 = vld [vmem:[%s198 + $0x3d8] sm:$0xff]
        %v973 = vld [vmem:[%s198 + $0x3e0] sm:$0xff]
        %v974 = vld [vmem:[%s198 + $0x3e8] sm:$0xff]
        %v975 = vld [vmem:[%s198 + $0x3f0] sm:$0xff]
        %v976 = vld [vmem:[%s198 + $0x3f8] sm:$0xff]
        %v977 = vld [vmem:[%s198 + $0x400] sm:$0xff]
        %v978 = vld [vmem:[%s198 + $0x408] sm:$0xff]
        %v979 = vld [vmem:[%s198 + $0x410] sm:$0xff]
        %v980 = vld [vmem:[%s198 + $0x418] sm:$0xff]
        %v981 = vld [vmem:[%s198 + $0x420] sm:$0xff]
        %v982 = vld [vmem:[%s198 + $0x428] sm:$0xff]
        %v983 = vld [vmem:[%s198 + $0x430] sm:$0xff]
        %v984 = vld [vmem:[%s198 + $0x438] sm:$0xff]
        %v985 = vld [vmem:[%s198 + $0x440] sm:$0xff]
        %v986 = vld [vmem:[%s198 + $0x448] sm:$0xff]
        %v987 = vld [vmem:[%s198 + $0x450] sm:$0xff]
        %v988 = vld [vmem:[%s198 + $0x458] sm:$0xff]
        %v989 = vld [vmem:[%s198 + $0x460] sm:$0xff]
        %v990 = vld [vmem:[%s198 + $0x468] sm:$0xff]
        %v991 = vld [vmem:[%s198 + $0x470] sm:$0xff]
        %v992 = vld [vmem:[%s198 + $0x478] sm:$0xff]
        %v993 = vld [vmem:[%s198 + $0x480] sm:$0xff]
        %v994 = vld [vmem:[%s198 + $0x488] sm:$0xff]
        %v995 = vld [vmem:[%s198 + $0x490] sm:$0xff]
        %v996 = vld [vmem:[%s198 + $0x498] sm:$0xff]
        %v997 = vld [vmem:[%s198 + $0x4a0] sm:$0xff]
        %v998 = vld [vmem:[%s198 + $0x4a8] sm:$0xff]
        %v999 = vld [vmem:[%s198 + $0x4b0] sm:$0xff]
        %v1000 = vld [vmem:[%s198 + $0x4b8] sm:$0xff]
        %v1001 = vld [vmem:[%s198 + $0x4c0] sm:$0xff]
        %v1002 = vld [vmem:[%s198 + $0x4c8] sm:$0xff]
        %v1003 = vld [vmem:[%s198 + $0x4d0] sm:$0xff]
        %v1004 = vld [vmem:[%s198 + $0x4d8] sm:$0xff]
        %v1005 = vld [vmem:[%s198 + $0x4e0] sm:$0xff]
        %v1006 = vld [vmem:[%s198 + $0x4e8] sm:$0xff]
        %v1007 = vld [vmem:[%s198 + $0x4f0] sm:$0xff]
        %v1008 = vld [vmem:[%s198 + $0x4f8] sm:$0xff]
        %v1009 = vld [vmem:[%s198 + $0x500] sm:$0xff]
        %v1010 = vld [vmem:[%s198 + $0x508] sm:$0xff]
        %v1011 = vld [vmem:[%s198 + $0x510] sm:$0xff]
        %v1012 = vld [vmem:[%s198 + $0x518] sm:$0xff]
        %v1013 = vld [vmem:[%s198 + $0x520] sm:$0xff]
        %v1014 = vld [vmem:[%s198 + $0x528] sm:$0xff]
        %v1015 = vld [vmem:[%s198 + $0x530] sm:$0xff]
        %v1016 = vld [vmem:[%s198 + $0x538] sm:$0xff]
        %v1017 = vld [vmem:[%s198 + $0x540] sm:$0xff]
        %v1018 = vld [vmem:[%s198 + $0x548] sm:$0xff]
        %v1019 = vld [vmem:[%s198 + $0x550] sm:$0xff]
        %v1020 = vld [vmem:[%s198 + $0x558] sm:$0xff]
        %v1021 = vld [vmem:[%s198 + $0x560] sm:$0xff]
        %v1022 = vld [vmem:[%s198 + $0x568] sm:$0xff]
        %v1023 = vld [vmem:[%s198 + $0x570] sm:$0xff]
        %v1024 = vld [vmem:[%s198 + $0x578] sm:$0xff]
        %v1025 = vld [vmem:[%s198 + $0x580] sm:$0xff]
        %v1026 = vld [vmem:[%s198 + $0x588] sm:$0xff]
        %v1027 = vld [vmem:[%s198 + $0x590] sm:$0xff]
        %v1028 = vld [vmem:[%s198 + $0x598] sm:$0xff]
        %v1029 = vld [vmem:[%s198 + $0x5a0] sm:$0xff]
        %v1030 = vld [vmem:[%s198 + $0x5a8] sm:$0xff]
        %v1031 = vld [vmem:[%s198 + $0x5b0] sm:$0xff]
        %v1032 = vld [vmem:[%s198 + $0x5b8] sm:$0xff]
        %v1033 = vld [vmem:[%s198 + $0x5c0] sm:$0xff]
        %v1034 = vld [vmem:[%s198 + $0x5c8] sm:$0xff]
        %v1035 = vld [vmem:[%s198 + $0x5d0] sm:$0xff]
        %v1036 = vld [vmem:[%s198 + $0x5d8] sm:$0xff]
        %v1037 = vld [vmem:[%s198 + $0x5e0] sm:$0xff]
        %v1038 = vld [vmem:[%s198 + $0x5e8] sm:$0xff]
        %v1039 = vld [vmem:[%s198 + $0x5f0] sm:$0xff]
        %v1040 = vld [vmem:[%s198 + $0x5f8] sm:$0xff]
        %v1041 = vld [vmem:[%s198 + $0x600] sm:$0xff]
        %v1042 = vld [vmem:[%s198 + $0x608] sm:$0xff]
        %v1043 = vld [vmem:[%s198 + $0x610] sm:$0xff]
        %v1044 = vld [vmem:[%s198 + $0x618] sm:$0xff]
        %v1045 = vld [vmem:[%s198 + $0x620] sm:$0xff]
        %v1046 = vld [vmem:[%s198 + $0x628] sm:$0xff]
        %v1047 = vld [vmem:[%s198 + $0x630] sm:$0xff]
        %v1048 = vld [vmem:[%s198 + $0x638] sm:$0xff]
        %v1049 = vld [vmem:[%s198 + $0x640] sm:$0xff]
        %v1050 = vld [vmem:[%s198 + $0x648] sm:$0xff]
        %v1051 = vld [vmem:[%s198 + $0x650] sm:$0xff]
        %v1052 = vld [vmem:[%s198 + $0x658] sm:$0xff]
        %v1053 = vld [vmem:[%s198 + $0x660] sm:$0xff]
        %v1054 = vld [vmem:[%s198 + $0x668] sm:$0xff]
        %v1055 = vld [vmem:[%s198 + $0x670] sm:$0xff]
        %v1056 = vld [vmem:[%s198 + $0x678] sm:$0xff]
        %v1057 = vld [vmem:[%s198 + $0x680] sm:$0xff]
        %v1058 = vld [vmem:[%s198 + $0x688] sm:$0xff]
        %v1059 = vld [vmem:[%s198 + $0x690] sm:$0xff]
        %v1060 = vld [vmem:[%s198 + $0x698] sm:$0xff]
        %v1061 = vld [vmem:[%s198 + $0x6a0] sm:$0xff]
        %v1062 = vld [vmem:[%s198 + $0x6a8] sm:$0xff]
        %v1063 = vld [vmem:[%s198 + $0x6b0] sm:$0xff]
        %v1064 = vld [vmem:[%s198 + $0x6b8] sm:$0xff]
        %v1065 = vld [vmem:[%s198 + $0x6c0] sm:$0xff]
        %v1066 = vld [vmem:[%s198 + $0x6c8] sm:$0xff]
        %v1067 = vld [vmem:[%s198 + $0x6d0] sm:$0xff]
        %v1068 = vld [vmem:[%s198 + $0x6d8] sm:$0xff]
        %v1069 = vld [vmem:[%s198 + $0x6e0] sm:$0xff]
        %v1070 = vld [vmem:[%s198 + $0x6e8] sm:$0xff]
        %v1071 = vld [vmem:[%s198 + $0x6f0] sm:$0xff]
        %v1072 = vld [vmem:[%s198 + $0x6f8] sm:$0xff]
        %v1073 = vld [vmem:[%s198 + $0x700] sm:$0xff]
        %v1074 = vld [vmem:[%s198 + $0x708] sm:$0xff]
        %v1075 = vld [vmem:[%s198 + $0x710] sm:$0xff]
        %v1076 = vld [vmem:[%s198 + $0x718] sm:$0xff]
        %v1077 = vld [vmem:[%s198 + $0x720] sm:$0xff]
        %v1078 = vld [vmem:[%s198 + $0x728] sm:$0xff]
        %v1079 = vld [vmem:[%s198 + $0x730] sm:$0xff]
        %v1080 = vld [vmem:[%s198 + $0x738] sm:$0xff]
        %v1081 = vld [vmem:[%s198 + $0x740] sm:$0xff]
        %v1082 = vld [vmem:[%s198 + $0x748] sm:$0xff]
        %v1083 = vld [vmem:[%s198 + $0x750] sm:$0xff]
        %v1084 = vld [vmem:[%s198 + $0x758] sm:$0xff]
        %v1085 = vld [vmem:[%s198 + $0x760] sm:$0xff]
        %v1086 = vld [vmem:[%s198 + $0x768] sm:$0xff]
        %v1087 = vld [vmem:[%s198 + $0x770] sm:$0xff]
        %v1088 = vld [vmem:[%s198 + $0x778] sm:$0xff]
        %v1089 = vld [vmem:[%s198 + $0x780] sm:$0xff]
        %v1090 = vld [vmem:[%s198 + $0x788] sm:$0xff]
        %v1091 = vld [vmem:[%s198 + $0x790] sm:$0xff]
        %v1092 = vld [vmem:[%s198 + $0x798] sm:$0xff]
        %v1093 = vld [vmem:[%s198 + $0x7a0] sm:$0xff]
        %v1094 = vld [vmem:[%s198 + $0x7a8] sm:$0xff]
        %v1095 = vld [vmem:[%s198 + $0x7b0] sm:$0xff]
        %v1096 = vld [vmem:[%s198 + $0x7b8] sm:$0xff]
        %v1097 = vld [vmem:[%s198 + $0x7c0] sm:$0xff]
        %v1098 = vld [vmem:[%s198 + $0x7c8] sm:$0xff]
        %v1099 = vld [vmem:[%s198 + $0x7d0] sm:$0xff]
        %v1100 = vld [vmem:[%s198 + $0x7d8] sm:$0xff]
        %v1101 = vld [vmem:[%s198 + $0x7e0] sm:$0xff]
        %v1102 = vld [vmem:[%s198 + $0x7e8] sm:$0xff]
        %v1103 = vld [vmem:[%s198 + $0x7f0] sm:$0xff]
        %v1104 = vld [vmem:[%s198 + $0x7f8] sm:$0xff]
        %v1105 = vld [vmem:[%s198 + $0x800] sm:$0xff]
        %v1106 = vld [vmem:[%s198 + $0x808] sm:$0xff]
        %v1107 = vld [vmem:[%s198 + $0x810] sm:$0xff]
        %v1108 = vld [vmem:[%s198 + $0x818] sm:$0xff]
        %v1109 = vld [vmem:[%s198 + $0x820] sm:$0xff]
        %v1110 = vld [vmem:[%s198 + $0x828] sm:$0xff]
        %v1111 = vld [vmem:[%s198 + $0x830] sm:$0xff]
        %v1112 = vld [vmem:[%s198 + $0x838] sm:$0xff]
        %v1113 = vld [vmem:[%s198 + $0x840] sm:$0xff]
        %v1114 = vld [vmem:[%s198 + $0x848] sm:$0xff]
        %v1115 = vld [vmem:[%s198 + $0x850] sm:$0xff]
        %v1116 = vld [vmem:[%s198 + $0x858] sm:$0xff]
        %v1117 = vld [vmem:[%s198 + $0x860] sm:$0xff]
        %v1118 = vld [vmem:[%s198 + $0x868] sm:$0xff]
        %v1119 = vld [vmem:[%s198 + $0x870] sm:$0xff]
        %v1120 = vld [vmem:[%s198 + $0x878] sm:$0xff]
        %v1121 = vld [vmem:[%s198 + $0x880] sm:$0xff]
        %v1122 = vld [vmem:[%s198 + $0x888] sm:$0xff]
        %v1123 = vld [vmem:[%s198 + $0x890] sm:$0xff]
        %v1124 = vld [vmem:[%s198 + $0x898] sm:$0xff]
        %v1125 = vld [vmem:[%s198 + $0x8a0] sm:$0xff]
        %v1126 = vld [vmem:[%s198 + $0x8a8] sm:$0xff]
        %v1127 = vld [vmem:[%s198 + $0x8b0] sm:$0xff]
        %v1128 = vld [vmem:[%s198 + $0x8b8] sm:$0xff]
        %v1129 = vld [vmem:[%s198 + $0x8c0] sm:$0xff]
        %v1130 = vld [vmem:[%s198 + $0x8c8] sm:$0xff]
        %v1131 = vld [vmem:[%s198 + $0x8d0] sm:$0xff]
        %v1132 = vld [vmem:[%s198 + $0x8d8] sm:$0xff]
        %v1133 = vld [vmem:[%s198 + $0x8e0] sm:$0xff]
        %v1134 = vld [vmem:[%s198 + $0x8e8] sm:$0xff]
        %v1135 = vld [vmem:[%s198 + $0x8f0] sm:$0xff]
        %v1136 = vld [vmem:[%s198 + $0x8f8] sm:$0xff]
        %v1137 = vld [vmem:[%s198 + $0x900] sm:$0xff]
        %v1138 = vld [vmem:[%s198 + $0x908] sm:$0xff]
        %v1139 = vld [vmem:[%s198 + $0x910] sm:$0xff]
        %v1140 = vld [vmem:[%s198 + $0x918] sm:$0xff]
        %v1141 = vld [vmem:[%s198 + $0x920] sm:$0xff]
        %v1142 = vld [vmem:[%s198 + $0x928] sm:$0xff]
        %v1143 = vld [vmem:[%s198 + $0x930] sm:$0xff]
        %v1144 = vld [vmem:[%s198 + $0x938] sm:$0xff]
        %v1145 = vld [vmem:[%s198 + $0x940] sm:$0xff]
        %v1146 = vld [vmem:[%s198 + $0x948] sm:$0xff]
        %v1147 = vld [vmem:[%s198 + $0x950] sm:$0xff]
        %v1148 = vld [vmem:[%s198 + $0x958] sm:$0xff]
        %v1149 = vld [vmem:[%s198 + $0x960] sm:$0xff]
        %v1150 = vld [vmem:[%s198 + $0x968] sm:$0xff]
        %v1151 = vld [vmem:[%s198 + $0x970] sm:$0xff]
        %v1152 = vld [vmem:[%s198 + $0x978] sm:$0xff]
        %v1153 = vld [vmem:[%s198 + $0x980] sm:$0xff]
        %v1154 = vld [vmem:[%s198 + $0x988] sm:$0xff]
        %v1155 = vld [vmem:[%s198 + $0x990] sm:$0xff]
        %v1156 = vld [vmem:[%s198 + $0x998] sm:$0xff]
        %v1157 = vld [vmem:[%s198 + $0x9a0] sm:$0xff]
        %v1158 = vld [vmem:[%s198 + $0x9a8] sm:$0xff]
        %v1159 = vld [vmem:[%s198 + $0x9b0] sm:$0xff]
        %v1160 = vld [vmem:[%s198 + $0x9b8] sm:$0xff]
        %v1161 = vld [vmem:[%s198 + $0x9c0] sm:$0xff]
        %v1162 = vld [vmem:[%s198 + $0x9c8] sm:$0xff]
        %v1163 = vld [vmem:[%s198 + $0x9d0] sm:$0xff]
        %v1164 = vld [vmem:[%s198 + $0x9d8] sm:$0xff]
        %v1165 = vld [vmem:[%s198 + $0x9e0] sm:$0xff]
        %v1166 = vld [vmem:[%s198 + $0x9e8] sm:$0xff]
        %v1167 = vld [vmem:[%s198 + $0x9f0] sm:$0xff]
        %v1168 = vld [vmem:[%s198 + $0x9f8] sm:$0xff]
        %v1169 = vld [vmem:[%s198 + $0xa00] sm:$0xff]
        %v1170 = vld [vmem:[%s198 + $0xa08] sm:$0xff]
        %v1171 = vld [vmem:[%s198 + $0xa10] sm:$0xff]
        %v1172 = vld [vmem:[%s198 + $0xa18] sm:$0xff]
        %v1173 = vld [vmem:[%s198 + $0xa20] sm:$0xff]
        %v1174 = vld [vmem:[%s198 + $0xa28] sm:$0xff]
        %v1175 = vld [vmem:[%s198 + $0xa30] sm:$0xff]
        %v1176 = vld [vmem:[%s198 + $0xa38] sm:$0xff]
        %v1177 = vld [vmem:[%s198 + $0xa40] sm:$0xff]
        %v1178 = vld [vmem:[%s198 + $0xa48] sm:$0xff]
        %v1179 = vld [vmem:[%s198 + $0xa50] sm:$0xff]
        %v1180 = vld [vmem:[%s198 + $0xa58] sm:$0xff]
        %v1181 = vld [vmem:[%s198 + $0xa60] sm:$0xff]
        %v1182 = vld [vmem:[%s198 + $0xa68] sm:$0xff]
        %v1183 = vld [vmem:[%s198 + $0xa70] sm:$0xff]
        %v1184 = vld [vmem:[%s198 + $0xa78] sm:$0xff]
        %v1185 = vld [vmem:[%s198 + $0xa80] sm:$0xff]
        %v1186 = vld [vmem:[%s198 + $0xa88] sm:$0xff]
        %v1187 = vld [vmem:[%s198 + $0xa90] sm:$0xff]
        %v1188 = vld [vmem:[%s198 + $0xa98] sm:$0xff]
        %v1189 = vld [vmem:[%s198 + $0xaa0] sm:$0xff]
        %v1190 = vld [vmem:[%s198 + $0xaa8] sm:$0xff]
        %v1191 = vld [vmem:[%s198 + $0xab0] sm:$0xff]
        %v1192 = vld [vmem:[%s198 + $0xab8] sm:$0xff]
        %v1193 = vld [vmem:[%s198 + $0xac0] sm:$0xff]
        %v1194 = vld [vmem:[%s198 + $0xac8] sm:$0xff]
        %v1195 = vld [vmem:[%s198 + $0xad0] sm:$0xff]
        %v1196 = vld [vmem:[%s198 + $0xad8] sm:$0xff]
        %vm1197 = vcmask 916480
        %v1199 = vsel %vm1197, %v221, 0
        %v1202 = vsel %vm1197, %v232, 0
        %v1205 = vsel %vm1197, %v243, 0
        %v1208 = vsel %vm1197, %v254, 0
        %v1211 = vsel %vm1197, %v265, 0
        %v1214 = vsel %vm1197, %v276, 0
        %v1217 = vsel %vm1197, %v287, 0
        %v1220 = vsel %vm1197, %v298, 0
        %v1223 = vsel %vm1197, %v309, 0
        %v1226 = vsel %vm1197, %v320, 0
        %v1229 = vsel %vm1197, %v331, 0
        %v1232 = vsel %vm1197, %v342, 0
        %v1235 = vsel %vm1197, %v353, 0
        %v1238 = vsel %vm1197, %v364, 0
        %v1241 = vsel %vm1197, %v375, 0
        %v1244 = vsel %vm1197, %v386, 0
        %v1247 = vsel %vm1197, %v397, 0
        %v1250 = vsel %vm1197, %v408, 0
        %v1253 = vsel %vm1197, %v419, 0
        %v1256 = vsel %vm1197, %v430, 0
        %v1259 = vsel %vm1197, %v441, 0
        %v1262 = vsel %vm1197, %v452, 0
        %v1265 = vsel %vm1197, %v463, 0
        %v1268 = vsel %vm1197, %v474, 0
        %v1271 = vsel %vm1197, %v485, 0
        %v1274 = vsel %vm1197, %v496, 0
        %v1277 = vsel %vm1197, %v507, 0
        %v1280 = vsel %vm1197, %v518, 0
        %v1283 = vsel %vm1197, %v529, 0
        %v1286 = vsel %vm1197, %v540, 0
        %v1289 = vsel %vm1197, %v551, 0
        %v1292 = vsel %vm1197, %v562, 0
        %v1295 = vsel %vm1197, %v573, 0
        %v1298 = vsel %vm1197, %v584, 0
        %v1301 = vsel %vm1197, %v595, 0
        %v1304 = vsel %vm1197, %v606, 0
        %v1307 = vsel %vm1197, %v617, 0
        %v1310 = vsel %vm1197, %v628, 0
        %v1313 = vsel %vm1197, %v639, 0
        %v1316 = vsel %vm1197, %v650, 0
        %v1319 = vsel %vm1197, %v661, 0
        %v1322 = vsel %vm1197, %v672, 0
        %v1325 = vsel %vm1197, %v683, 0
        %v1328 = vsel %vm1197, %v694, 0
        %v1331 = vsel %vm1197, %v705, 0
        %v1334 = vsel %vm1197, %v716, 0
        %v1337 = vsel %vm1197, %v727, 0
        %v1340 = vsel %vm1197, %v738, 0
        %v1343 = vsel %vm1197, %v749, 0
        %v1346 = vsel %vm1197, %v760, 0
        %v1349 = vsel %vm1197, %v771, 0
        %v1352 = vsel %vm1197, %v782, 0
        %v1355 = vsel %vm1197, %v793, 0
        %v1358 = vsel %vm1197, %v804, 0
        %v1361 = vsel %vm1197, %v815, 0
        %v1364 = vsel %vm1197, %v826, 0
        %v1367 = vsel %vm1197, %v837, 0
        %v1370 = vsel %vm1197, %v848, 0
        %1372 = vmatprep.subr.mxu0 %v880
        %1373 = vmatpush1.msra.mxu0 %v879
        %1374 = vmatprep.subr.mxu0 %v878
        %1375 = vmatpush1.msra.mxu0 %v877
        %1376 = vmatprep.subr.mxu0 %v876
        %1377 = vmatpush1.msra.mxu0 %v875
        %1378 = vmatprep.subr.mxu0 %v874
        %1379 = vmatpush1.msra.mxu0 %v873
        %1380 = vmatprep.subr.mxu0 %v872
        %1381 = vmatpush1.msra.mxu0 %v871
        %1382 = vmatprep.subr.mxu0 %v870
        %1383 = vmatpush1.msra.mxu0 %v869
        %1384 = vmatprep.subr.mxu0 %v868
        %1385 = vmatpush1.msra.mxu0 %v867
        %1386 = vmatprep.subr.mxu0 %v866
        %1387 = vmatpush1.msra.mxu0 %v865
        %1388 = vmatprep.subr.mxu0 %v864
        %1389 = vmatpush1.msra.mxu0 %v863
        %1390 = vmatprep.subr.mxu0 %v862
        %1391 = vmatpush1.msra.mxu0 %v861
        %1392 = vmatprep.subr.mxu0 %v860
        %1393 = vmatpush1.msra.mxu0 %v859
        %1394 = vmatprep.subr.mxu0 %v858
        %1395 = vmatpush1.msra.mxu0 %v857
        %1396 = vmatprep.subr.mxu0 %v856
        %1397 = vmatpush1.msra.mxu0 %v855
        %1398 = vmatprep.subr.mxu0 %v854
        %1399 = vmatpush1.msra.mxu0 %v853
        %1400 = vmatprep.subr.mxu0 %v852
        %1401 = vmatpush1.msra.mxu0 %v851
        %1402 = vmatprep.subr.mxu0 %v850
        %1403 = vmatpush1.msra.mxu0 %v849
        %1404 = vmatprep.subr.mxu0 %v912
        %1405 = vmatpush2.msra.mxu0 %v911
        %1406 = vmatprep.subr.mxu0 %v910
        %1407 = vmatpush2.msra.mxu0 %v909
        %1408 = vmatprep.subr.mxu0 %v908
        %1409 = vmatpush2.msra.mxu0 %v907
        %1410 = vmatprep.subr.mxu0 %v906
        %1411 = vmatpush2.msra.mxu0 %v905
        %1412 = vmatprep.subr.mxu0 %v904
        %1413 = vmatpush2.msra.mxu0 %v903
        %1414 = vmatprep.subr.mxu0 %v902
        %1415 = vmatpush2.msra.mxu0 %v901
        %1416 = vmatprep.subr.mxu0 %v900
        %1417 = vmatpush2.msra.mxu0 %v899
        %1418 = vmatprep.subr.mxu0 %v898
        %1419 = vmatpush2.msra.mxu0 %v897
        %1420 = vmatprep.subr.mxu0 %v896
        %1421 = vmatpush2.msra.mxu0 %v895
        %1422 = vmatprep.subr.mxu0 %v894
        %1423 = vmatpush2.msra.mxu0 %v893
        %1424 = vmatprep.subr.mxu0 %v892
        %1425 = vmatpush2.msra.mxu0 %v891
        %1426 = vmatprep.subr.mxu0 %v890
        %1427 = vmatpush2.msra.mxu0 %v889
        %1428 = vmatprep.subr.mxu0 %v888
        %1429 = vmatpush2.msra.mxu0 %v887
        %1430 = vmatprep.subr.mxu0 %v886
        %1431 = vmatpush2.msra.mxu0 %v885
        %1432 = vmatprep.subr.mxu0 %v884
        %1433 = vmatpush2.msra.mxu0 %v883
        %1434 = vmatprep.subr.mxu0 %v882
        %1435 = vmatpush2.msra.mxu0 %v881
        %1436 = vmatprep.mubr.f32.mxu0 %v212
        %1437 = vmatmul.mubr.f32.gmra.mxu0 %v211
        %v1438 = vpop.f32.mrf.mxu0
        %v1439 = vadd.f32 0.0, %v1438
        %v1440 = vpop.f32.mrf.mxu0
        %v1441 = vadd.f32 0.0, %v1440
        %1442 = vmatprep.mubr.f32.mxu0 %v223
        %1443 = vmatmul.mubr.f32.gmra.mxu0 %v222
        %v1444 = vpop.f32.mrf.mxu0
        %v1445 = vadd.f32 0.0, %v1444
        %v1446 = vpop.f32.mrf.mxu0
        %v1447 = vadd.f32 0.0, %v1446
        %1448 = vmatprep.mubr.f32.mxu0 %v234
        %1449 = vmatmul.mubr.f32.gmra.mxu0 %v233
        %v1450 = vpop.f32.mrf.mxu0
        %v1451 = vadd.f32 0.0, %v1450
        %v1452 = vpop.f32.mrf.mxu0
        %v1453 = vadd.f32 0.0, %v1452
        %1454 = vmatprep.mubr.f32.mxu0 %v245
        %1455 = vmatmul.mubr.f32.gmra.mxu0 %v244
        %v1456 = vpop.f32.mrf.mxu0
        %v1457 = vadd.f32 0.0, %v1456
        %v1458 = vpop.f32.mrf.mxu0
        %v1459 = vadd.f32 0.0, %v1458
        %1460 = vmatprep.mubr.f32.mxu0 %v256
        %1461 = vmatmul.mubr.f32.gmra.mxu0 %v255
        %v1462 = vpop.f32.mrf.mxu0
        %v1463 = vadd.f32 0.0, %v1462
        %v1464 = vpop.f32.mrf.mxu0
        %v1465 = vadd.f32 0.0, %v1464
        %1466 = vmatprep.mubr.f32.mxu0 %v267
        %1467 = vmatmul.mubr.f32.gmra.mxu0 %v266
        %v1468 = vpop.f32.mrf.mxu0
        %v1469 = vadd.f32 0.0, %v1468
        %v1470 = vpop.f32.mrf.mxu0
        %v1471 = vadd.f32 0.0, %v1470
        %1472 = vmatprep.mubr.f32.mxu0 %v278
        %1473 = vmatmul.mubr.f32.gmra.mxu0 %v277
        %v1474 = vpop.f32.mrf.mxu0
        %v1475 = vadd.f32 0.0, %v1474
        %v1476 = vpop.f32.mrf.mxu0
        %v1477 = vadd.f32 0.0, %v1476
        %1478 = vmatprep.mubr.f32.mxu0 %v289
        %1479 = vmatmul.mubr.f32.gmra.mxu0 %v288
        %v1480 = vpop.f32.mrf.mxu0
        %v1481 = vadd.f32 0.0, %v1480
        %v1482 = vpop.f32.mrf.mxu0
        %v1483 = vadd.f32 0.0, %v1482
        %1484 = vmatprep.mubr.f32.mxu0 %v300
        %1485 = vmatmul.mubr.f32.gmra.mxu0 %v299
        %v1486 = vpop.f32.mrf.mxu0
        %v1487 = vadd.f32 0.0, %v1486
        %v1488 = vpop.f32.mrf.mxu0
        %v1489 = vadd.f32 0.0, %v1488
        %1490 = vmatprep.mubr.f32.mxu0 %v311
        %1491 = vmatmul.mubr.f32.gmra.mxu0 %v310
        %v1492 = vpop.f32.mrf.mxu0
        %v1493 = vadd.f32 0.0, %v1492
        %v1494 = vpop.f32.mrf.mxu0
        %v1495 = vadd.f32 0.0, %v1494
        %1496 = vmatprep.mubr.f32.mxu0 %v322
        %1497 = vmatmul.mubr.f32.gmra.mxu0 %v321
        %v1498 = vpop.f32.mrf.mxu0
        %v1499 = vadd.f32 0.0, %v1498
        %v1500 = vpop.f32.mrf.mxu0
        %v1501 = vadd.f32 0.0, %v1500
        %1502 = vmatprep.mubr.f32.mxu0 %v333
        %1503 = vmatmul.mubr.f32.gmra.mxu0 %v332
        %v1504 = vpop.f32.mrf.mxu0
        %v1505 = vadd.f32 0.0, %v1504
        %v1506 = vpop.f32.mrf.mxu0
        %v1507 = vadd.f32 0.0, %v1506
        %1508 = vmatprep.mubr.f32.mxu0 %v344
        %1509 = vmatmul.mubr.f32.gmra.mxu0 %v343
        %v1510 = vpop.f32.mrf.mxu0
        %v1511 = vadd.f32 0.0, %v1510
        %v1512 = vpop.f32.mrf.mxu0
        %v1513 = vadd.f32 0.0, %v1512
        %1514 = vmatprep.mubr.f32.mxu0 %v355
        %1515 = vmatmul.mubr.f32.gmra.mxu0 %v354
        %v1516 = vpop.f32.mrf.mxu0
        %v1517 = vadd.f32 0.0, %v1516
        %v1518 = vpop.f32.mrf.mxu0
        %v1519 = vadd.f32 0.0, %v1518
        %1520 = vmatprep.mubr.f32.mxu0 %v366
        %1521 = vmatmul.mubr.f32.gmra.mxu0 %v365
        %v1522 = vpop.f32.mrf.mxu0
        %v1523 = vadd.f32 0.0, %v1522
        %v1524 = vpop.f32.mrf.mxu0
        %v1525 = vadd.f32 0.0, %v1524
        %1526 = vmatprep.mubr.f32.mxu0 %v377
        %1527 = vmatmul.mubr.f32.gmra.mxu0 %v376
        %v1528 = vpop.f32.mrf.mxu0
        %v1529 = vadd.f32 0.0, %v1528
        %v1530 = vpop.f32.mrf.mxu0
        %v1531 = vadd.f32 0.0, %v1530
        %1532 = vmatprep.mubr.f32.mxu0 %v388
        %1533 = vmatmul.mubr.f32.gmra.mxu0 %v387
        %v1534 = vpop.f32.mrf.mxu0
        %v1535 = vadd.f32 0.0, %v1534
        %v1536 = vpop.f32.mrf.mxu0
        %v1537 = vadd.f32 0.0, %v1536
        %1538 = vmatprep.mubr.f32.mxu0 %v399
        %1539 = vmatmul.mubr.f32.gmra.mxu0 %v398
        %v1540 = vpop.f32.mrf.mxu0
        %v1541 = vadd.f32 0.0, %v1540
        %v1542 = vpop.f32.mrf.mxu0
        %v1543 = vadd.f32 0.0, %v1542
        %1544 = vmatprep.mubr.f32.mxu0 %v410
        %1545 = vmatmul.mubr.f32.gmra.mxu0 %v409
        %v1546 = vpop.f32.mrf.mxu0
        %v1547 = vadd.f32 0.0, %v1546
        %v1548 = vpop.f32.mrf.mxu0
        %v1549 = vadd.f32 0.0, %v1548
        %1550 = vmatprep.mubr.f32.mxu0 %v421
        %1551 = vmatmul.mubr.f32.gmra.mxu0 %v420
        %v1552 = vpop.f32.mrf.mxu0
        %v1553 = vadd.f32 0.0, %v1552
        %v1554 = vpop.f32.mrf.mxu0
        %v1555 = vadd.f32 0.0, %v1554
        %1556 = vmatprep.mubr.f32.mxu0 %v432
        %1557 = vmatmul.mubr.f32.gmra.mxu0 %v431
        %v1558 = vpop.f32.mrf.mxu0
        %v1559 = vadd.f32 0.0, %v1558
        %v1560 = vpop.f32.mrf.mxu0
        %v1561 = vadd.f32 0.0, %v1560
        %1562 = vmatprep.mubr.f32.mxu0 %v443
        %1563 = vmatmul.mubr.f32.gmra.mxu0 %v442
        %v1564 = vpop.f32.mrf.mxu0
        %v1565 = vadd.f32 0.0, %v1564
        %v1566 = vpop.f32.mrf.mxu0
        %v1567 = vadd.f32 0.0, %v1566
        %1568 = vmatprep.mubr.f32.mxu0 %v454
        %1569 = vmatmul.mubr.f32.gmra.mxu0 %v453
        %v1570 = vpop.f32.mrf.mxu0
        %v1571 = vadd.f32 0.0, %v1570
        %v1572 = vpop.f32.mrf.mxu0
        %v1573 = vadd.f32 0.0, %v1572
        %1574 = vmatprep.mubr.f32.mxu0 %v465
        %1575 = vmatmul.mubr.f32.gmra.mxu0 %v464
        %v1576 = vpop.f32.mrf.mxu0
        %v1577 = vadd.f32 0.0, %v1576
        %v1578 = vpop.f32.mrf.mxu0
        %v1579 = vadd.f32 0.0, %v1578
        %1580 = vmatprep.mubr.f32.mxu0 %v476
        %1581 = vmatmul.mubr.f32.gmra.mxu0 %v475
        %v1582 = vpop.f32.mrf.mxu0
        %v1583 = vadd.f32 0.0, %v1582
        %v1584 = vpop.f32.mrf.mxu0
        %v1585 = vadd.f32 0.0, %v1584
        %1586 = vmatprep.mubr.f32.mxu0 %v487
        %1587 = vmatmul.mubr.f32.gmra.mxu0 %v486
        %v1588 = vpop.f32.mrf.mxu0
        %v1589 = vadd.f32 0.0, %v1588
        %v1590 = vpop.f32.mrf.mxu0
        %v1591 = vadd.f32 0.0, %v1590
        %1592 = vmatprep.mubr.f32.mxu0 %v498
        %1593 = vmatmul.mubr.f32.gmra.mxu0 %v497
        %v1594 = vpop.f32.mrf.mxu0
        %v1595 = vadd.f32 0.0, %v1594
        %v1596 = vpop.f32.mrf.mxu0
        %v1597 = vadd.f32 0.0, %v1596
        %1598 = vmatprep.mubr.f32.mxu0 %v509
        %1599 = vmatmul.mubr.f32.gmra.mxu0 %v508
        %v1600 = vpop.f32.mrf.mxu0
        %v1601 = vadd.f32 0.0, %v1600
        %v1602 = vpop.f32.mrf.mxu0
        %v1603 = vadd.f32 0.0, %v1602
        %1604 = vmatprep.mubr.f32.mxu0 %v520
        %1605 = vmatmul.mubr.f32.gmra.mxu0 %v519
        %v1606 = vpop.f32.mrf.mxu0
        %v1607 = vadd.f32 0.0, %v1606
        %v1608 = vpop.f32.mrf.mxu0
        %v1609 = vadd.f32 0.0, %v1608
        %1610 = vmatprep.mubr.f32.mxu0 %v531
        %1611 = vmatmul.mubr.f32.gmra.mxu0 %v530
        %v1612 = vpop.f32.mrf.mxu0
        %v1613 = vadd.f32 0.0, %v1612
        %v1614 = vpop.f32.mrf.mxu0
        %v1615 = vadd.f32 0.0, %v1614
        %1616 = vmatprep.mubr.f32.mxu0 %v542
        %1617 = vmatmul.mubr.f32.gmra.mxu0 %v541
        %v1618 = vpop.f32.mrf.mxu0
        %v1619 = vadd.f32 0.0, %v1618
        %v1620 = vpop.f32.mrf.mxu0
        %v1621 = vadd.f32 0.0, %v1620
        %1622 = vmatprep.mubr.f32.mxu0 %v553
        %1623 = vmatmul.mubr.f32.gmra.mxu0 %v552
        %v1624 = vpop.f32.mrf.mxu0
        %v1625 = vadd.f32 0.0, %v1624
        %v1626 = vpop.f32.mrf.mxu0
        %v1627 = vadd.f32 0.0, %v1626
        %1628 = vmatprep.mubr.f32.mxu0 %v564
        %1629 = vmatmul.mubr.f32.gmra.mxu0 %v563
        %v1630 = vpop.f32.mrf.mxu0
        %v1631 = vadd.f32 0.0, %v1630
        %v1632 = vpop.f32.mrf.mxu0
        %v1633 = vadd.f32 0.0, %v1632
        %1634 = vmatprep.mubr.f32.mxu0 %v575
        %1635 = vmatmul.mubr.f32.gmra.mxu0 %v574
        %v1636 = vpop.f32.mrf.mxu0
        %v1637 = vadd.f32 0.0, %v1636
        %v1638 = vpop.f32.mrf.mxu0
        %v1639 = vadd.f32 0.0, %v1638
        %1640 = vmatprep.mubr.f32.mxu0 %v586
        %1641 = vmatmul.mubr.f32.gmra.mxu0 %v585
        %v1642 = vpop.f32.mrf.mxu0
        %v1643 = vadd.f32 0.0, %v1642
        %v1644 = vpop.f32.mrf.mxu0
        %v1645 = vadd.f32 0.0, %v1644
        %1646 = vmatprep.mubr.f32.mxu0 %v597
        %1647 = vmatmul.mubr.f32.gmra.mxu0 %v596
        %v1648 = vpop.f32.mrf.mxu0
        %v1649 = vadd.f32 0.0, %v1648
        %v1650 = vpop.f32.mrf.mxu0
        %v1651 = vadd.f32 0.0, %v1650
        %1652 = vmatprep.mubr.f32.mxu0 %v608
        %1653 = vmatmul.mubr.f32.gmra.mxu0 %v607
        %v1654 = vpop.f32.mrf.mxu0
        %v1655 = vadd.f32 0.0, %v1654
        %v1656 = vpop.f32.mrf.mxu0
        %v1657 = vadd.f32 0.0, %v1656
        %1658 = vmatprep.mubr.f32.mxu0 %v619
        %1659 = vmatmul.mubr.f32.gmra.mxu0 %v618
        %v1660 = vpop.f32.mrf.mxu0
        %v1661 = vadd.f32 0.0, %v1660
        %v1662 = vpop.f32.mrf.mxu0
        %v1663 = vadd.f32 0.0, %v1662
        %1664 = vmatprep.mubr.f32.mxu0 %v630
        %1665 = vmatmul.mubr.f32.gmra.mxu0 %v629
        %v1666 = vpop.f32.mrf.mxu0
        %v1667 = vadd.f32 0.0, %v1666
        %v1668 = vpop.f32.mrf.mxu0
        %v1669 = vadd.f32 0.0, %v1668
        %1670 = vmatprep.mubr.f32.mxu0 %v641
        %1671 = vmatmul.mubr.f32.gmra.mxu0 %v640
        %v1672 = vpop.f32.mrf.mxu0
        %v1673 = vadd.f32 0.0, %v1672
        %v1674 = vpop.f32.mrf.mxu0
        %v1675 = vadd.f32 0.0, %v1674
        %1676 = vmatprep.mubr.f32.mxu0 %v652
        %1677 = vmatmul.mubr.f32.gmra.mxu0 %v651
        %v1678 = vpop.f32.mrf.mxu0
        %v1679 = vadd.f32 0.0, %v1678
        %v1680 = vpop.f32.mrf.mxu0
        %v1681 = vadd.f32 0.0, %v1680
        %1682 = vmatprep.mubr.f32.mxu0 %v663
        %1683 = vmatmul.mubr.f32.gmra.mxu0 %v662
        %v1684 = vpop.f32.mrf.mxu0
        %v1685 = vadd.f32 0.0, %v1684
        %v1686 = vpop.f32.mrf.mxu0
        %v1687 = vadd.f32 0.0, %v1686
        %1688 = vmatprep.mubr.f32.mxu0 %v674
        %1689 = vmatmul.mubr.f32.gmra.mxu0 %v673
        %v1690 = vpop.f32.mrf.mxu0
        %v1691 = vadd.f32 0.0, %v1690
        %v1692 = vpop.f32.mrf.mxu0
        %v1693 = vadd.f32 0.0, %v1692
        %1694 = vmatprep.mubr.f32.mxu0 %v685
        %1695 = vmatmul.mubr.f32.gmra.mxu0 %v684
        %v1696 = vpop.f32.mrf.mxu0
        %v1697 = vadd.f32 0.0, %v1696
        %v1698 = vpop.f32.mrf.mxu0
        %v1699 = vadd.f32 0.0, %v1698
        %1700 = vmatprep.mubr.f32.mxu0 %v696
        %1701 = vmatmul.mubr.f32.gmra.mxu0 %v695
        %v1702 = vpop.f32.mrf.mxu0
        %v1703 = vadd.f32 0.0, %v1702
        %v1704 = vpop.f32.mrf.mxu0
        %v1705 = vadd.f32 0.0, %v1704
        %1706 = vmatprep.mubr.f32.mxu0 %v707
        %1707 = vmatmul.mubr.f32.gmra.mxu0 %v706
        %v1708 = vpop.f32.mrf.mxu0
        %v1709 = vadd.f32 0.0, %v1708
        %v1710 = vpop.f32.mrf.mxu0
        %v1711 = vadd.f32 0.0, %v1710
        %1712 = vmatprep.mubr.f32.mxu0 %v718
        %1713 = vmatmul.mubr.f32.gmra.mxu0 %v717
        %v1714 = vpop.f32.mrf.mxu0
        %v1715 = vadd.f32 0.0, %v1714
        %v1716 = vpop.f32.mrf.mxu0
        %v1717 = vadd.f32 0.0, %v1716
        %1718 = vmatprep.mubr.f32.mxu0 %v729
        %1719 = vmatmul.mubr.f32.gmra.mxu0 %v728
        %v1720 = vpop.f32.mrf.mxu0
        %v1721 = vadd.f32 0.0, %v1720
        %v1722 = vpop.f32.mrf.mxu0
        %v1723 = vadd.f32 0.0, %v1722
        %1724 = vmatprep.mubr.f32.mxu0 %v740
        %1725 = vmatmul.mubr.f32.gmra.mxu0 %v739
        %v1726 = vpop.f32.mrf.mxu0
        %v1727 = vadd.f32 0.0, %v1726
        %v1728 = vpop.f32.mrf.mxu0
        %v1729 = vadd.f32 0.0, %v1728
        %1730 = vmatprep.mubr.f32.mxu0 %v751
        %1731 = vmatmul.mubr.f32.gmra.mxu0 %v750
        %v1732 = vpop.f32.mrf.mxu0
        %v1733 = vadd.f32 0.0, %v1732
        %v1734 = vpop.f32.mrf.mxu0
        %v1735 = vadd.f32 0.0, %v1734
        %1736 = vmatprep.mubr.f32.mxu0 %v762
        %1737 = vmatmul.mubr.f32.gmra.mxu0 %v761
        %v1738 = vpop.f32.mrf.mxu0
        %v1739 = vadd.f32 0.0, %v1738
        %v1740 = vpop.f32.mrf.mxu0
        %v1741 = vadd.f32 0.0, %v1740
        %1742 = vmatprep.mubr.f32.mxu0 %v773
        %1743 = vmatmul.mubr.f32.gmra.mxu0 %v772
        %v1744 = vpop.f32.mrf.mxu0
        %v1745 = vadd.f32 0.0, %v1744
        %v1746 = vpop.f32.mrf.mxu0
        %v1747 = vadd.f32 0.0, %v1746
        %1748 = vmatprep.mubr.f32.mxu0 %v784
        %1749 = vmatmul.mubr.f32.gmra.mxu0 %v783
        %v1750 = vpop.f32.mrf.mxu0
        %v1751 = vadd.f32 0.0, %v1750
        %v1752 = vpop.f32.mrf.mxu0
        %v1753 = vadd.f32 0.0, %v1752
        %1754 = vmatprep.mubr.f32.mxu0 %v795
        %1755 = vmatmul.mubr.f32.gmra.mxu0 %v794
        %v1756 = vpop.f32.mrf.mxu0
        %v1757 = vadd.f32 0.0, %v1756
        %v1758 = vpop.f32.mrf.mxu0
        %v1759 = vadd.f32 0.0, %v1758
        %1760 = vmatprep.mubr.f32.mxu0 %v806
        %1761 = vmatmul.mubr.f32.gmra.mxu0 %v805
        %v1762 = vpop.f32.mrf.mxu0
        %v1763 = vadd.f32 0.0, %v1762
        %v1764 = vpop.f32.mrf.mxu0
        %v1765 = vadd.f32 0.0, %v1764
        %1766 = vmatprep.mubr.f32.mxu0 %v817
        %1767 = vmatmul.mubr.f32.gmra.mxu0 %v816
        %v1768 = vpop.f32.mrf.mxu0
        %v1769 = vadd.f32 0.0, %v1768
        %v1770 = vpop.f32.mrf.mxu0
        %v1771 = vadd.f32 0.0, %v1770
        %1772 = vmatprep.mubr.f32.mxu0 %v828
        %1773 = vmatmul.mubr.f32.gmra.mxu0 %v827
        %v1774 = vpop.f32.mrf.mxu0
        %v1775 = vadd.f32 0.0, %v1774
        %v1776 = vpop.f32.mrf.mxu0
        %v1777 = vadd.f32 0.0, %v1776
        %1778 = vmatprep.mubr.f32.mxu0 %v839
        %1779 = vmatmul.mubr.f32.gmra.mxu0 %v838
        %v1780 = vpop.f32.mrf.mxu0
        %v1781 = vadd.f32 0.0, %v1780
        %v1782 = vpop.f32.mrf.mxu0
        %v1783 = vadd.f32 0.0, %v1782
        %1784 = vdwg.mxu0
        %1785 = vmatprep.subr.mxu0 %v944
        %1786 = vmatpush1.msra.mxu0 %v943
        %1787 = vmatprep.subr.mxu0 %v942
        %1788 = vmatpush1.msra.mxu0 %v941
        %1789 = vmatprep.subr.mxu0 %v940
        %1790 = vmatpush1.msra.mxu0 %v939
        %1791 = vmatprep.subr.mxu0 %v938
        %1792 = vmatpush1.msra.mxu0 %v937
        %1793 = vmatprep.subr.mxu0 %v936
        %1794 = vmatpush1.msra.mxu0 %v935
        %1795 = vmatprep.subr.mxu0 %v934
        %1796 = vmatpush1.msra.mxu0 %v933
        %1797 = vmatprep.subr.mxu0 %v932
        %1798 = vmatpush1.msra.mxu0 %v931
        %1799 = vmatprep.subr.mxu0 %v930
        %1800 = vmatpush1.msra.mxu0 %v929
        %1801 = vmatprep.subr.mxu0 %v928
        %1802 = vmatpush1.msra.mxu0 %v927
        %1803 = vmatprep.subr.mxu0 %v926
        %1804 = vmatpush1.msra.mxu0 %v925
        %1805 = vmatprep.subr.mxu0 %v924
        %1806 = vmatpush1.msra.mxu0 %v923
        %1807 = vmatprep.subr.mxu0 %v922
        %1808 = vmatpush1.msra.mxu0 %v921
        %1809 = vmatprep.subr.mxu0 %v920
        %1810 = vmatpush1.msra.mxu0 %v919
        %1811 = vmatprep.subr.mxu0 %v918
        %1812 = vmatpush1.msra.mxu0 %v917
        %1813 = vmatprep.subr.mxu0 %v916
        %1814 = vmatpush1.msra.mxu0 %v915
        %1815 = vmatprep.subr.mxu0 %v914
        %1816 = vmatpush1.msra.mxu0 %v913
        %1817 = vmatprep.subr.mxu0 %v976
        %1818 = vmatpush2.msra.mxu0 %v975
        %1819 = vmatprep.subr.mxu0 %v974
        %1820 = vmatpush2.msra.mxu0 %v973
        %1821 = vmatprep.subr.mxu0 %v972
        %1822 = vmatpush2.msra.mxu0 %v971
        %1823 = vmatprep.subr.mxu0 %v970
        %1824 = vmatpush2.msra.mxu0 %v969
        %1825 = vmatprep.subr.mxu0 %v968
        %1826 = vmatpush2.msra.mxu0 %v967
        %1827 = vmatprep.subr.mxu0 %v966
        %1828 = vmatpush2.msra.mxu0 %v965
        %1829 = vmatprep.subr.mxu0 %v964
        %1830 = vmatpush2.msra.mxu0 %v963
        %1831 = vmatprep.subr.mxu0 %v962
        %1832 = vmatpush2.msra.mxu0 %v961
        %1833 = vmatprep.subr.mxu0 %v960
        %1834 = vmatpush2.msra.mxu0 %v959
        %1835 = vmatprep.subr.mxu0 %v958
        %1836 = vmatpush2.msra.mxu0 %v957
        %1837 = vmatprep.subr.mxu0 %v956
        %1838 = vmatpush2.msra.mxu0 %v955
        %1839 = vmatprep.subr.mxu0 %v954
        %1840 = vmatpush2.msra.mxu0 %v953
        %1841 = vmatprep.subr.mxu0 %v952
        %1842 = vmatpush2.msra.mxu0 %v951
        %1843 = vmatprep.subr.mxu0 %v950
        %1844 = vmatpush2.msra.mxu0 %v949
        %1845 = vmatprep.subr.mxu0 %v948
        %1846 = vmatpush2.msra.mxu0 %v947
        %1847 = vmatprep.subr.mxu0 %v946
        %1848 = vmatpush2.msra.mxu0 %v945
        %1849 = vmatprep.mubr.f32.mxu0 %v214
        %1850 = vmatmul.mubr.f32.gmra.mxu0 %v213
        %v1851 = vpop.f32.mrf.mxu0
        %v1852 = vadd.f32 %v1439, %v1851
        %v1853 = vpop.f32.mrf.mxu0
        %v1854 = vadd.f32 %v1441, %v1853
        %1855 = vmatprep.mubr.f32.mxu0 %v225
        %1856 = vmatmul.mubr.f32.gmra.mxu0 %v224
        %v1857 = vpop.f32.mrf.mxu0
        %v1858 = vadd.f32 %v1445, %v1857
        %v1859 = vpop.f32.mrf.mxu0
        %v1860 = vadd.f32 %v1447, %v1859
        %1861 = vmatprep.mubr.f32.mxu0 %v236
        %1862 = vmatmul.mubr.f32.gmra.mxu0 %v235
        %v1863 = vpop.f32.mrf.mxu0
        %v1864 = vadd.f32 %v1451, %v1863
        %v1865 = vpop.f32.mrf.mxu0
        %v1866 = vadd.f32 %v1453, %v1865
        %1867 = vmatprep.mubr.f32.mxu0 %v247
        %1868 = vmatmul.mubr.f32.gmra.mxu0 %v246
        %v1869 = vpop.f32.mrf.mxu0
        %v1870 = vadd.f32 %v1457, %v1869
        %v1871 = vpop.f32.mrf.mxu0
        %v1872 = vadd.f32 %v1459, %v1871
        %1873 = vmatprep.mubr.f32.mxu0 %v258
        %1874 = vmatmul.mubr.f32.gmra.mxu0 %v257
        %v1875 = vpop.f32.mrf.mxu0
        %v1876 = vadd.f32 %v1463, %v1875
        %v1877 = vpop.f32.mrf.mxu0
        %v1878 = vadd.f32 %v1465, %v1877
        %1879 = vmatprep.mubr.f32.mxu0 %v269
        %1880 = vmatmul.mubr.f32.gmra.mxu0 %v268
        %v1881 = vpop.f32.mrf.mxu0
        %v1882 = vadd.f32 %v1469, %v1881
        %v1883 = vpop.f32.mrf.mxu0
        %v1884 = vadd.f32 %v1471, %v1883
        %1885 = vmatprep.mubr.f32.mxu0 %v280
        %1886 = vmatmul.mubr.f32.gmra.mxu0 %v279
        %v1887 = vpop.f32.mrf.mxu0
        %v1888 = vadd.f32 %v1475, %v1887
        %v1889 = vpop.f32.mrf.mxu0
        %v1890 = vadd.f32 %v1477, %v1889
        %1891 = vmatprep.mubr.f32.mxu0 %v291
        %1892 = vmatmul.mubr.f32.gmra.mxu0 %v290
        %v1893 = vpop.f32.mrf.mxu0
        %v1894 = vadd.f32 %v1481, %v1893
        %v1895 = vpop.f32.mrf.mxu0
        %v1896 = vadd.f32 %v1483, %v1895
        %1897 = vmatprep.mubr.f32.mxu0 %v302
        %1898 = vmatmul.mubr.f32.gmra.mxu0 %v301
        %v1899 = vpop.f32.mrf.mxu0
        %v1900 = vadd.f32 %v1487, %v1899
        %v1901 = vpop.f32.mrf.mxu0
        %v1902 = vadd.f32 %v1489, %v1901
        %1903 = vmatprep.mubr.f32.mxu0 %v313
        %1904 = vmatmul.mubr.f32.gmra.mxu0 %v312
        %v1905 = vpop.f32.mrf.mxu0
        %v1906 = vadd.f32 %v1493, %v1905
        %v1907 = vpop.f32.mrf.mxu0
        %v1908 = vadd.f32 %v1495, %v1907
        %1909 = vmatprep.mubr.f32.mxu0 %v324
        %1910 = vmatmul.mubr.f32.gmra.mxu0 %v323
        %v1911 = vpop.f32.mrf.mxu0
        %v1912 = vadd.f32 %v1499, %v1911
        %v1913 = vpop.f32.mrf.mxu0
        %v1914 = vadd.f32 %v1501, %v1913
        %1915 = vmatprep.mubr.f32.mxu0 %v335
        %1916 = vmatmul.mubr.f32.gmra.mxu0 %v334
        %v1917 = vpop.f32.mrf.mxu0
        %v1918 = vadd.f32 %v1505, %v1917
        %v1919 = vpop.f32.mrf.mxu0
        %v1920 = vadd.f32 %v1507, %v1919
        %1921 = vmatprep.mubr.f32.mxu0 %v346
        %1922 = vmatmul.mubr.f32.gmra.mxu0 %v345
        %v1923 = vpop.f32.mrf.mxu0
        %v1924 = vadd.f32 %v1511, %v1923
        %v1925 = vpop.f32.mrf.mxu0
        %v1926 = vadd.f32 %v1513, %v1925
        %1927 = vmatprep.mubr.f32.mxu0 %v357
        %1928 = vmatmul.mubr.f32.gmra.mxu0 %v356
        %v1929 = vpop.f32.mrf.mxu0
        %v1930 = vadd.f32 %v1517, %v1929
        %v1931 = vpop.f32.mrf.mxu0
        %v1932 = vadd.f32 %v1519, %v1931
        %1933 = vmatprep.mubr.f32.mxu0 %v368
        %1934 = vmatmul.mubr.f32.gmra.mxu0 %v367
        %v1935 = vpop.f32.mrf.mxu0
        %v1936 = vadd.f32 %v1523, %v1935
        %v1937 = vpop.f32.mrf.mxu0
        %v1938 = vadd.f32 %v1525, %v1937
        %1939 = vmatprep.mubr.f32.mxu0 %v379
        %1940 = vmatmul.mubr.f32.gmra.mxu0 %v378
        %v1941 = vpop.f32.mrf.mxu0
        %v1942 = vadd.f32 %v1529, %v1941
        %v1943 = vpop.f32.mrf.mxu0
        %v1944 = vadd.f32 %v1531, %v1943
        %1945 = vmatprep.mubr.f32.mxu0 %v390
        %1946 = vmatmul.mubr.f32.gmra.mxu0 %v389
        %v1947 = vpop.f32.mrf.mxu0
        %v1948 = vadd.f32 %v1535, %v1947
        %v1949 = vpop.f32.mrf.mxu0
        %v1950 = vadd.f32 %v1537, %v1949
        %1951 = vmatprep.mubr.f32.mxu0 %v401
        %1952 = vmatmul.mubr.f32.gmra.mxu0 %v400
        %v1953 = vpop.f32.mrf.mxu0
        %v1954 = vadd.f32 %v1541, %v1953
        %v1955 = vpop.f32.mrf.mxu0
        %v1956 = vadd.f32 %v1543, %v1955
        %1957 = vmatprep.mubr.f32.mxu0 %v412
        %1958 = vmatmul.mubr.f32.gmra.mxu0 %v411
        %v1959 = vpop.f32.mrf.mxu0
        %v1960 = vadd.f32 %v1547, %v1959
        %v1961 = vpop.f32.mrf.mxu0
        %v1962 = vadd.f32 %v1549, %v1961
        %1963 = vmatprep.mubr.f32.mxu0 %v423
        %1964 = vmatmul.mubr.f32.gmra.mxu0 %v422
        %v1965 = vpop.f32.mrf.mxu0
        %v1966 = vadd.f32 %v1553, %v1965
        %v1967 = vpop.f32.mrf.mxu0
        %v1968 = vadd.f32 %v1555, %v1967
        %1969 = vmatprep.mubr.f32.mxu0 %v434
        %1970 = vmatmul.mubr.f32.gmra.mxu0 %v433
        %v1971 = vpop.f32.mrf.mxu0
        %v1972 = vadd.f32 %v1559, %v1971
        %v1973 = vpop.f32.mrf.mxu0
        %v1974 = vadd.f32 %v1561, %v1973
        %1975 = vmatprep.mubr.f32.mxu0 %v445
        %1976 = vmatmul.mubr.f32.gmra.mxu0 %v444
        %v1977 = vpop.f32.mrf.mxu0
        %v1978 = vadd.f32 %v1565, %v1977
        %v1979 = vpop.f32.mrf.mxu0
        %v1980 = vadd.f32 %v1567, %v1979
        %1981 = vmatprep.mubr.f32.mxu0 %v456
        %1982 = vmatmul.mubr.f32.gmra.mxu0 %v455
        %v1983 = vpop.f32.mrf.mxu0
        %v1984 = vadd.f32 %v1571, %v1983
        %v1985 = vpop.f32.mrf.mxu0
        %v1986 = vadd.f32 %v1573, %v1985
        %1987 = vmatprep.mubr.f32.mxu0 %v467
        %1988 = vmatmul.mubr.f32.gmra.mxu0 %v466
        %v1989 = vpop.f32.mrf.mxu0
        %v1990 = vadd.f32 %v1577, %v1989
        %v1991 = vpop.f32.mrf.mxu0
        %v1992 = vadd.f32 %v1579, %v1991
        %1993 = vmatprep.mubr.f32.mxu0 %v478
        %1994 = vmatmul.mubr.f32.gmra.mxu0 %v477
        %v1995 = vpop.f32.mrf.mxu0
        %v1996 = vadd.f32 %v1583, %v1995
        %v1997 = vpop.f32.mrf.mxu0
        %v1998 = vadd.f32 %v1585, %v1997
        %1999 = vmatprep.mubr.f32.mxu0 %v489
        %2000 = vmatmul.mubr.f32.gmra.mxu0 %v488
        %v2001 = vpop.f32.mrf.mxu0
        %v2002 = vadd.f32 %v1589, %v2001
        %v2003 = vpop.f32.mrf.mxu0
        %v2004 = vadd.f32 %v1591, %v2003
        %2005 = vmatprep.mubr.f32.mxu0 %v500
        %2006 = vmatmul.mubr.f32.gmra.mxu0 %v499
        %v2007 = vpop.f32.mrf.mxu0
        %v2008 = vadd.f32 %v1595, %v2007
        %v2009 = vpop.f32.mrf.mxu0
        %v2010 = vadd.f32 %v1597, %v2009
        %2011 = vmatprep.mubr.f32.mxu0 %v511
        %2012 = vmatmul.mubr.f32.gmra.mxu0 %v510
        %v2013 = vpop.f32.mrf.mxu0
        %v2014 = vadd.f32 %v1601, %v2013
        %v2015 = vpop.f32.mrf.mxu0
        %v2016 = vadd.f32 %v1603, %v2015
        %2017 = vmatprep.mubr.f32.mxu0 %v522
        %2018 = vmatmul.mubr.f32.gmra.mxu0 %v521
        %v2019 = vpop.f32.mrf.mxu0
        %v2020 = vadd.f32 %v1607, %v2019
        %v2021 = vpop.f32.mrf.mxu0
        %v2022 = vadd.f32 %v1609, %v2021
        %2023 = vmatprep.mubr.f32.mxu0 %v533
        %2024 = vmatmul.mubr.f32.gmra.mxu0 %v532
        %v2025 = vpop.f32.mrf.mxu0
        %v2026 = vadd.f32 %v1613, %v2025
        %v2027 = vpop.f32.mrf.mxu0
        %v2028 = vadd.f32 %v1615, %v2027
        %2029 = vmatprep.mubr.f32.mxu0 %v544
        %2030 = vmatmul.mubr.f32.gmra.mxu0 %v543
        %v2031 = vpop.f32.mrf.mxu0
        %v2032 = vadd.f32 %v1619, %v2031
        %v2033 = vpop.f32.mrf.mxu0
        %v2034 = vadd.f32 %v1621, %v2033
        %2035 = vmatprep.mubr.f32.mxu0 %v555
        %2036 = vmatmul.mubr.f32.gmra.mxu0 %v554
        %v2037 = vpop.f32.mrf.mxu0
        %v2038 = vadd.f32 %v1625, %v2037
        %v2039 = vpop.f32.mrf.mxu0
        %v2040 = vadd.f32 %v1627, %v2039
        %2041 = vmatprep.mubr.f32.mxu0 %v566
        %2042 = vmatmul.mubr.f32.gmra.mxu0 %v565
        %v2043 = vpop.f32.mrf.mxu0
        %v2044 = vadd.f32 %v1631, %v2043
        %v2045 = vpop.f32.mrf.mxu0
        %v2046 = vadd.f32 %v1633, %v2045
        %2047 = vmatprep.mubr.f32.mxu0 %v577
        %2048 = vmatmul.mubr.f32.gmra.mxu0 %v576
        %v2049 = vpop.f32.mrf.mxu0
        %v2050 = vadd.f32 %v1637, %v2049
        %v2051 = vpop.f32.mrf.mxu0
        %v2052 = vadd.f32 %v1639, %v2051
        %2053 = vmatprep.mubr.f32.mxu0 %v588
        %2054 = vmatmul.mubr.f32.gmra.mxu0 %v587
        %v2055 = vpop.f32.mrf.mxu0
        %v2056 = vadd.f32 %v1643, %v2055
        %v2057 = vpop.f32.mrf.mxu0
        %v2058 = vadd.f32 %v1645, %v2057
        %2059 = vmatprep.mubr.f32.mxu0 %v599
        %2060 = vmatmul.mubr.f32.gmra.mxu0 %v598
        %v2061 = vpop.f32.mrf.mxu0
        %v2062 = vadd.f32 %v1649, %v2061
        %v2063 = vpop.f32.mrf.mxu0
        %v2064 = vadd.f32 %v1651, %v2063
        %2065 = vmatprep.mubr.f32.mxu0 %v610
        %2066 = vmatmul.mubr.f32.gmra.mxu0 %v609
        %v2067 = vpop.f32.mrf.mxu0
        %v2068 = vadd.f32 %v1655, %v2067
        %v2069 = vpop.f32.mrf.mxu0
        %v2070 = vadd.f32 %v1657, %v2069
        %2071 = vmatprep.mubr.f32.mxu0 %v621
        %2072 = vmatmul.mubr.f32.gmra.mxu0 %v620
        %v2073 = vpop.f32.mrf.mxu0
        %v2074 = vadd.f32 %v1661, %v2073
        %v2075 = vpop.f32.mrf.mxu0
        %v2076 = vadd.f32 %v1663, %v2075
        %2077 = vmatprep.mubr.f32.mxu0 %v632
        %2078 = vmatmul.mubr.f32.gmra.mxu0 %v631
        %v2079 = vpop.f32.mrf.mxu0
        %v2080 = vadd.f32 %v1667, %v2079
        %v2081 = vpop.f32.mrf.mxu0
        %v2082 = vadd.f32 %v1669, %v2081
        %2083 = vmatprep.mubr.f32.mxu0 %v643
        %2084 = vmatmul.mubr.f32.gmra.mxu0 %v642
        %v2085 = vpop.f32.mrf.mxu0
        %v2086 = vadd.f32 %v1673, %v2085
        %v2087 = vpop.f32.mrf.mxu0
        %v2088 = vadd.f32 %v1675, %v2087
        %2089 = vmatprep.mubr.f32.mxu0 %v654
        %2090 = vmatmul.mubr.f32.gmra.mxu0 %v653
        %v2091 = vpop.f32.mrf.mxu0
        %v2092 = vadd.f32 %v1679, %v2091
        %v2093 = vpop.f32.mrf.mxu0
        %v2094 = vadd.f32 %v1681, %v2093
        %2095 = vmatprep.mubr.f32.mxu0 %v665
        %2096 = vmatmul.mubr.f32.gmra.mxu0 %v664
        %v2097 = vpop.f32.mrf.mxu0
        %v2098 = vadd.f32 %v1685, %v2097
        %v2099 = vpop.f32.mrf.mxu0
        %v2100 = vadd.f32 %v1687, %v2099
        %2101 = vmatprep.mubr.f32.mxu0 %v676
        %2102 = vmatmul.mubr.f32.gmra.mxu0 %v675
        %v2103 = vpop.f32.mrf.mxu0
        %v2104 = vadd.f32 %v1691, %v2103
        %v2105 = vpop.f32.mrf.mxu0
        %v2106 = vadd.f32 %v1693, %v2105
        %2107 = vmatprep.mubr.f32.mxu0 %v687
        %2108 = vmatmul.mubr.f32.gmra.mxu0 %v686
        %v2109 = vpop.f32.mrf.mxu0
        %v2110 = vadd.f32 %v1697, %v2109
        %v2111 = vpop.f32.mrf.mxu0
        %v2112 = vadd.f32 %v1699, %v2111
        %2113 = vmatprep.mubr.f32.mxu0 %v698
        %2114 = vmatmul.mubr.f32.gmra.mxu0 %v697
        %v2115 = vpop.f32.mrf.mxu0
        %v2116 = vadd.f32 %v1703, %v2115
        %v2117 = vpop.f32.mrf.mxu0
        %v2118 = vadd.f32 %v1705, %v2117
        %2119 = vmatprep.mubr.f32.mxu0 %v709
        %2120 = vmatmul.mubr.f32.gmra.mxu0 %v708
        %v2121 = vpop.f32.mrf.mxu0
        %v2122 = vadd.f32 %v1709, %v2121
        %v2123 = vpop.f32.mrf.mxu0
        %v2124 = vadd.f32 %v1711, %v2123
        %2125 = vmatprep.mubr.f32.mxu0 %v720
        %2126 = vmatmul.mubr.f32.gmra.mxu0 %v719
        %v2127 = vpop.f32.mrf.mxu0
        %v2128 = vadd.f32 %v1715, %v2127
        %v2129 = vpop.f32.mrf.mxu0
        %v2130 = vadd.f32 %v1717, %v2129
        %2131 = vmatprep.mubr.f32.mxu0 %v731
        %2132 = vmatmul.mubr.f32.gmra.mxu0 %v730
        %v2133 = vpop.f32.mrf.mxu0
        %v2134 = vadd.f32 %v1721, %v2133
        %v2135 = vpop.f32.mrf.mxu0
        %v2136 = vadd.f32 %v1723, %v2135
        %2137 = vmatprep.mubr.f32.mxu0 %v742
        %2138 = vmatmul.mubr.f32.gmra.mxu0 %v741
        %v2139 = vpop.f32.mrf.mxu0
        %v2140 = vadd.f32 %v1727, %v2139
        %v2141 = vpop.f32.mrf.mxu0
        %v2142 = vadd.f32 %v1729, %v2141
        %2143 = vmatprep.mubr.f32.mxu0 %v753
        %2144 = vmatmul.mubr.f32.gmra.mxu0 %v752
        %v2145 = vpop.f32.mrf.mxu0
        %v2146 = vadd.f32 %v1733, %v2145
        %v2147 = vpop.f32.mrf.mxu0
        %v2148 = vadd.f32 %v1735, %v2147
        %2149 = vmatprep.mubr.f32.mxu0 %v764
        %2150 = vmatmul.mubr.f32.gmra.mxu0 %v763
        %v2151 = vpop.f32.mrf.mxu0
        %v2152 = vadd.f32 %v1739, %v2151
        %v2153 = vpop.f32.mrf.mxu0
        %v2154 = vadd.f32 %v1741, %v2153
        %2155 = vmatprep.mubr.f32.mxu0 %v775
        %2156 = vmatmul.mubr.f32.gmra.mxu0 %v774
        %v2157 = vpop.f32.mrf.mxu0
        %v2158 = vadd.f32 %v1745, %v2157
        %v2159 = vpop.f32.mrf.mxu0
        %v2160 = vadd.f32 %v1747, %v2159
        %2161 = vmatprep.mubr.f32.mxu0 %v786
        %2162 = vmatmul.mubr.f32.gmra.mxu0 %v785
        %v2163 = vpop.f32.mrf.mxu0
        %v2164 = vadd.f32 %v1751, %v2163
        %v2165 = vpop.f32.mrf.mxu0
        %v2166 = vadd.f32 %v1753, %v2165
        %2167 = vmatprep.mubr.f32.mxu0 %v797
        %2168 = vmatmul.mubr.f32.gmra.mxu0 %v796
        %v2169 = vpop.f32.mrf.mxu0
        %v2170 = vadd.f32 %v1757, %v2169
        %v2171 = vpop.f32.mrf.mxu0
        %v2172 = vadd.f32 %v1759, %v2171
        %2173 = vmatprep.mubr.f32.mxu0 %v808
        %2174 = vmatmul.mubr.f32.gmra.mxu0 %v807
        %v2175 = vpop.f32.mrf.mxu0
        %v2176 = vadd.f32 %v1763, %v2175
        %v2177 = vpop.f32.mrf.mxu0
        %v2178 = vadd.f32 %v1765, %v2177
        %2179 = vmatprep.mubr.f32.mxu0 %v819
        %2180 = vmatmul.mubr.f32.gmra.mxu0 %v818
        %v2181 = vpop.f32.mrf.mxu0
        %v2182 = vadd.f32 %v1769, %v2181
        %v2183 = vpop.f32.mrf.mxu0
        %v2184 = vadd.f32 %v1771, %v2183
        %2185 = vmatprep.mubr.f32.mxu0 %v830
        %2186 = vmatmul.mubr.f32.gmra.mxu0 %v829
        %v2187 = vpop.f32.mrf.mxu0
        %v2188 = vadd.f32 %v1775, %v2187
        %v2189 = vpop.f32.mrf.mxu0
        %v2190 = vadd.f32 %v1777, %v2189
        %2191 = vmatprep.mubr.f32.mxu0 %v841
        %2192 = vmatmul.mubr.f32.gmra.mxu0 %v840
        %v2193 = vpop.f32.mrf.mxu0
        %v2194 = vadd.f32 %v1781, %v2193
        %v2195 = vpop.f32.mrf.mxu0
        %v2196 = vadd.f32 %v1783, %v2195
        %2197 = vdwg.mxu0
        %2198 = vmatprep.subr.mxu0 %v1008
        %2199 = vmatpush1.msra.mxu0 %v1007
        %2200 = vmatprep.subr.mxu0 %v1006
        %2201 = vmatpush1.msra.mxu0 %v1005
        %2202 = vmatprep.subr.mxu0 %v1004
        %2203 = vmatpush1.msra.mxu0 %v1003
        %2204 = vmatprep.subr.mxu0 %v1002
        %2205 = vmatpush1.msra.mxu0 %v1001
        %2206 = vmatprep.subr.mxu0 %v1000
        %2207 = vmatpush1.msra.mxu0 %v999
        %2208 = vmatprep.subr.mxu0 %v998
        %2209 = vmatpush1.msra.mxu0 %v997
        %2210 = vmatprep.subr.mxu0 %v996
        %2211 = vmatpush1.msra.mxu0 %v995
        %2212 = vmatprep.subr.mxu0 %v994
        %2213 = vmatpush1.msra.mxu0 %v993
        %2214 = vmatprep.subr.mxu0 %v992
        %2215 = vmatpush1.msra.mxu0 %v991
        %2216 = vmatprep.subr.mxu0 %v990
        %2217 = vmatpush1.msra.mxu0 %v989
        %2218 = vmatprep.subr.mxu0 %v988
        %2219 = vmatpush1.msra.mxu0 %v987
        %2220 = vmatprep.subr.mxu0 %v986
        %2221 = vmatpush1.msra.mxu0 %v985
        %2222 = vmatprep.subr.mxu0 %v984
        %2223 = vmatpush1.msra.mxu0 %v983
        %2224 = vmatprep.subr.mxu0 %v982
        %2225 = vmatpush1.msra.mxu0 %v981
        %2226 = vmatprep.subr.mxu0 %v980
        %2227 = vmatpush1.msra.mxu0 %v979
        %2228 = vmatprep.subr.mxu0 %v978
        %2229 = vmatpush1.msra.mxu0 %v977
        %2230 = vmatprep.subr.mxu0 %v1040
        %2231 = vmatpush2.msra.mxu0 %v1039
        %2232 = vmatprep.subr.mxu0 %v1038
        %2233 = vmatpush2.msra.mxu0 %v1037
        %2234 = vmatprep.subr.mxu0 %v1036
        %2235 = vmatpush2.msra.mxu0 %v1035
        %2236 = vmatprep.subr.mxu0 %v1034
        %2237 = vmatpush2.msra.mxu0 %v1033
        %2238 = vmatprep.subr.mxu0 %v1032
        %2239 = vmatpush2.msra.mxu0 %v1031
        %2240 = vmatprep.subr.mxu0 %v1030
        %2241 = vmatpush2.msra.mxu0 %v1029
        %2242 = vmatprep.subr.mxu0 %v1028
        %2243 = vmatpush2.msra.mxu0 %v1027
        %2244 = vmatprep.subr.mxu0 %v1026
        %2245 = vmatpush2.msra.mxu0 %v1025
        %2246 = vmatprep.subr.mxu0 %v1024
        %2247 = vmatpush2.msra.mxu0 %v1023
        %2248 = vmatprep.subr.mxu0 %v1022
        %2249 = vmatpush2.msra.mxu0 %v1021
        %2250 = vmatprep.subr.mxu0 %v1020
        %2251 = vmatpush2.msra.mxu0 %v1019
        %2252 = vmatprep.subr.mxu0 %v1018
        %2253 = vmatpush2.msra.mxu0 %v1017
        %2254 = vmatprep.subr.mxu0 %v1016
        %2255 = vmatpush2.msra.mxu0 %v1015
        %2256 = vmatprep.subr.mxu0 %v1014
        %2257 = vmatpush2.msra.mxu0 %v1013
        %2258 = vmatprep.subr.mxu0 %v1012
        %2259 = vmatpush2.msra.mxu0 %v1011
        %2260 = vmatprep.subr.mxu0 %v1010
        %2261 = vmatpush2.msra.mxu0 %v1009
        %2262 = vmatprep.mubr.f32.mxu0 %v216
        %2263 = vmatmul.mubr.f32.gmra.mxu0 %v215
        %v2264 = vpop.f32.mrf.mxu0
        %v2265 = vadd.f32 %v1852, %v2264
        %v2266 = vpop.f32.mrf.mxu0
        %v2267 = vadd.f32 %v1854, %v2266
        %2268 = vmatprep.mubr.f32.mxu0 %v227
        %2269 = vmatmul.mubr.f32.gmra.mxu0 %v226
        %v2270 = vpop.f32.mrf.mxu0
        %v2271 = vadd.f32 %v1858, %v2270
        %v2272 = vpop.f32.mrf.mxu0
        %v2273 = vadd.f32 %v1860, %v2272
        %2274 = vmatprep.mubr.f32.mxu0 %v238
        %2275 = vmatmul.mubr.f32.gmra.mxu0 %v237
        %v2276 = vpop.f32.mrf.mxu0
        %v2277 = vadd.f32 %v1864, %v2276
        %v2278 = vpop.f32.mrf.mxu0
        %v2279 = vadd.f32 %v1866, %v2278
        %2280 = vmatprep.mubr.f32.mxu0 %v249
        %2281 = vmatmul.mubr.f32.gmra.mxu0 %v248
        %v2282 = vpop.f32.mrf.mxu0
        %v2283 = vadd.f32 %v1870, %v2282
        %v2284 = vpop.f32.mrf.mxu0
        %v2285 = vadd.f32 %v1872, %v2284
        %2286 = vmatprep.mubr.f32.mxu0 %v260
        %2287 = vmatmul.mubr.f32.gmra.mxu0 %v259
        %v2288 = vpop.f32.mrf.mxu0
        %v2289 = vadd.f32 %v1876, %v2288
        %v2290 = vpop.f32.mrf.mxu0
        %v2291 = vadd.f32 %v1878, %v2290
        %2292 = vmatprep.mubr.f32.mxu0 %v271
        %2293 = vmatmul.mubr.f32.gmra.mxu0 %v270
        %v2294 = vpop.f32.mrf.mxu0
        %v2295 = vadd.f32 %v1882, %v2294
        %v2296 = vpop.f32.mrf.mxu0
        %v2297 = vadd.f32 %v1884, %v2296
        %2298 = vmatprep.mubr.f32.mxu0 %v282
        %2299 = vmatmul.mubr.f32.gmra.mxu0 %v281
        %v2300 = vpop.f32.mrf.mxu0
        %v2301 = vadd.f32 %v1888, %v2300
        %v2302 = vpop.f32.mrf.mxu0
        %v2303 = vadd.f32 %v1890, %v2302
        %2304 = vmatprep.mubr.f32.mxu0 %v293
        %2305 = vmatmul.mubr.f32.gmra.mxu0 %v292
        %v2306 = vpop.f32.mrf.mxu0
        %v2307 = vadd.f32 %v1894, %v2306
        %v2308 = vpop.f32.mrf.mxu0
        %v2309 = vadd.f32 %v1896, %v2308
        %2310 = vmatprep.mubr.f32.mxu0 %v304
        %2311 = vmatmul.mubr.f32.gmra.mxu0 %v303
        %v2312 = vpop.f32.mrf.mxu0
        %v2313 = vadd.f32 %v1900, %v2312
        %v2314 = vpop.f32.mrf.mxu0
        %v2315 = vadd.f32 %v1902, %v2314
        %2316 = vmatprep.mubr.f32.mxu0 %v315
        %2317 = vmatmul.mubr.f32.gmra.mxu0 %v314
        %v2318 = vpop.f32.mrf.mxu0
        %v2319 = vadd.f32 %v1906, %v2318
        %v2320 = vpop.f32.mrf.mxu0
        %v2321 = vadd.f32 %v1908, %v2320
        %2322 = vmatprep.mubr.f32.mxu0 %v326
        %2323 = vmatmul.mubr.f32.gmra.mxu0 %v325
        %v2324 = vpop.f32.mrf.mxu0
        %v2325 = vadd.f32 %v1912, %v2324
        %v2326 = vpop.f32.mrf.mxu0
        %v2327 = vadd.f32 %v1914, %v2326
        %2328 = vmatprep.mubr.f32.mxu0 %v337
        %2329 = vmatmul.mubr.f32.gmra.mxu0 %v336
        %v2330 = vpop.f32.mrf.mxu0
        %v2331 = vadd.f32 %v1918, %v2330
        %v2332 = vpop.f32.mrf.mxu0
        %v2333 = vadd.f32 %v1920, %v2332
        %2334 = vmatprep.mubr.f32.mxu0 %v348
        %2335 = vmatmul.mubr.f32.gmra.mxu0 %v347
        %v2336 = vpop.f32.mrf.mxu0
        %v2337 = vadd.f32 %v1924, %v2336
        %v2338 = vpop.f32.mrf.mxu0
        %v2339 = vadd.f32 %v1926, %v2338
        %2340 = vmatprep.mubr.f32.mxu0 %v359
        %2341 = vmatmul.mubr.f32.gmra.mxu0 %v358
        %v2342 = vpop.f32.mrf.mxu0
        %v2343 = vadd.f32 %v1930, %v2342
        %v2344 = vpop.f32.mrf.mxu0
        %v2345 = vadd.f32 %v1932, %v2344
        %2346 = vmatprep.mubr.f32.mxu0 %v370
        %2347 = vmatmul.mubr.f32.gmra.mxu0 %v369
        %v2348 = vpop.f32.mrf.mxu0
        %v2349 = vadd.f32 %v1936, %v2348
        %v2350 = vpop.f32.mrf.mxu0
        %v2351 = vadd.f32 %v1938, %v2350
        %2352 = vmatprep.mubr.f32.mxu0 %v381
        %2353 = vmatmul.mubr.f32.gmra.mxu0 %v380
        %v2354 = vpop.f32.mrf.mxu0
        %v2355 = vadd.f32 %v1942, %v2354
        %v2356 = vpop.f32.mrf.mxu0
        %v2357 = vadd.f32 %v1944, %v2356
        %2358 = vmatprep.mubr.f32.mxu0 %v392
        %2359 = vmatmul.mubr.f32.gmra.mxu0 %v391
        %v2360 = vpop.f32.mrf.mxu0
        %v2361 = vadd.f32 %v1948, %v2360
        %v2362 = vpop.f32.mrf.mxu0
        %v2363 = vadd.f32 %v1950, %v2362
        %2364 = vmatprep.mubr.f32.mxu0 %v403
        %2365 = vmatmul.mubr.f32.gmra.mxu0 %v402
        %v2366 = vpop.f32.mrf.mxu0
        %v2367 = vadd.f32 %v1954, %v2366
        %v2368 = vpop.f32.mrf.mxu0
        %v2369 = vadd.f32 %v1956, %v2368
        %2370 = vmatprep.mubr.f32.mxu0 %v414
        %2371 = vmatmul.mubr.f32.gmra.mxu0 %v413
        %v2372 = vpop.f32.mrf.mxu0
        %v2373 = vadd.f32 %v1960, %v2372
        %v2374 = vpop.f32.mrf.mxu0
        %v2375 = vadd.f32 %v1962, %v2374
        %2376 = vmatprep.mubr.f32.mxu0 %v425
        %2377 = vmatmul.mubr.f32.gmra.mxu0 %v424
        %v2378 = vpop.f32.mrf.mxu0
        %v2379 = vadd.f32 %v1966, %v2378
        %v2380 = vpop.f32.mrf.mxu0
        %v2381 = vadd.f32 %v1968, %v2380
        %2382 = vmatprep.mubr.f32.mxu0 %v436
        %2383 = vmatmul.mubr.f32.gmra.mxu0 %v435
        %v2384 = vpop.f32.mrf.mxu0
        %v2385 = vadd.f32 %v1972, %v2384
        %v2386 = vpop.f32.mrf.mxu0
        %v2387 = vadd.f32 %v1974, %v2386
        %2388 = vmatprep.mubr.f32.mxu0 %v447
        %2389 = vmatmul.mubr.f32.gmra.mxu0 %v446
        %v2390 = vpop.f32.mrf.mxu0
        %v2391 = vadd.f32 %v1978, %v2390
        %v2392 = vpop.f32.mrf.mxu0
        %v2393 = vadd.f32 %v1980, %v2392
        %2394 = vmatprep.mubr.f32.mxu0 %v458
        %2395 = vmatmul.mubr.f32.gmra.mxu0 %v457
        %v2396 = vpop.f32.mrf.mxu0
        %v2397 = vadd.f32 %v1984, %v2396
        %v2398 = vpop.f32.mrf.mxu0
        %v2399 = vadd.f32 %v1986, %v2398
        %2400 = vmatprep.mubr.f32.mxu0 %v469
        %2401 = vmatmul.mubr.f32.gmra.mxu0 %v468
        %v2402 = vpop.f32.mrf.mxu0
        %v2403 = vadd.f32 %v1990, %v2402
        %v2404 = vpop.f32.mrf.mxu0
        %v2405 = vadd.f32 %v1992, %v2404
        %2406 = vmatprep.mubr.f32.mxu0 %v480
        %2407 = vmatmul.mubr.f32.gmra.mxu0 %v479
        %v2408 = vpop.f32.mrf.mxu0
        %v2409 = vadd.f32 %v1996, %v2408
        %v2410 = vpop.f32.mrf.mxu0
        %v2411 = vadd.f32 %v1998, %v2410
        %2412 = vmatprep.mubr.f32.mxu0 %v491
        %2413 = vmatmul.mubr.f32.gmra.mxu0 %v490
        %v2414 = vpop.f32.mrf.mxu0
        %v2415 = vadd.f32 %v2002, %v2414
        %v2416 = vpop.f32.mrf.mxu0
        %v2417 = vadd.f32 %v2004, %v2416
        %2418 = vmatprep.mubr.f32.mxu0 %v502
        %2419 = vmatmul.mubr.f32.gmra.mxu0 %v501
        %v2420 = vpop.f32.mrf.mxu0
        %v2421 = vadd.f32 %v2008, %v2420
        %v2422 = vpop.f32.mrf.mxu0
        %v2423 = vadd.f32 %v2010, %v2422
        %2424 = vmatprep.mubr.f32.mxu0 %v513
        %2425 = vmatmul.mubr.f32.gmra.mxu0 %v512
        %v2426 = vpop.f32.mrf.mxu0
        %v2427 = vadd.f32 %v2014, %v2426
        %v2428 = vpop.f32.mrf.mxu0
        %v2429 = vadd.f32 %v2016, %v2428
        %2430 = vmatprep.mubr.f32.mxu0 %v524
        %2431 = vmatmul.mubr.f32.gmra.mxu0 %v523
        %v2432 = vpop.f32.mrf.mxu0
        %v2433 = vadd.f32 %v2020, %v2432
        %v2434 = vpop.f32.mrf.mxu0
        %v2435 = vadd.f32 %v2022, %v2434
        %2436 = vmatprep.mubr.f32.mxu0 %v535
        %2437 = vmatmul.mubr.f32.gmra.mxu0 %v534
        %v2438 = vpop.f32.mrf.mxu0
        %v2439 = vadd.f32 %v2026, %v2438
        %v2440 = vpop.f32.mrf.mxu0
        %v2441 = vadd.f32 %v2028, %v2440
        %2442 = vmatprep.mubr.f32.mxu0 %v546
        %2443 = vmatmul.mubr.f32.gmra.mxu0 %v545
        %v2444 = vpop.f32.mrf.mxu0
        %v2445 = vadd.f32 %v2032, %v2444
        %v2446 = vpop.f32.mrf.mxu0
        %v2447 = vadd.f32 %v2034, %v2446
        %2448 = vmatprep.mubr.f32.mxu0 %v557
        %2449 = vmatmul.mubr.f32.gmra.mxu0 %v556
        %v2450 = vpop.f32.mrf.mxu0
        %v2451 = vadd.f32 %v2038, %v2450
        %v2452 = vpop.f32.mrf.mxu0
        %v2453 = vadd.f32 %v2040, %v2452
        %2454 = vmatprep.mubr.f32.mxu0 %v568
        %2455 = vmatmul.mubr.f32.gmra.mxu0 %v567
        %v2456 = vpop.f32.mrf.mxu0
        %v2457 = vadd.f32 %v2044, %v2456
        %v2458 = vpop.f32.mrf.mxu0
        %v2459 = vadd.f32 %v2046, %v2458
        %2460 = vmatprep.mubr.f32.mxu0 %v579
        %2461 = vmatmul.mubr.f32.gmra.mxu0 %v578
        %v2462 = vpop.f32.mrf.mxu0
        %v2463 = vadd.f32 %v2050, %v2462
        %v2464 = vpop.f32.mrf.mxu0
        %v2465 = vadd.f32 %v2052, %v2464
        %2466 = vmatprep.mubr.f32.mxu0 %v590
        %2467 = vmatmul.mubr.f32.gmra.mxu0 %v589
        %v2468 = vpop.f32.mrf.mxu0
        %v2469 = vadd.f32 %v2056, %v2468
        %v2470 = vpop.f32.mrf.mxu0
        %v2471 = vadd.f32 %v2058, %v2470
        %2472 = vmatprep.mubr.f32.mxu0 %v601
        %2473 = vmatmul.mubr.f32.gmra.mxu0 %v600
        %v2474 = vpop.f32.mrf.mxu0
        %v2475 = vadd.f32 %v2062, %v2474
        %v2476 = vpop.f32.mrf.mxu0
        %v2477 = vadd.f32 %v2064, %v2476
        %2478 = vmatprep.mubr.f32.mxu0 %v612
        %2479 = vmatmul.mubr.f32.gmra.mxu0 %v611
        %v2480 = vpop.f32.mrf.mxu0
        %v2481 = vadd.f32 %v2068, %v2480
        %v2482 = vpop.f32.mrf.mxu0
        %v2483 = vadd.f32 %v2070, %v2482
        %2484 = vmatprep.mubr.f32.mxu0 %v623
        %2485 = vmatmul.mubr.f32.gmra.mxu0 %v622
        %v2486 = vpop.f32.mrf.mxu0
        %v2487 = vadd.f32 %v2074, %v2486
        %v2488 = vpop.f32.mrf.mxu0
        %v2489 = vadd.f32 %v2076, %v2488
        %2490 = vmatprep.mubr.f32.mxu0 %v634
        %2491 = vmatmul.mubr.f32.gmra.mxu0 %v633
        %v2492 = vpop.f32.mrf.mxu0
        %v2493 = vadd.f32 %v2080, %v2492
        %v2494 = vpop.f32.mrf.mxu0
        %v2495 = vadd.f32 %v2082, %v2494
        %2496 = vmatprep.mubr.f32.mxu0 %v645
        %2497 = vmatmul.mubr.f32.gmra.mxu0 %v644
        %v2498 = vpop.f32.mrf.mxu0
        %v2499 = vadd.f32 %v2086, %v2498
        %v2500 = vpop.f32.mrf.mxu0
        %v2501 = vadd.f32 %v2088, %v2500
        %2502 = vmatprep.mubr.f32.mxu0 %v656
        %2503 = vmatmul.mubr.f32.gmra.mxu0 %v655
        %v2504 = vpop.f32.mrf.mxu0
        %v2505 = vadd.f32 %v2092, %v2504
        %v2506 = vpop.f32.mrf.mxu0
        %v2507 = vadd.f32 %v2094, %v2506
        %2508 = vmatprep.mubr.f32.mxu0 %v667
        %2509 = vmatmul.mubr.f32.gmra.mxu0 %v666
        %v2510 = vpop.f32.mrf.mxu0
        %v2511 = vadd.f32 %v2098, %v2510
        %v2512 = vpop.f32.mrf.mxu0
        %v2513 = vadd.f32 %v2100, %v2512
        %2514 = vmatprep.mubr.f32.mxu0 %v678
        %2515 = vmatmul.mubr.f32.gmra.mxu0 %v677
        %v2516 = vpop.f32.mrf.mxu0
        %v2517 = vadd.f32 %v2104, %v2516
        %v2518 = vpop.f32.mrf.mxu0
        %v2519 = vadd.f32 %v2106, %v2518
        %2520 = vmatprep.mubr.f32.mxu0 %v689
        %2521 = vmatmul.mubr.f32.gmra.mxu0 %v688
        %v2522 = vpop.f32.mrf.mxu0
        %v2523 = vadd.f32 %v2110, %v2522
        %v2524 = vpop.f32.mrf.mxu0
        %v2525 = vadd.f32 %v2112, %v2524
        %2526 = vmatprep.mubr.f32.mxu0 %v700
        %2527 = vmatmul.mubr.f32.gmra.mxu0 %v699
        %v2528 = vpop.f32.mrf.mxu0
        %v2529 = vadd.f32 %v2116, %v2528
        %v2530 = vpop.f32.mrf.mxu0
        %v2531 = vadd.f32 %v2118, %v2530
        %2532 = vmatprep.mubr.f32.mxu0 %v711
        %2533 = vmatmul.mubr.f32.gmra.mxu0 %v710
        %v2534 = vpop.f32.mrf.mxu0
        %v2535 = vadd.f32 %v2122, %v2534
        %v2536 = vpop.f32.mrf.mxu0
        %v2537 = vadd.f32 %v2124, %v2536
        %2538 = vmatprep.mubr.f32.mxu0 %v722
        %2539 = vmatmul.mubr.f32.gmra.mxu0 %v721
        %v2540 = vpop.f32.mrf.mxu0
        %v2541 = vadd.f32 %v2128, %v2540
        %v2542 = vpop.f32.mrf.mxu0
        %v2543 = vadd.f32 %v2130, %v2542
        %2544 = vmatprep.mubr.f32.mxu0 %v733
        %2545 = vmatmul.mubr.f32.gmra.mxu0 %v732
        %v2546 = vpop.f32.mrf.mxu0
        %v2547 = vadd.f32 %v2134, %v2546
        %v2548 = vpop.f32.mrf.mxu0
        %v2549 = vadd.f32 %v2136, %v2548
        %2550 = vmatprep.mubr.f32.mxu0 %v744
        %2551 = vmatmul.mubr.f32.gmra.mxu0 %v743
        %v2552 = vpop.f32.mrf.mxu0
        %v2553 = vadd.f32 %v2140, %v2552
        %v2554 = vpop.f32.mrf.mxu0
        %v2555 = vadd.f32 %v2142, %v2554
        %2556 = vmatprep.mubr.f32.mxu0 %v755
        %2557 = vmatmul.mubr.f32.gmra.mxu0 %v754
        %v2558 = vpop.f32.mrf.mxu0
        %v2559 = vadd.f32 %v2146, %v2558
        %v2560 = vpop.f32.mrf.mxu0
        %v2561 = vadd.f32 %v2148, %v2560
        %2562 = vmatprep.mubr.f32.mxu0 %v766
        %2563 = vmatmul.mubr.f32.gmra.mxu0 %v765
        %v2564 = vpop.f32.mrf.mxu0
        %v2565 = vadd.f32 %v2152, %v2564
        %v2566 = vpop.f32.mrf.mxu0
        %v2567 = vadd.f32 %v2154, %v2566
        %2568 = vmatprep.mubr.f32.mxu0 %v777
        %2569 = vmatmul.mubr.f32.gmra.mxu0 %v776
        %v2570 = vpop.f32.mrf.mxu0
        %v2571 = vadd.f32 %v2158, %v2570
        %v2572 = vpop.f32.mrf.mxu0
        %v2573 = vadd.f32 %v2160, %v2572
        %2574 = vmatprep.mubr.f32.mxu0 %v788
        %2575 = vmatmul.mubr.f32.gmra.mxu0 %v787
        %v2576 = vpop.f32.mrf.mxu0
        %v2577 = vadd.f32 %v2164, %v2576
        %v2578 = vpop.f32.mrf.mxu0
        %v2579 = vadd.f32 %v2166, %v2578
        %2580 = vmatprep.mubr.f32.mxu0 %v799
        %2581 = vmatmul.mubr.f32.gmra.mxu0 %v798
        %v2582 = vpop.f32.mrf.mxu0
        %v2583 = vadd.f32 %v2170, %v2582
        %v2584 = vpop.f32.mrf.mxu0
        %v2585 = vadd.f32 %v2172, %v2584
        %2586 = vmatprep.mubr.f32.mxu0 %v810
        %2587 = vmatmul.mubr.f32.gmra.mxu0 %v809
        %v2588 = vpop.f32.mrf.mxu0
        %v2589 = vadd.f32 %v2176, %v2588
        %v2590 = vpop.f32.mrf.mxu0
        %v2591 = vadd.f32 %v2178, %v2590
        %2592 = vmatprep.mubr.f32.mxu0 %v821
        %2593 = vmatmul.mubr.f32.gmra.mxu0 %v820
        %v2594 = vpop.f32.mrf.mxu0
        %v2595 = vadd.f32 %v2182, %v2594
        %v2596 = vpop.f32.mrf.mxu0
        %v2597 = vadd.f32 %v2184, %v2596
        %2598 = vmatprep.mubr.f32.mxu0 %v832
        %2599 = vmatmul.mubr.f32.gmra.mxu0 %v831
        %v2600 = vpop.f32.mrf.mxu0
        %v2601 = vadd.f32 %v2188, %v2600
        %v2602 = vpop.f32.mrf.mxu0
        %v2603 = vadd.f32 %v2190, %v2602
        %2604 = vmatprep.mubr.f32.mxu0 %v843
        %2605 = vmatmul.mubr.f32.gmra.mxu0 %v842
        %v2606 = vpop.f32.mrf.mxu0
        %v2607 = vadd.f32 %v2194, %v2606
        %v2608 = vpop.f32.mrf.mxu0
        %v2609 = vadd.f32 %v2196, %v2608
        %2610 = vdwg.mxu0
        %2611 = vmatprep.subr.mxu0 %v1072
        %2612 = vmatpush1.msra.mxu0 %v1071
        %2613 = vmatprep.subr.mxu0 %v1070
        %2614 = vmatpush1.msra.mxu0 %v1069
        %2615 = vmatprep.subr.mxu0 %v1068
        %2616 = vmatpush1.msra.mxu0 %v1067
        %2617 = vmatprep.subr.mxu0 %v1066
        %2618 = vmatpush1.msra.mxu0 %v1065
        %2619 = vmatprep.subr.mxu0 %v1064
        %2620 = vmatpush1.msra.mxu0 %v1063
        %2621 = vmatprep.subr.mxu0 %v1062
        %2622 = vmatpush1.msra.mxu0 %v1061
        %2623 = vmatprep.subr.mxu0 %v1060
        %2624 = vmatpush1.msra.mxu0 %v1059
        %2625 = vmatprep.subr.mxu0 %v1058
        %2626 = vmatpush1.msra.mxu0 %v1057
        %2627 = vmatprep.subr.mxu0 %v1056
        %2628 = vmatpush1.msra.mxu0 %v1055
        %2629 = vmatprep.subr.mxu0 %v1054
        %2630 = vmatpush1.msra.mxu0 %v1053
        %2631 = vmatprep.subr.mxu0 %v1052
        %2632 = vmatpush1.msra.mxu0 %v1051
        %2633 = vmatprep.subr.mxu0 %v1050
        %2634 = vmatpush1.msra.mxu0 %v1049
        %2635 = vmatprep.subr.mxu0 %v1048
        %2636 = vmatpush1.msra.mxu0 %v1047
        %2637 = vmatprep.subr.mxu0 %v1046
        %2638 = vmatpush1.msra.mxu0 %v1045
        %2639 = vmatprep.subr.mxu0 %v1044
        %2640 = vmatpush1.msra.mxu0 %v1043
        %2641 = vmatprep.subr.mxu0 %v1042
        %2642 = vmatpush1.msra.mxu0 %v1041
        %2643 = vmatprep.subr.mxu0 %v1104
        %2644 = vmatpush2.msra.mxu0 %v1103
        %2645 = vmatprep.subr.mxu0 %v1102
        %2646 = vmatpush2.msra.mxu0 %v1101
        %2647 = vmatprep.subr.mxu0 %v1100
        %2648 = vmatpush2.msra.mxu0 %v1099
        %2649 = vmatprep.subr.mxu0 %v1098
        %2650 = vmatpush2.msra.mxu0 %v1097
        %2651 = vmatprep.subr.mxu0 %v1096
        %2652 = vmatpush2.msra.mxu0 %v1095
        %2653 = vmatprep.subr.mxu0 %v1094
        %2654 = vmatpush2.msra.mxu0 %v1093
        %2655 = vmatprep.subr.mxu0 %v1092
        %2656 = vmatpush2.msra.mxu0 %v1091
        %2657 = vmatprep.subr.mxu0 %v1090
        %2658 = vmatpush2.msra.mxu0 %v1089
        %2659 = vmatprep.subr.mxu0 %v1088
        %2660 = vmatpush2.msra.mxu0 %v1087
        %2661 = vmatprep.subr.mxu0 %v1086
        %2662 = vmatpush2.msra.mxu0 %v1085
        %2663 = vmatprep.subr.mxu0 %v1084
        %2664 = vmatpush2.msra.mxu0 %v1083
        %2665 = vmatprep.subr.mxu0 %v1082
        %2666 = vmatpush2.msra.mxu0 %v1081
        %2667 = vmatprep.subr.mxu0 %v1080
        %2668 = vmatpush2.msra.mxu0 %v1079
        %2669 = vmatprep.subr.mxu0 %v1078
        %2670 = vmatpush2.msra.mxu0 %v1077
        %2671 = vmatprep.subr.mxu0 %v1076
        %2672 = vmatpush2.msra.mxu0 %v1075
        %2673 = vmatprep.subr.mxu0 %v1074
        %2674 = vmatpush2.msra.mxu0 %v1073
        %2675 = vmatprep.mubr.f32.mxu0 %v218
        %2676 = vmatmul.mubr.f32.gmra.mxu0 %v217
        %v2677 = vpop.f32.mrf.mxu0
        %v2678 = vadd.f32 %v2265, %v2677
        %v2679 = vpop.f32.mrf.mxu0
        %v2680 = vadd.f32 %v2267, %v2679
        %2681 = vmatprep.mubr.f32.mxu0 %v229
        %2682 = vmatmul.mubr.f32.gmra.mxu0 %v228
        %v2683 = vpop.f32.mrf.mxu0
        %v2684 = vadd.f32 %v2271, %v2683
        %v2685 = vpop.f32.mrf.mxu0
        %v2686 = vadd.f32 %v2273, %v2685
        %2687 = vmatprep.mubr.f32.mxu0 %v240
        %2688 = vmatmul.mubr.f32.gmra.mxu0 %v239
        %v2689 = vpop.f32.mrf.mxu0
        %v2690 = vadd.f32 %v2277, %v2689
        %v2691 = vpop.f32.mrf.mxu0
        %v2692 = vadd.f32 %v2279, %v2691
        %2693 = vmatprep.mubr.f32.mxu0 %v251
        %2694 = vmatmul.mubr.f32.gmra.mxu0 %v250
        %v2695 = vpop.f32.mrf.mxu0
        %v2696 = vadd.f32 %v2283, %v2695
        %v2697 = vpop.f32.mrf.mxu0
        %v2698 = vadd.f32 %v2285, %v2697
        %2699 = vmatprep.mubr.f32.mxu0 %v262
        %2700 = vmatmul.mubr.f32.gmra.mxu0 %v261
        %v2701 = vpop.f32.mrf.mxu0
        %v2702 = vadd.f32 %v2289, %v2701
        %v2703 = vpop.f32.mrf.mxu0
        %v2704 = vadd.f32 %v2291, %v2703
        %2705 = vmatprep.mubr.f32.mxu0 %v273
        %2706 = vmatmul.mubr.f32.gmra.mxu0 %v272
        %v2707 = vpop.f32.mrf.mxu0
        %v2708 = vadd.f32 %v2295, %v2707
        %v2709 = vpop.f32.mrf.mxu0
        %v2710 = vadd.f32 %v2297, %v2709
        %2711 = vmatprep.mubr.f32.mxu0 %v284
        %2712 = vmatmul.mubr.f32.gmra.mxu0 %v283
        %v2713 = vpop.f32.mrf.mxu0
        %v2714 = vadd.f32 %v2301, %v2713
        %v2715 = vpop.f32.mrf.mxu0
        %v2716 = vadd.f32 %v2303, %v2715
        %2717 = vmatprep.mubr.f32.mxu0 %v295
        %2718 = vmatmul.mubr.f32.gmra.mxu0 %v294
        %v2719 = vpop.f32.mrf.mxu0
        %v2720 = vadd.f32 %v2307, %v2719
        %v2721 = vpop.f32.mrf.mxu0
        %v2722 = vadd.f32 %v2309, %v2721
        %2723 = vmatprep.mubr.f32.mxu0 %v306
        %2724 = vmatmul.mubr.f32.gmra.mxu0 %v305
        %v2725 = vpop.f32.mrf.mxu0
        %v2726 = vadd.f32 %v2313, %v2725
        %v2727 = vpop.f32.mrf.mxu0
        %v2728 = vadd.f32 %v2315, %v2727
        %2729 = vmatprep.mubr.f32.mxu0 %v317
        %2730 = vmatmul.mubr.f32.gmra.mxu0 %v316
        %v2731 = vpop.f32.mrf.mxu0
        %v2732 = vadd.f32 %v2319, %v2731
        %v2733 = vpop.f32.mrf.mxu0
        %v2734 = vadd.f32 %v2321, %v2733
        %2735 = vmatprep.mubr.f32.mxu0 %v328
        %2736 = vmatmul.mubr.f32.gmra.mxu0 %v327
        %v2737 = vpop.f32.mrf.mxu0
        %v2738 = vadd.f32 %v2325, %v2737
        %v2739 = vpop.f32.mrf.mxu0
        %v2740 = vadd.f32 %v2327, %v2739
        %2741 = vmatprep.mubr.f32.mxu0 %v339
        %2742 = vmatmul.mubr.f32.gmra.mxu0 %v338
        %v2743 = vpop.f32.mrf.mxu0
        %v2744 = vadd.f32 %v2331, %v2743
        %v2745 = vpop.f32.mrf.mxu0
        %v2746 = vadd.f32 %v2333, %v2745
        %2747 = vmatprep.mubr.f32.mxu0 %v350
        %2748 = vmatmul.mubr.f32.gmra.mxu0 %v349
        %v2749 = vpop.f32.mrf.mxu0
        %v2750 = vadd.f32 %v2337, %v2749
        %v2751 = vpop.f32.mrf.mxu0
        %v2752 = vadd.f32 %v2339, %v2751
        %2753 = vmatprep.mubr.f32.mxu0 %v361
        %2754 = vmatmul.mubr.f32.gmra.mxu0 %v360
        %v2755 = vpop.f32.mrf.mxu0
        %v2756 = vadd.f32 %v2343, %v2755
        %v2757 = vpop.f32.mrf.mxu0
        %v2758 = vadd.f32 %v2345, %v2757
        %2759 = vmatprep.mubr.f32.mxu0 %v372
        %2760 = vmatmul.mubr.f32.gmra.mxu0 %v371
        %v2761 = vpop.f32.mrf.mxu0
        %v2762 = vadd.f32 %v2349, %v2761
        %v2763 = vpop.f32.mrf.mxu0
        %v2764 = vadd.f32 %v2351, %v2763
        %2765 = vmatprep.mubr.f32.mxu0 %v383
        %2766 = vmatmul.mubr.f32.gmra.mxu0 %v382
        %v2767 = vpop.f32.mrf.mxu0
        %v2768 = vadd.f32 %v2355, %v2767
        %v2769 = vpop.f32.mrf.mxu0
        %v2770 = vadd.f32 %v2357, %v2769
        %2771 = vmatprep.mubr.f32.mxu0 %v394
        %2772 = vmatmul.mubr.f32.gmra.mxu0 %v393
        %v2773 = vpop.f32.mrf.mxu0
        %v2774 = vadd.f32 %v2361, %v2773
        %v2775 = vpop.f32.mrf.mxu0
        %v2776 = vadd.f32 %v2363, %v2775
        %2777 = vmatprep.mubr.f32.mxu0 %v405
        %2778 = vmatmul.mubr.f32.gmra.mxu0 %v404
        %v2779 = vpop.f32.mrf.mxu0
        %v2780 = vadd.f32 %v2367, %v2779
        %v2781 = vpop.f32.mrf.mxu0
        %v2782 = vadd.f32 %v2369, %v2781
        %2783 = vmatprep.mubr.f32.mxu0 %v416
        %2784 = vmatmul.mubr.f32.gmra.mxu0 %v415
        %v2785 = vpop.f32.mrf.mxu0
        %v2786 = vadd.f32 %v2373, %v2785
        %v2787 = vpop.f32.mrf.mxu0
        %v2788 = vadd.f32 %v2375, %v2787
        %2789 = vmatprep.mubr.f32.mxu0 %v427
        %2790 = vmatmul.mubr.f32.gmra.mxu0 %v426
        %v2791 = vpop.f32.mrf.mxu0
        %v2792 = vadd.f32 %v2379, %v2791
        %v2793 = vpop.f32.mrf.mxu0
        %v2794 = vadd.f32 %v2381, %v2793
        %2795 = vmatprep.mubr.f32.mxu0 %v438
        %2796 = vmatmul.mubr.f32.gmra.mxu0 %v437
        %v2797 = vpop.f32.mrf.mxu0
        %v2798 = vadd.f32 %v2385, %v2797
        %v2799 = vpop.f32.mrf.mxu0
        %v2800 = vadd.f32 %v2387, %v2799
        %2801 = vmatprep.mubr.f32.mxu0 %v449
        %2802 = vmatmul.mubr.f32.gmra.mxu0 %v448
        %v2803 = vpop.f32.mrf.mxu0
        %v2804 = vadd.f32 %v2391, %v2803
        %v2805 = vpop.f32.mrf.mxu0
        %v2806 = vadd.f32 %v2393, %v2805
        %2807 = vmatprep.mubr.f32.mxu0 %v460
        %2808 = vmatmul.mubr.f32.gmra.mxu0 %v459
        %v2809 = vpop.f32.mrf.mxu0
        %v2810 = vadd.f32 %v2397, %v2809
        %v2811 = vpop.f32.mrf.mxu0
        %v2812 = vadd.f32 %v2399, %v2811
        %2813 = vmatprep.mubr.f32.mxu0 %v471
        %2814 = vmatmul.mubr.f32.gmra.mxu0 %v470
        %v2815 = vpop.f32.mrf.mxu0
        %v2816 = vadd.f32 %v2403, %v2815
        %v2817 = vpop.f32.mrf.mxu0
        %v2818 = vadd.f32 %v2405, %v2817
        %2819 = vmatprep.mubr.f32.mxu0 %v482
        %2820 = vmatmul.mubr.f32.gmra.mxu0 %v481
        %v2821 = vpop.f32.mrf.mxu0
        %v2822 = vadd.f32 %v2409, %v2821
        %v2823 = vpop.f32.mrf.mxu0
        %v2824 = vadd.f32 %v2411, %v2823
        %2825 = vmatprep.mubr.f32.mxu0 %v493
        %2826 = vmatmul.mubr.f32.gmra.mxu0 %v492
        %v2827 = vpop.f32.mrf.mxu0
        %v2828 = vadd.f32 %v2415, %v2827
        %v2829 = vpop.f32.mrf.mxu0
        %v2830 = vadd.f32 %v2417, %v2829
        %2831 = vmatprep.mubr.f32.mxu0 %v504
        %2832 = vmatmul.mubr.f32.gmra.mxu0 %v503
        %v2833 = vpop.f32.mrf.mxu0
        %v2834 = vadd.f32 %v2421, %v2833
        %v2835 = vpop.f32.mrf.mxu0
        %v2836 = vadd.f32 %v2423, %v2835
        %2837 = vmatprep.mubr.f32.mxu0 %v515
        %2838 = vmatmul.mubr.f32.gmra.mxu0 %v514
        %v2839 = vpop.f32.mrf.mxu0
        %v2840 = vadd.f32 %v2427, %v2839
        %v2841 = vpop.f32.mrf.mxu0
        %v2842 = vadd.f32 %v2429, %v2841
        %2843 = vmatprep.mubr.f32.mxu0 %v526
        %2844 = vmatmul.mubr.f32.gmra.mxu0 %v525
        %v2845 = vpop.f32.mrf.mxu0
        %v2846 = vadd.f32 %v2433, %v2845
        %v2847 = vpop.f32.mrf.mxu0
        %v2848 = vadd.f32 %v2435, %v2847
        %2849 = vmatprep.mubr.f32.mxu0 %v537
        %2850 = vmatmul.mubr.f32.gmra.mxu0 %v536
        %v2851 = vpop.f32.mrf.mxu0
        %v2852 = vadd.f32 %v2439, %v2851
        %v2853 = vpop.f32.mrf.mxu0
        %v2854 = vadd.f32 %v2441, %v2853
        %2855 = vmatprep.mubr.f32.mxu0 %v548
        %2856 = vmatmul.mubr.f32.gmra.mxu0 %v547
        %v2857 = vpop.f32.mrf.mxu0
        %v2858 = vadd.f32 %v2445, %v2857
        %v2859 = vpop.f32.mrf.mxu0
        %v2860 = vadd.f32 %v2447, %v2859
        %2861 = vmatprep.mubr.f32.mxu0 %v559
        %2862 = vmatmul.mubr.f32.gmra.mxu0 %v558
        %v2863 = vpop.f32.mrf.mxu0
        %v2864 = vadd.f32 %v2451, %v2863
        %v2865 = vpop.f32.mrf.mxu0
        %v2866 = vadd.f32 %v2453, %v2865
        %2867 = vmatprep.mubr.f32.mxu0 %v570
        %2868 = vmatmul.mubr.f32.gmra.mxu0 %v569
        %v2869 = vpop.f32.mrf.mxu0
        %v2870 = vadd.f32 %v2457, %v2869
        %v2871 = vpop.f32.mrf.mxu0
        %v2872 = vadd.f32 %v2459, %v2871
        %2873 = vmatprep.mubr.f32.mxu0 %v581
        %2874 = vmatmul.mubr.f32.gmra.mxu0 %v580
        %v2875 = vpop.f32.mrf.mxu0
        %v2876 = vadd.f32 %v2463, %v2875
        %v2877 = vpop.f32.mrf.mxu0
        %v2878 = vadd.f32 %v2465, %v2877
        %2879 = vmatprep.mubr.f32.mxu0 %v592
        %2880 = vmatmul.mubr.f32.gmra.mxu0 %v591
        %v2881 = vpop.f32.mrf.mxu0
        %v2882 = vadd.f32 %v2469, %v2881
        %v2883 = vpop.f32.mrf.mxu0
        %v2884 = vadd.f32 %v2471, %v2883
        %2885 = vmatprep.mubr.f32.mxu0 %v603
        %2886 = vmatmul.mubr.f32.gmra.mxu0 %v602
        %v2887 = vpop.f32.mrf.mxu0
        %v2888 = vadd.f32 %v2475, %v2887
        %v2889 = vpop.f32.mrf.mxu0
        %v2890 = vadd.f32 %v2477, %v2889
        %2891 = vmatprep.mubr.f32.mxu0 %v614
        %2892 = vmatmul.mubr.f32.gmra.mxu0 %v613
        %v2893 = vpop.f32.mrf.mxu0
        %v2894 = vadd.f32 %v2481, %v2893
        %v2895 = vpop.f32.mrf.mxu0
        %v2896 = vadd.f32 %v2483, %v2895
        %2897 = vmatprep.mubr.f32.mxu0 %v625
        %2898 = vmatmul.mubr.f32.gmra.mxu0 %v624
        %v2899 = vpop.f32.mrf.mxu0
        %v2900 = vadd.f32 %v2487, %v2899
        %v2901 = vpop.f32.mrf.mxu0
        %v2902 = vadd.f32 %v2489, %v2901
        %2903 = vmatprep.mubr.f32.mxu0 %v636
        %2904 = vmatmul.mubr.f32.gmra.mxu0 %v635
        %v2905 = vpop.f32.mrf.mxu0
        %v2906 = vadd.f32 %v2493, %v2905
        %v2907 = vpop.f32.mrf.mxu0
        %v2908 = vadd.f32 %v2495, %v2907
        %2909 = vmatprep.mubr.f32.mxu0 %v647
        %2910 = vmatmul.mubr.f32.gmra.mxu0 %v646
        %v2911 = vpop.f32.mrf.mxu0
        %v2912 = vadd.f32 %v2499, %v2911
        %v2913 = vpop.f32.mrf.mxu0
        %v2914 = vadd.f32 %v2501, %v2913
        %2915 = vmatprep.mubr.f32.mxu0 %v658
        %2916 = vmatmul.mubr.f32.gmra.mxu0 %v657
        %v2917 = vpop.f32.mrf.mxu0
        %v2918 = vadd.f32 %v2505, %v2917
        %v2919 = vpop.f32.mrf.mxu0
        %v2920 = vadd.f32 %v2507, %v2919
        %2921 = vmatprep.mubr.f32.mxu0 %v669
        %2922 = vmatmul.mubr.f32.gmra.mxu0 %v668
        %v2923 = vpop.f32.mrf.mxu0
        %v2924 = vadd.f32 %v2511, %v2923
        %v2925 = vpop.f32.mrf.mxu0
        %v2926 = vadd.f32 %v2513, %v2925
        %2927 = vmatprep.mubr.f32.mxu0 %v680
        %2928 = vmatmul.mubr.f32.gmra.mxu0 %v679
        %v2929 = vpop.f32.mrf.mxu0
        %v2930 = vadd.f32 %v2517, %v2929
        %v2931 = vpop.f32.mrf.mxu0
        %v2932 = vadd.f32 %v2519, %v2931
        %2933 = vmatprep.mubr.f32.mxu0 %v691
        %2934 = vmatmul.mubr.f32.gmra.mxu0 %v690
        %v2935 = vpop.f32.mrf.mxu0
        %v2936 = vadd.f32 %v2523, %v2935
        %v2937 = vpop.f32.mrf.mxu0
        %v2938 = vadd.f32 %v2525, %v2937
        %2939 = vmatprep.mubr.f32.mxu0 %v702
        %2940 = vmatmul.mubr.f32.gmra.mxu0 %v701
        %v2941 = vpop.f32.mrf.mxu0
        %v2942 = vadd.f32 %v2529, %v2941
        %v2943 = vpop.f32.mrf.mxu0
        %v2944 = vadd.f32 %v2531, %v2943
        %2945 = vmatprep.mubr.f32.mxu0 %v713
        %2946 = vmatmul.mubr.f32.gmra.mxu0 %v712
        %v2947 = vpop.f32.mrf.mxu0
        %v2948 = vadd.f32 %v2535, %v2947
        %v2949 = vpop.f32.mrf.mxu0
        %v2950 = vadd.f32 %v2537, %v2949
        %2951 = vmatprep.mubr.f32.mxu0 %v724
        %2952 = vmatmul.mubr.f32.gmra.mxu0 %v723
        %v2953 = vpop.f32.mrf.mxu0
        %v2954 = vadd.f32 %v2541, %v2953
        %v2955 = vpop.f32.mrf.mxu0
        %v2956 = vadd.f32 %v2543, %v2955
        %2957 = vmatprep.mubr.f32.mxu0 %v735
        %2958 = vmatmul.mubr.f32.gmra.mxu0 %v734
        %v2959 = vpop.f32.mrf.mxu0
        %v2960 = vadd.f32 %v2547, %v2959
        %v2961 = vpop.f32.mrf.mxu0
        %v2962 = vadd.f32 %v2549, %v2961
        %2963 = vmatprep.mubr.f32.mxu0 %v746
        %2964 = vmatmul.mubr.f32.gmra.mxu0 %v745
        %v2965 = vpop.f32.mrf.mxu0
        %v2966 = vadd.f32 %v2553, %v2965
        %v2967 = vpop.f32.mrf.mxu0
        %v2968 = vadd.f32 %v2555, %v2967
        %2969 = vmatprep.mubr.f32.mxu0 %v757
        %2970 = vmatmul.mubr.f32.gmra.mxu0 %v756
        %v2971 = vpop.f32.mrf.mxu0
        %v2972 = vadd.f32 %v2559, %v2971
        %v2973 = vpop.f32.mrf.mxu0
        %v2974 = vadd.f32 %v2561, %v2973
        %2975 = vmatprep.mubr.f32.mxu0 %v768
        %2976 = vmatmul.mubr.f32.gmra.mxu0 %v767
        %v2977 = vpop.f32.mrf.mxu0
        %v2978 = vadd.f32 %v2565, %v2977
        %v2979 = vpop.f32.mrf.mxu0
        %v2980 = vadd.f32 %v2567, %v2979
        %2981 = vmatprep.mubr.f32.mxu0 %v779
        %2982 = vmatmul.mubr.f32.gmra.mxu0 %v778
        %v2983 = vpop.f32.mrf.mxu0
        %v2984 = vadd.f32 %v2571, %v2983
        %v2985 = vpop.f32.mrf.mxu0
        %v2986 = vadd.f32 %v2573, %v2985
        %2987 = vmatprep.mubr.f32.mxu0 %v790
        %2988 = vmatmul.mubr.f32.gmra.mxu0 %v789
        %v2989 = vpop.f32.mrf.mxu0
        %v2990 = vadd.f32 %v2577, %v2989
        %v2991 = vpop.f32.mrf.mxu0
        %v2992 = vadd.f32 %v2579, %v2991
        %2993 = vmatprep.mubr.f32.mxu0 %v801
        %2994 = vmatmul.mubr.f32.gmra.mxu0 %v800
        %v2995 = vpop.f32.mrf.mxu0
        %v2996 = vadd.f32 %v2583, %v2995
        %v2997 = vpop.f32.mrf.mxu0
        %v2998 = vadd.f32 %v2585, %v2997
        %2999 = vmatprep.mubr.f32.mxu0 %v812
        %3000 = vmatmul.mubr.f32.gmra.mxu0 %v811
        %v3001 = vpop.f32.mrf.mxu0
        %v3002 = vadd.f32 %v2589, %v3001
        %v3003 = vpop.f32.mrf.mxu0
        %v3004 = vadd.f32 %v2591, %v3003
        %3005 = vmatprep.mubr.f32.mxu0 %v823
        %3006 = vmatmul.mubr.f32.gmra.mxu0 %v822
        %v3007 = vpop.f32.mrf.mxu0
        %v3008 = vadd.f32 %v2595, %v3007
        %v3009 = vpop.f32.mrf.mxu0
        %v3010 = vadd.f32 %v2597, %v3009
        %3011 = vmatprep.mubr.f32.mxu0 %v834
        %3012 = vmatmul.mubr.f32.gmra.mxu0 %v833
        %v3013 = vpop.f32.mrf.mxu0
        %v3014 = vadd.f32 %v2601, %v3013
        %v3015 = vpop.f32.mrf.mxu0
        %v3016 = vadd.f32 %v2603, %v3015
        %3017 = vmatprep.mubr.f32.mxu0 %v845
        %3018 = vmatmul.mubr.f32.gmra.mxu0 %v844
        %v3019 = vpop.f32.mrf.mxu0
        %v3020 = vadd.f32 %v2607, %v3019
        %v3021 = vpop.f32.mrf.mxu0
        %v3022 = vadd.f32 %v2609, %v3021
        %3023 = vdwg.mxu0
        %3024 = vmatprep.subr.mxu0 %v1136
        %3025 = vmatpush1.msra.mxu0 %v1135
        %3026 = vmatprep.subr.mxu0 %v1134
        %3027 = vmatpush1.msra.mxu0 %v1133
        %3028 = vmatprep.subr.mxu0 %v1132
        %3029 = vmatpush1.msra.mxu0 %v1131
        %3030 = vmatprep.subr.mxu0 %v1130
        %3031 = vmatpush1.msra.mxu0 %v1129
        %3032 = vmatprep.subr.mxu0 %v1128
        %3033 = vmatpush1.msra.mxu0 %v1127
        %3034 = vmatprep.subr.mxu0 %v1126
        %3035 = vmatpush1.msra.mxu0 %v1125
        %3036 = vmatprep.subr.mxu0 %v1124
        %3037 = vmatpush1.msra.mxu0 %v1123
        %3038 = vmatprep.subr.mxu0 %v1122
        %3039 = vmatpush1.msra.mxu0 %v1121
        %3040 = vmatprep.subr.mxu0 %v1120
        %3041 = vmatpush1.msra.mxu0 %v1119
        %3042 = vmatprep.subr.mxu0 %v1118
        %3043 = vmatpush1.msra.mxu0 %v1117
        %3044 = vmatprep.subr.mxu0 %v1116
        %3045 = vmatpush1.msra.mxu0 %v1115
        %3046 = vmatprep.subr.mxu0 %v1114
        %3047 = vmatpush1.msra.mxu0 %v1113
        %3048 = vmatprep.subr.mxu0 %v1112
        %3049 = vmatpush1.msra.mxu0 %v1111
        %3050 = vmatprep.subr.mxu0 %v1110
        %3051 = vmatpush1.msra.mxu0 %v1109
        %3052 = vmatprep.subr.mxu0 %v1108
        %3053 = vmatpush1.msra.mxu0 %v1107
        %3054 = vmatprep.subr.mxu0 %v1106
        %3055 = vmatpush1.msra.mxu0 %v1105
        %3056 = vmatprep.subr.mxu0 %v1168
        %3057 = vmatpush2.msra.mxu0 %v1167
        %3058 = vmatprep.subr.mxu0 %v1166
        %3059 = vmatpush2.msra.mxu0 %v1165
        %3060 = vmatprep.subr.mxu0 %v1164
        %3061 = vmatpush2.msra.mxu0 %v1163
        %3062 = vmatprep.subr.mxu0 %v1162
        %3063 = vmatpush2.msra.mxu0 %v1161
        %3064 = vmatprep.subr.mxu0 %v1160
        %3065 = vmatpush2.msra.mxu0 %v1159
        %3066 = vmatprep.subr.mxu0 %v1158
        %3067 = vmatpush2.msra.mxu0 %v1157
        %3068 = vmatprep.subr.mxu0 %v1156
        %3069 = vmatpush2.msra.mxu0 %v1155
        %3070 = vmatprep.subr.mxu0 %v1154
        %3071 = vmatpush2.msra.mxu0 %v1153
        %3072 = vmatprep.subr.mxu0 %v1152
        %3073 = vmatpush2.msra.mxu0 %v1151
        %3074 = vmatprep.subr.mxu0 %v1150
        %3075 = vmatpush2.msra.mxu0 %v1149
        %3076 = vmatprep.subr.mxu0 %v1148
        %3077 = vmatpush2.msra.mxu0 %v1147
        %3078 = vmatprep.subr.mxu0 %v1146
        %3079 = vmatpush2.msra.mxu0 %v1145
        %3080 = vmatprep.subr.mxu0 %v1144
        %3081 = vmatpush2.msra.mxu0 %v1143
        %3082 = vmatprep.subr.mxu0 %v1142
        %3083 = vmatpush2.msra.mxu0 %v1141
        %3084 = vmatprep.subr.mxu0 %v1140
        %3085 = vmatpush2.msra.mxu0 %v1139
        %3086 = vmatprep.subr.mxu0 %v1138
        %3087 = vmatpush2.msra.mxu0 %v1137
        %3088 = vmatprep.mubr.f32.mxu0 %v220
        %3089 = vmatmul.mubr.f32.gmra.mxu0 %v219
        %v3090 = vpop.f32.mrf.mxu0
        %v3091 = vadd.f32 %v2678, %v3090
        %v3092 = vpop.f32.mrf.mxu0
        %v3093 = vadd.f32 %v2680, %v3092
        %3094 = vmatprep.mubr.f32.mxu0 %v231
        %3095 = vmatmul.mubr.f32.gmra.mxu0 %v230
        %v3096 = vpop.f32.mrf.mxu0
        %v3097 = vadd.f32 %v2684, %v3096
        %v3098 = vpop.f32.mrf.mxu0
        %v3099 = vadd.f32 %v2686, %v3098
        %3100 = vmatprep.mubr.f32.mxu0 %v242
        %3101 = vmatmul.mubr.f32.gmra.mxu0 %v241
        %v3102 = vpop.f32.mrf.mxu0
        %v3103 = vadd.f32 %v2690, %v3102
        %v3104 = vpop.f32.mrf.mxu0
        %v3105 = vadd.f32 %v2692, %v3104
        %3106 = vmatprep.mubr.f32.mxu0 %v253
        %3107 = vmatmul.mubr.f32.gmra.mxu0 %v252
        %v3108 = vpop.f32.mrf.mxu0
        %v3109 = vadd.f32 %v2696, %v3108
        %v3110 = vpop.f32.mrf.mxu0
        %v3111 = vadd.f32 %v2698, %v3110
        %3112 = vmatprep.mubr.f32.mxu0 %v264
        %3113 = vmatmul.mubr.f32.gmra.mxu0 %v263
        %v3114 = vpop.f32.mrf.mxu0
        %v3115 = vadd.f32 %v2702, %v3114
        %v3116 = vpop.f32.mrf.mxu0
        %v3117 = vadd.f32 %v2704, %v3116
        %3118 = vmatprep.mubr.f32.mxu0 %v275
        %3119 = vmatmul.mubr.f32.gmra.mxu0 %v274
        %v3120 = vpop.f32.mrf.mxu0
        %v3121 = vadd.f32 %v2708, %v3120
        %v3122 = vpop.f32.mrf.mxu0
        %v3123 = vadd.f32 %v2710, %v3122
        %3124 = vmatprep.mubr.f32.mxu0 %v286
        %3125 = vmatmul.mubr.f32.gmra.mxu0 %v285
        %v3126 = vpop.f32.mrf.mxu0
        %v3127 = vadd.f32 %v2714, %v3126
        %v3128 = vpop.f32.mrf.mxu0
        %v3129 = vadd.f32 %v2716, %v3128
        %3130 = vmatprep.mubr.f32.mxu0 %v297
        %3131 = vmatmul.mubr.f32.gmra.mxu0 %v296
        %v3132 = vpop.f32.mrf.mxu0
        %v3133 = vadd.f32 %v2720, %v3132
        %v3134 = vpop.f32.mrf.mxu0
        %v3135 = vadd.f32 %v2722, %v3134
        %3136 = vmatprep.mubr.f32.mxu0 %v308
        %3137 = vmatmul.mubr.f32.gmra.mxu0 %v307
        %v3138 = vpop.f32.mrf.mxu0
        %v3139 = vadd.f32 %v2726, %v3138
        %v3140 = vpop.f32.mrf.mxu0
        %v3141 = vadd.f32 %v2728, %v3140
        %3142 = vmatprep.mubr.f32.mxu0 %v319
        %3143 = vmatmul.mubr.f32.gmra.mxu0 %v318
        %v3144 = vpop.f32.mrf.mxu0
        %v3145 = vadd.f32 %v2732, %v3144
        %v3146 = vpop.f32.mrf.mxu0
        %v3147 = vadd.f32 %v2734, %v3146
        %3148 = vmatprep.mubr.f32.mxu0 %v330
        %3149 = vmatmul.mubr.f32.gmra.mxu0 %v329
        %v3150 = vpop.f32.mrf.mxu0
        %v3151 = vadd.f32 %v2738, %v3150
        %v3152 = vpop.f32.mrf.mxu0
        %v3153 = vadd.f32 %v2740, %v3152
        %3154 = vmatprep.mubr.f32.mxu0 %v341
        %3155 = vmatmul.mubr.f32.gmra.mxu0 %v340
        %v3156 = vpop.f32.mrf.mxu0
        %v3157 = vadd.f32 %v2744, %v3156
        %v3158 = vpop.f32.mrf.mxu0
        %v3159 = vadd.f32 %v2746, %v3158
        %3160 = vmatprep.mubr.f32.mxu0 %v352
        %3161 = vmatmul.mubr.f32.gmra.mxu0 %v351
        %v3162 = vpop.f32.mrf.mxu0
        %v3163 = vadd.f32 %v2750, %v3162
        %v3164 = vpop.f32.mrf.mxu0
        %v3165 = vadd.f32 %v2752, %v3164
        %3166 = vmatprep.mubr.f32.mxu0 %v363
        %3167 = vmatmul.mubr.f32.gmra.mxu0 %v362
        %v3168 = vpop.f32.mrf.mxu0
        %v3169 = vadd.f32 %v2756, %v3168
        %v3170 = vpop.f32.mrf.mxu0
        %v3171 = vadd.f32 %v2758, %v3170
        %3172 = vmatprep.mubr.f32.mxu0 %v374
        %3173 = vmatmul.mubr.f32.gmra.mxu0 %v373
        %v3174 = vpop.f32.mrf.mxu0
        %v3175 = vadd.f32 %v2762, %v3174
        %v3176 = vpop.f32.mrf.mxu0
        %v3177 = vadd.f32 %v2764, %v3176
        %3178 = vmatprep.mubr.f32.mxu0 %v385
        %3179 = vmatmul.mubr.f32.gmra.mxu0 %v384
        %v3180 = vpop.f32.mrf.mxu0
        %v3181 = vadd.f32 %v2768, %v3180
        %v3182 = vpop.f32.mrf.mxu0
        %v3183 = vadd.f32 %v2770, %v3182
        %3184 = vmatprep.mubr.f32.mxu0 %v396
        %3185 = vmatmul.mubr.f32.gmra.mxu0 %v395
        %v3186 = vpop.f32.mrf.mxu0
        %v3187 = vadd.f32 %v2774, %v3186
        %v3188 = vpop.f32.mrf.mxu0
        %v3189 = vadd.f32 %v2776, %v3188
        %3190 = vmatprep.mubr.f32.mxu0 %v407
        %3191 = vmatmul.mubr.f32.gmra.mxu0 %v406
        %v3192 = vpop.f32.mrf.mxu0
        %v3193 = vadd.f32 %v2780, %v3192
        %v3194 = vpop.f32.mrf.mxu0
        %v3195 = vadd.f32 %v2782, %v3194
        %3196 = vmatprep.mubr.f32.mxu0 %v418
        %3197 = vmatmul.mubr.f32.gmra.mxu0 %v417
        %v3198 = vpop.f32.mrf.mxu0
        %v3199 = vadd.f32 %v2786, %v3198
        %v3200 = vpop.f32.mrf.mxu0
        %v3201 = vadd.f32 %v2788, %v3200
        %3202 = vmatprep.mubr.f32.mxu0 %v429
        %3203 = vmatmul.mubr.f32.gmra.mxu0 %v428
        %v3204 = vpop.f32.mrf.mxu0
        %v3205 = vadd.f32 %v2792, %v3204
        %v3206 = vpop.f32.mrf.mxu0
        %v3207 = vadd.f32 %v2794, %v3206
        %3208 = vmatprep.mubr.f32.mxu0 %v440
        %3209 = vmatmul.mubr.f32.gmra.mxu0 %v439
        %v3210 = vpop.f32.mrf.mxu0
        %v3211 = vadd.f32 %v2798, %v3210
        %v3212 = vpop.f32.mrf.mxu0
        %v3213 = vadd.f32 %v2800, %v3212
        %3214 = vmatprep.mubr.f32.mxu0 %v451
        %3215 = vmatmul.mubr.f32.gmra.mxu0 %v450
        %v3216 = vpop.f32.mrf.mxu0
        %v3217 = vadd.f32 %v2804, %v3216
        %v3218 = vpop.f32.mrf.mxu0
        %v3219 = vadd.f32 %v2806, %v3218
        %3220 = vmatprep.mubr.f32.mxu0 %v462
        %3221 = vmatmul.mubr.f32.gmra.mxu0 %v461
        %v3222 = vpop.f32.mrf.mxu0
        %v3223 = vadd.f32 %v2810, %v3222
        %v3224 = vpop.f32.mrf.mxu0
        %v3225 = vadd.f32 %v2812, %v3224
        %3226 = vmatprep.mubr.f32.mxu0 %v473
        %3227 = vmatmul.mubr.f32.gmra.mxu0 %v472
        %v3228 = vpop.f32.mrf.mxu0
        %v3229 = vadd.f32 %v2816, %v3228
        %v3230 = vpop.f32.mrf.mxu0
        %v3231 = vadd.f32 %v2818, %v3230
        %3232 = vmatprep.mubr.f32.mxu0 %v484
        %3233 = vmatmul.mubr.f32.gmra.mxu0 %v483
        %v3234 = vpop.f32.mrf.mxu0
        %v3235 = vadd.f32 %v2822, %v3234
        %v3236 = vpop.f32.mrf.mxu0
        %v3237 = vadd.f32 %v2824, %v3236
        %3238 = vmatprep.mubr.f32.mxu0 %v495
        %3239 = vmatmul.mubr.f32.gmra.mxu0 %v494
        %v3240 = vpop.f32.mrf.mxu0
        %v3241 = vadd.f32 %v2828, %v3240
        %v3242 = vpop.f32.mrf.mxu0
        %v3243 = vadd.f32 %v2830, %v3242
        %3244 = vmatprep.mubr.f32.mxu0 %v506
        %3245 = vmatmul.mubr.f32.gmra.mxu0 %v505
        %v3246 = vpop.f32.mrf.mxu0
        %v3247 = vadd.f32 %v2834, %v3246
        %v3248 = vpop.f32.mrf.mxu0
        %v3249 = vadd.f32 %v2836, %v3248
        %3250 = vmatprep.mubr.f32.mxu0 %v517
        %3251 = vmatmul.mubr.f32.gmra.mxu0 %v516
        %v3252 = vpop.f32.mrf.mxu0
        %v3253 = vadd.f32 %v2840, %v3252
        %v3254 = vpop.f32.mrf.mxu0
        %v3255 = vadd.f32 %v2842, %v3254
        %3256 = vmatprep.mubr.f32.mxu0 %v528
        %3257 = vmatmul.mubr.f32.gmra.mxu0 %v527
        %v3258 = vpop.f32.mrf.mxu0
        %v3259 = vadd.f32 %v2846, %v3258
        %v3260 = vpop.f32.mrf.mxu0
        %v3261 = vadd.f32 %v2848, %v3260
        %3262 = vmatprep.mubr.f32.mxu0 %v539
        %3263 = vmatmul.mubr.f32.gmra.mxu0 %v538
        %v3264 = vpop.f32.mrf.mxu0
        %v3265 = vadd.f32 %v2852, %v3264
        %v3266 = vpop.f32.mrf.mxu0
        %v3267 = vadd.f32 %v2854, %v3266
        %3268 = vmatprep.mubr.f32.mxu0 %v550
        %3269 = vmatmul.mubr.f32.gmra.mxu0 %v549
        %v3270 = vpop.f32.mrf.mxu0
        %v3271 = vadd.f32 %v2858, %v3270
        %v3272 = vpop.f32.mrf.mxu0
        %v3273 = vadd.f32 %v2860, %v3272
        %3274 = vmatprep.mubr.f32.mxu0 %v561
        %3275 = vmatmul.mubr.f32.gmra.mxu0 %v560
        %v3276 = vpop.f32.mrf.mxu0
        %v3277 = vadd.f32 %v2864, %v3276
        %v3278 = vpop.f32.mrf.mxu0
        %v3279 = vadd.f32 %v2866, %v3278
        %3280 = vmatprep.mubr.f32.mxu0 %v572
        %3281 = vmatmul.mubr.f32.gmra.mxu0 %v571
        %v3282 = vpop.f32.mrf.mxu0
        %v3283 = vadd.f32 %v2870, %v3282
        %v3284 = vpop.f32.mrf.mxu0
        %v3285 = vadd.f32 %v2872, %v3284
        %3286 = vmatprep.mubr.f32.mxu0 %v583
        %3287 = vmatmul.mubr.f32.gmra.mxu0 %v582
        %v3288 = vpop.f32.mrf.mxu0
        %v3289 = vadd.f32 %v2876, %v3288
        %v3290 = vpop.f32.mrf.mxu0
        %v3291 = vadd.f32 %v2878, %v3290
        %3292 = vmatprep.mubr.f32.mxu0 %v594
        %3293 = vmatmul.mubr.f32.gmra.mxu0 %v593
        %v3294 = vpop.f32.mrf.mxu0
        %v3295 = vadd.f32 %v2882, %v3294
        %v3296 = vpop.f32.mrf.mxu0
        %v3297 = vadd.f32 %v2884, %v3296
        %3298 = vmatprep.mubr.f32.mxu0 %v605
        %3299 = vmatmul.mubr.f32.gmra.mxu0 %v604
        %v3300 = vpop.f32.mrf.mxu0
        %v3301 = vadd.f32 %v2888, %v3300
        %v3302 = vpop.f32.mrf.mxu0
        %v3303 = vadd.f32 %v2890, %v3302
        %3304 = vmatprep.mubr.f32.mxu0 %v616
        %3305 = vmatmul.mubr.f32.gmra.mxu0 %v615
        %v3306 = vpop.f32.mrf.mxu0
        %v3307 = vadd.f32 %v2894, %v3306
        %v3308 = vpop.f32.mrf.mxu0
        %v3309 = vadd.f32 %v2896, %v3308
        %3310 = vmatprep.mubr.f32.mxu0 %v627
        %3311 = vmatmul.mubr.f32.gmra.mxu0 %v626
        %v3312 = vpop.f32.mrf.mxu0
        %v3313 = vadd.f32 %v2900, %v3312
        %v3314 = vpop.f32.mrf.mxu0
        %v3315 = vadd.f32 %v2902, %v3314
        %3316 = vmatprep.mubr.f32.mxu0 %v638
        %3317 = vmatmul.mubr.f32.gmra.mxu0 %v637
        %v3318 = vpop.f32.mrf.mxu0
        %v3319 = vadd.f32 %v2906, %v3318
        %v3320 = vpop.f32.mrf.mxu0
        %v3321 = vadd.f32 %v2908, %v3320
        %3322 = vmatprep.mubr.f32.mxu0 %v649
        %3323 = vmatmul.mubr.f32.gmra.mxu0 %v648
        %v3324 = vpop.f32.mrf.mxu0
        %v3325 = vadd.f32 %v2912, %v3324
        %v3326 = vpop.f32.mrf.mxu0
        %v3327 = vadd.f32 %v2914, %v3326
        %3328 = vmatprep.mubr.f32.mxu0 %v660
        %3329 = vmatmul.mubr.f32.gmra.mxu0 %v659
        %v3330 = vpop.f32.mrf.mxu0
        %v3331 = vadd.f32 %v2918, %v3330
        %v3332 = vpop.f32.mrf.mxu0
        %v3333 = vadd.f32 %v2920, %v3332
        %3334 = vmatprep.mubr.f32.mxu0 %v671
        %3335 = vmatmul.mubr.f32.gmra.mxu0 %v670
        %v3336 = vpop.f32.mrf.mxu0
        %v3337 = vadd.f32 %v2924, %v3336
        %v3338 = vpop.f32.mrf.mxu0
        %v3339 = vadd.f32 %v2926, %v3338
        %3340 = vmatprep.mubr.f32.mxu0 %v682
        %3341 = vmatmul.mubr.f32.gmra.mxu0 %v681
        %v3342 = vpop.f32.mrf.mxu0
        %v3343 = vadd.f32 %v2930, %v3342
        %v3344 = vpop.f32.mrf.mxu0
        %v3345 = vadd.f32 %v2932, %v3344
        %3346 = vmatprep.mubr.f32.mxu0 %v693
        %3347 = vmatmul.mubr.f32.gmra.mxu0 %v692
        %v3348 = vpop.f32.mrf.mxu0
        %v3349 = vadd.f32 %v2936, %v3348
        %v3350 = vpop.f32.mrf.mxu0
        %v3351 = vadd.f32 %v2938, %v3350
        %3352 = vmatprep.mubr.f32.mxu0 %v704
        %3353 = vmatmul.mubr.f32.gmra.mxu0 %v703
        %v3354 = vpop.f32.mrf.mxu0
        %v3355 = vadd.f32 %v2942, %v3354
        %v3356 = vpop.f32.mrf.mxu0
        %v3357 = vadd.f32 %v2944, %v3356
        %3358 = vmatprep.mubr.f32.mxu0 %v715
        %3359 = vmatmul.mubr.f32.gmra.mxu0 %v714
        %v3360 = vpop.f32.mrf.mxu0
        %v3361 = vadd.f32 %v2948, %v3360
        %v3362 = vpop.f32.mrf.mxu0
        %v3363 = vadd.f32 %v2950, %v3362
        %3364 = vmatprep.mubr.f32.mxu0 %v726
        %3365 = vmatmul.mubr.f32.gmra.mxu0 %v725
        %v3366 = vpop.f32.mrf.mxu0
        %v3367 = vadd.f32 %v2954, %v3366
        %v3368 = vpop.f32.mrf.mxu0
        %v3369 = vadd.f32 %v2956, %v3368
        %3370 = vmatprep.mubr.f32.mxu0 %v737
        %3371 = vmatmul.mubr.f32.gmra.mxu0 %v736
        %v3372 = vpop.f32.mrf.mxu0
        %v3373 = vadd.f32 %v2960, %v3372
        %v3374 = vpop.f32.mrf.mxu0
        %v3375 = vadd.f32 %v2962, %v3374
        %3376 = vmatprep.mubr.f32.mxu0 %v748
        %3377 = vmatmul.mubr.f32.gmra.mxu0 %v747
        %v3378 = vpop.f32.mrf.mxu0
        %v3379 = vadd.f32 %v2966, %v3378
        %v3380 = vpop.f32.mrf.mxu0
        %v3381 = vadd.f32 %v2968, %v3380
        %3382 = vmatprep.mubr.f32.mxu0 %v759
        %3383 = vmatmul.mubr.f32.gmra.mxu0 %v758
        %v3384 = vpop.f32.mrf.mxu0
        %v3385 = vadd.f32 %v2972, %v3384
        %v3386 = vpop.f32.mrf.mxu0
        %v3387 = vadd.f32 %v2974, %v3386
        %3388 = vmatprep.mubr.f32.mxu0 %v770
        %3389 = vmatmul.mubr.f32.gmra.mxu0 %v769
        %v3390 = vpop.f32.mrf.mxu0
        %v3391 = vadd.f32 %v2978, %v3390
        %v3392 = vpop.f32.mrf.mxu0
        %v3393 = vadd.f32 %v2980, %v3392
        %3394 = vmatprep.mubr.f32.mxu0 %v781
        %3395 = vmatmul.mubr.f32.gmra.mxu0 %v780
        %v3396 = vpop.f32.mrf.mxu0
        %v3397 = vadd.f32 %v2984, %v3396
        %v3398 = vpop.f32.mrf.mxu0
        %v3399 = vadd.f32 %v2986, %v3398
        %3400 = vmatprep.mubr.f32.mxu0 %v792
        %3401 = vmatmul.mubr.f32.gmra.mxu0 %v791
        %v3402 = vpop.f32.mrf.mxu0
        %v3403 = vadd.f32 %v2990, %v3402
        %v3404 = vpop.f32.mrf.mxu0
        %v3405 = vadd.f32 %v2992, %v3404
        %3406 = vmatprep.mubr.f32.mxu0 %v803
        %3407 = vmatmul.mubr.f32.gmra.mxu0 %v802
        %v3408 = vpop.f32.mrf.mxu0
        %v3409 = vadd.f32 %v2996, %v3408
        %v3410 = vpop.f32.mrf.mxu0
        %v3411 = vadd.f32 %v2998, %v3410
        %3412 = vmatprep.mubr.f32.mxu0 %v814
        %3413 = vmatmul.mubr.f32.gmra.mxu0 %v813
        %v3414 = vpop.f32.mrf.mxu0
        %v3415 = vadd.f32 %v3002, %v3414
        %v3416 = vpop.f32.mrf.mxu0
        %v3417 = vadd.f32 %v3004, %v3416
        %3418 = vmatprep.mubr.f32.mxu0 %v825
        %3419 = vmatmul.mubr.f32.gmra.mxu0 %v824
        %v3420 = vpop.f32.mrf.mxu0
        %v3421 = vadd.f32 %v3008, %v3420
        %v3422 = vpop.f32.mrf.mxu0
        %v3423 = vadd.f32 %v3010, %v3422
        %3424 = vmatprep.mubr.f32.mxu0 %v836
        %3425 = vmatmul.mubr.f32.gmra.mxu0 %v835
        %v3426 = vpop.f32.mrf.mxu0
        %v3427 = vadd.f32 %v3014, %v3426
        %v3428 = vpop.f32.mrf.mxu0
        %v3429 = vadd.f32 %v3016, %v3428
        %3430 = vmatprep.mubr.f32.mxu0 %v847
        %3431 = vmatmul.mubr.f32.gmra.mxu0 %v846
        %v3432 = vpop.f32.mrf.mxu0
        %v3433 = vadd.f32 %v3020, %v3432
        %v3434 = vpop.f32.mrf.mxu0
        %v3435 = vadd.f32 %v3022, %v3434
        %3436 = vdwg.mxu0
        %3437 = vmatprep.subr.mxu0 0.0
        %3438 = vmatpush1.msra.mxu0 0.0
        %3439 = vmatprep.subr.mxu0 0.0
        %3440 = vmatpush1.msra.mxu0 0.0
        %3441 = vmatprep.subr.mxu0 %v1196
        %3442 = vmatpush1.msra.mxu0 %v1195
        %3443 = vmatprep.subr.mxu0 %v1194
        %3444 = vmatpush1.msra.mxu0 %v1193
        %3445 = vmatprep.subr.mxu0 %v1192
        %3446 = vmatpush1.msra.mxu0 %v1191
        %3447 = vmatprep.subr.mxu0 %v1190
        %3448 = vmatpush1.msra.mxu0 %v1189
        %3449 = vmatprep.subr.mxu0 %v1188
        %3450 = vmatpush1.msra.mxu0 %v1187
        %3451 = vmatprep.subr.mxu0 %v1186
        %3452 = vmatpush1.msra.mxu0 %v1185
        %3453 = vmatprep.subr.mxu0 %v1184
        %3454 = vmatpush1.msra.mxu0 %v1183
        %3455 = vmatprep.subr.mxu0 %v1182
        %3456 = vmatpush1.msra.mxu0 %v1181
        %3457 = vmatprep.subr.mxu0 %v1180
        %3458 = vmatpush1.msra.mxu0 %v1179
        %3459 = vmatprep.subr.mxu0 %v1178
        %3460 = vmatpush1.msra.mxu0 %v1177
        %3461 = vmatprep.subr.mxu0 %v1176
        %3462 = vmatpush1.msra.mxu0 %v1175
        %3463 = vmatprep.subr.mxu0 %v1174
        %3464 = vmatpush1.msra.mxu0 %v1173
        %3465 = vmatprep.subr.mxu0 %v1172
        %3466 = vmatpush1.msra.mxu0 %v1171
        %3467 = vmatprep.subr.mxu0 %v1170
        %3468 = vmatpush1.msra.mxu0 %v1169
        %3469 = vmatprep.subr.mxu0 0.0
        %3470 = vmatpush2.msra.mxu0 0.0
        %3471 = vmatprep.subr.mxu0 0.0
        %3472 = vmatpush2.msra.mxu0 0.0
        %3473 = vmatprep.subr.mxu0 0.0
        %3474 = vmatpush2.msra.mxu0 0.0
        %3475 = vmatprep.subr.mxu0 0.0
        %3476 = vmatpush2.msra.mxu0 0.0
        %3477 = vmatprep.subr.mxu0 0.0
        %3478 = vmatpush2.msra.mxu0 0.0
        %3479 = vmatprep.subr.mxu0 0.0
        %3480 = vmatpush2.msra.mxu0 0.0
        %3481 = vmatprep.subr.mxu0 0.0
        %3482 = vmatpush2.msra.mxu0 0.0
        %3483 = vmatprep.subr.mxu0 0.0
        %3484 = vmatpush2.msra.mxu0 0.0
        %3485 = vmatprep.subr.mxu0 0.0
        %3486 = vmatpush2.msra.mxu0 0.0
        %3487 = vmatprep.subr.mxu0 0.0
        %3488 = vmatpush2.msra.mxu0 0.0
        %3489 = vmatprep.subr.mxu0 0.0
        %3490 = vmatpush2.msra.mxu0 0.0
        %3491 = vmatprep.subr.mxu0 0.0
        %3492 = vmatpush2.msra.mxu0 0.0
        %3493 = vmatprep.subr.mxu0 0.0
        %3494 = vmatpush2.msra.mxu0 0.0
        %3495 = vmatprep.subr.mxu0 0.0
        %3496 = vmatpush2.msra.mxu0 0.0
        %3497 = vmatprep.subr.mxu0 0.0
        %3498 = vmatpush2.msra.mxu0 0.0
        %3499 = vmatprep.subr.mxu0 0.0
        %3500 = vmatpush2.msra.mxu0 0.0
        %3501 = vmatprep.mubr.f32.mxu0 0.0
        %3502 = vmatmul.mubr.f32.gmra.mxu0 %v1199
        %v3503 = vpop.f32.mrf.mxu0
        %v3504 = vadd.f32 %v3091, %v3503
        %v3505 = vpop.f32.mrf.mxu0
        %v3506 = vadd.f32 %v3093, %v3505
        %3507 = vmatprep.mubr.f32.mxu0 0.0
        %3508 = vmatmul.mubr.f32.gmra.mxu0 %v1202
        %v3509 = vpop.f32.mrf.mxu0
        %v3510 = vadd.f32 %v3097, %v3509
        %v3511 = vpop.f32.mrf.mxu0
        %v3512 = vadd.f32 %v3099, %v3511
        %3513 = vmatprep.mubr.f32.mxu0 0.0
        %3514 = vmatmul.mubr.f32.gmra.mxu0 %v1205
        %v3515 = vpop.f32.mrf.mxu0
        %v3516 = vadd.f32 %v3103, %v3515
        %v3517 = vpop.f32.mrf.mxu0
        %v3518 = vadd.f32 %v3105, %v3517
        %3519 = vmatprep.mubr.f32.mxu0 0.0
        %3520 = vmatmul.mubr.f32.gmra.mxu0 %v1208
        %v3521 = vpop.f32.mrf.mxu0
        %v3522 = vadd.f32 %v3109, %v3521
        %v3523 = vpop.f32.mrf.mxu0
        %v3524 = vadd.f32 %v3111, %v3523
        %3525 = vmatprep.mubr.f32.mxu0 0.0
        %3526 = vmatmul.mubr.f32.gmra.mxu0 %v1211
        %v3527 = vpop.f32.mrf.mxu0
        %v3528 = vadd.f32 %v3115, %v3527
        %v3529 = vpop.f32.mrf.mxu0
        %v3530 = vadd.f32 %v3117, %v3529
        %3531 = vmatprep.mubr.f32.mxu0 0.0
        %3532 = vmatmul.mubr.f32.gmra.mxu0 %v1214
        %v3533 = vpop.f32.mrf.mxu0
        %v3534 = vadd.f32 %v3121, %v3533
        %v3535 = vpop.f32.mrf.mxu0
        %v3536 = vadd.f32 %v3123, %v3535
        %3537 = vmatprep.mubr.f32.mxu0 0.0
        %3538 = vmatmul.mubr.f32.gmra.mxu0 %v1217
        %v3539 = vpop.f32.mrf.mxu0
        %v3540 = vadd.f32 %v3127, %v3539
        %v3541 = vpop.f32.mrf.mxu0
        %v3542 = vadd.f32 %v3129, %v3541
        %3543 = vmatprep.mubr.f32.mxu0 0.0
        %3544 = vmatmul.mubr.f32.gmra.mxu0 %v1220
        %v3545 = vpop.f32.mrf.mxu0
        %v3546 = vadd.f32 %v3133, %v3545
        %v3547 = vpop.f32.mrf.mxu0
        %v3548 = vadd.f32 %v3135, %v3547
        %3549 = vmatprep.mubr.f32.mxu0 0.0
        %3550 = vmatmul.mubr.f32.gmra.mxu0 %v1223
        %v3551 = vpop.f32.mrf.mxu0
        %v3552 = vadd.f32 %v3139, %v3551
        %v3553 = vpop.f32.mrf.mxu0
        %v3554 = vadd.f32 %v3141, %v3553
        %3555 = vmatprep.mubr.f32.mxu0 0.0
        %3556 = vmatmul.mubr.f32.gmra.mxu0 %v1226
        %v3557 = vpop.f32.mrf.mxu0
        %v3558 = vadd.f32 %v3145, %v3557
        %v3559 = vpop.f32.mrf.mxu0
        %v3560 = vadd.f32 %v3147, %v3559
        %3561 = vmatprep.mubr.f32.mxu0 0.0
        %3562 = vmatmul.mubr.f32.gmra.mxu0 %v1229
        %v3563 = vpop.f32.mrf.mxu0
        %v3564 = vadd.f32 %v3151, %v3563
        %v3565 = vpop.f32.mrf.mxu0
        %v3566 = vadd.f32 %v3153, %v3565
        %3567 = vmatprep.mubr.f32.mxu0 0.0
        %3568 = vmatmul.mubr.f32.gmra.mxu0 %v1232
        %v3569 = vpop.f32.mrf.mxu0
        %v3570 = vadd.f32 %v3157, %v3569
        %v3571 = vpop.f32.mrf.mxu0
        %v3572 = vadd.f32 %v3159, %v3571
        %3573 = vmatprep.mubr.f32.mxu0 0.0
        %3574 = vmatmul.mubr.f32.gmra.mxu0 %v1235
        %v3575 = vpop.f32.mrf.mxu0
        %v3576 = vadd.f32 %v3163, %v3575
        %v3577 = vpop.f32.mrf.mxu0
        %v3578 = vadd.f32 %v3165, %v3577
        %3579 = vmatprep.mubr.f32.mxu0 0.0
        %3580 = vmatmul.mubr.f32.gmra.mxu0 %v1238
        %v3581 = vpop.f32.mrf.mxu0
        %v3582 = vadd.f32 %v3169, %v3581
        %v3583 = vpop.f32.mrf.mxu0
        %v3584 = vadd.f32 %v3171, %v3583
        %3585 = vmatprep.mubr.f32.mxu0 0.0
        %3586 = vmatmul.mubr.f32.gmra.mxu0 %v1241
        %v3587 = vpop.f32.mrf.mxu0
        %v3588 = vadd.f32 %v3175, %v3587
        %v3589 = vpop.f32.mrf.mxu0
        %v3590 = vadd.f32 %v3177, %v3589
        %3591 = vmatprep.mubr.f32.mxu0 0.0
        %3592 = vmatmul.mubr.f32.gmra.mxu0 %v1244
        %v3593 = vpop.f32.mrf.mxu0
        %v3594 = vadd.f32 %v3181, %v3593
        %v3595 = vpop.f32.mrf.mxu0
        %v3596 = vadd.f32 %v3183, %v3595
        %3597 = vmatprep.mubr.f32.mxu0 0.0
        %3598 = vmatmul.mubr.f32.gmra.mxu0 %v1247
        %v3599 = vpop.f32.mrf.mxu0
        %v3600 = vadd.f32 %v3187, %v3599
        %v3601 = vpop.f32.mrf.mxu0
        %v3602 = vadd.f32 %v3189, %v3601
        %3603 = vmatprep.mubr.f32.mxu0 0.0
        %3604 = vmatmul.mubr.f32.gmra.mxu0 %v1250
        %v3605 = vpop.f32.mrf.mxu0
        %v3606 = vadd.f32 %v3193, %v3605
        %v3607 = vpop.f32.mrf.mxu0
        %v3608 = vadd.f32 %v3195, %v3607
        %3609 = vmatprep.mubr.f32.mxu0 0.0
        %3610 = vmatmul.mubr.f32.gmra.mxu0 %v1253
        %v3611 = vpop.f32.mrf.mxu0
        %v3612 = vadd.f32 %v3199, %v3611
        %v3613 = vpop.f32.mrf.mxu0
        %v3614 = vadd.f32 %v3201, %v3613
        %3615 = vmatprep.mubr.f32.mxu0 0.0
        %3616 = vmatmul.mubr.f32.gmra.mxu0 %v1256
        %v3617 = vpop.f32.mrf.mxu0
        %v3618 = vadd.f32 %v3205, %v3617
        %v3619 = vpop.f32.mrf.mxu0
        %v3620 = vadd.f32 %v3207, %v3619
        %3621 = vmatprep.mubr.f32.mxu0 0.0
        %3622 = vmatmul.mubr.f32.gmra.mxu0 %v1259
        %v3623 = vpop.f32.mrf.mxu0
        %v3624 = vadd.f32 %v3211, %v3623
        %v3625 = vpop.f32.mrf.mxu0
        %v3626 = vadd.f32 %v3213, %v3625
        %3627 = vmatprep.mubr.f32.mxu0 0.0
        %3628 = vmatmul.mubr.f32.gmra.mxu0 %v1262
        %v3629 = vpop.f32.mrf.mxu0
        %v3630 = vadd.f32 %v3217, %v3629
        %v3631 = vpop.f32.mrf.mxu0
        %v3632 = vadd.f32 %v3219, %v3631
        %3633 = vmatprep.mubr.f32.mxu0 0.0
        %3634 = vmatmul.mubr.f32.gmra.mxu0 %v1265
        %v3635 = vpop.f32.mrf.mxu0
        %v3636 = vadd.f32 %v3223, %v3635
        %v3637 = vpop.f32.mrf.mxu0
        %v3638 = vadd.f32 %v3225, %v3637
        %3639 = vmatprep.mubr.f32.mxu0 0.0
        %3640 = vmatmul.mubr.f32.gmra.mxu0 %v1268
        %v3641 = vpop.f32.mrf.mxu0
        %v3642 = vadd.f32 %v3229, %v3641
        %v3643 = vpop.f32.mrf.mxu0
        %v3644 = vadd.f32 %v3231, %v3643
        %3645 = vmatprep.mubr.f32.mxu0 0.0
        %3646 = vmatmul.mubr.f32.gmra.mxu0 %v1271
        %v3647 = vpop.f32.mrf.mxu0
        %v3648 = vadd.f32 %v3235, %v3647
        %v3649 = vpop.f32.mrf.mxu0
        %v3650 = vadd.f32 %v3237, %v3649
        %3651 = vmatprep.mubr.f32.mxu0 0.0
        %3652 = vmatmul.mubr.f32.gmra.mxu0 %v1274
        %v3653 = vpop.f32.mrf.mxu0
        %v3654 = vadd.f32 %v3241, %v3653
        %v3655 = vpop.f32.mrf.mxu0
        %v3656 = vadd.f32 %v3243, %v3655
        %3657 = vmatprep.mubr.f32.mxu0 0.0
        %3658 = vmatmul.mubr.f32.gmra.mxu0 %v1277
        %v3659 = vpop.f32.mrf.mxu0
        %v3660 = vadd.f32 %v3247, %v3659
        %v3661 = vpop.f32.mrf.mxu0
        %v3662 = vadd.f32 %v3249, %v3661
        %3663 = vmatprep.mubr.f32.mxu0 0.0
        %3664 = vmatmul.mubr.f32.gmra.mxu0 %v1280
        %v3665 = vpop.f32.mrf.mxu0
        %v3666 = vadd.f32 %v3253, %v3665
        %v3667 = vpop.f32.mrf.mxu0
        %v3668 = vadd.f32 %v3255, %v3667
        %3669 = vmatprep.mubr.f32.mxu0 0.0
        %3670 = vmatmul.mubr.f32.gmra.mxu0 %v1283
        %v3671 = vpop.f32.mrf.mxu0
        %v3672 = vadd.f32 %v3259, %v3671
        %v3673 = vpop.f32.mrf.mxu0
        %v3674 = vadd.f32 %v3261, %v3673
        %3675 = vmatprep.mubr.f32.mxu0 0.0
        %3676 = vmatmul.mubr.f32.gmra.mxu0 %v1286
        %v3677 = vpop.f32.mrf.mxu0
        %v3678 = vadd.f32 %v3265, %v3677
        %v3679 = vpop.f32.mrf.mxu0
        %v3680 = vadd.f32 %v3267, %v3679
        %3681 = vmatprep.mubr.f32.mxu0 0.0
        %3682 = vmatmul.mubr.f32.gmra.mxu0 %v1289
        %v3683 = vpop.f32.mrf.mxu0
        %v3684 = vadd.f32 %v3271, %v3683
        %v3685 = vpop.f32.mrf.mxu0
        %v3686 = vadd.f32 %v3273, %v3685
        %3687 = vmatprep.mubr.f32.mxu0 0.0
        %3688 = vmatmul.mubr.f32.gmra.mxu0 %v1292
        %v3689 = vpop.f32.mrf.mxu0
        %v3690 = vadd.f32 %v3277, %v3689
        %v3691 = vpop.f32.mrf.mxu0
        %v3692 = vadd.f32 %v3279, %v3691
        %3693 = vmatprep.mubr.f32.mxu0 0.0
        %3694 = vmatmul.mubr.f32.gmra.mxu0 %v1295
        %v3695 = vpop.f32.mrf.mxu0
        %v3696 = vadd.f32 %v3283, %v3695
        %v3697 = vpop.f32.mrf.mxu0
        %v3698 = vadd.f32 %v3285, %v3697
        %3699 = vmatprep.mubr.f32.mxu0 0.0
        %3700 = vmatmul.mubr.f32.gmra.mxu0 %v1298
        %v3701 = vpop.f32.mrf.mxu0
        %v3702 = vadd.f32 %v3289, %v3701
        %v3703 = vpop.f32.mrf.mxu0
        %v3704 = vadd.f32 %v3291, %v3703
        %3705 = vmatprep.mubr.f32.mxu0 0.0
        %3706 = vmatmul.mubr.f32.gmra.mxu0 %v1301
        %v3707 = vpop.f32.mrf.mxu0
        %v3708 = vadd.f32 %v3295, %v3707
        %v3709 = vpop.f32.mrf.mxu0
        %v3710 = vadd.f32 %v3297, %v3709
        %3711 = vmatprep.mubr.f32.mxu0 0.0
        %3712 = vmatmul.mubr.f32.gmra.mxu0 %v1304
        %v3713 = vpop.f32.mrf.mxu0
        %v3714 = vadd.f32 %v3301, %v3713
        %v3715 = vpop.f32.mrf.mxu0
        %v3716 = vadd.f32 %v3303, %v3715
        %3717 = vmatprep.mubr.f32.mxu0 0.0
        %3718 = vmatmul.mubr.f32.gmra.mxu0 %v1307
        %v3719 = vpop.f32.mrf.mxu0
        %v3720 = vadd.f32 %v3307, %v3719
        %v3721 = vpop.f32.mrf.mxu0
        %v3722 = vadd.f32 %v3309, %v3721
        %3723 = vmatprep.mubr.f32.mxu0 0.0
        %3724 = vmatmul.mubr.f32.gmra.mxu0 %v1310
        %v3725 = vpop.f32.mrf.mxu0
        %v3726 = vadd.f32 %v3313, %v3725
        %v3727 = vpop.f32.mrf.mxu0
        %v3728 = vadd.f32 %v3315, %v3727
        %3729 = vmatprep.mubr.f32.mxu0 0.0
        %3730 = vmatmul.mubr.f32.gmra.mxu0 %v1313
        %v3731 = vpop.f32.mrf.mxu0
        %v3732 = vadd.f32 %v3319, %v3731
        %v3733 = vpop.f32.mrf.mxu0
        %v3734 = vadd.f32 %v3321, %v3733
        %3735 = vmatprep.mubr.f32.mxu0 0.0
        %3736 = vmatmul.mubr.f32.gmra.mxu0 %v1316
        %v3737 = vpop.f32.mrf.mxu0
        %v3738 = vadd.f32 %v3325, %v3737
        %v3739 = vpop.f32.mrf.mxu0
        %v3740 = vadd.f32 %v3327, %v3739
        %3741 = vmatprep.mubr.f32.mxu0 0.0
        %3742 = vmatmul.mubr.f32.gmra.mxu0 %v1319
        %v3743 = vpop.f32.mrf.mxu0
        %v3744 = vadd.f32 %v3331, %v3743
        %v3745 = vpop.f32.mrf.mxu0
        %v3746 = vadd.f32 %v3333, %v3745
        %3747 = vmatprep.mubr.f32.mxu0 0.0
        %3748 = vmatmul.mubr.f32.gmra.mxu0 %v1322
        %v3749 = vpop.f32.mrf.mxu0
        %v3750 = vadd.f32 %v3337, %v3749
        %v3751 = vpop.f32.mrf.mxu0
        %v3752 = vadd.f32 %v3339, %v3751
        %3753 = vmatprep.mubr.f32.mxu0 0.0
        %3754 = vmatmul.mubr.f32.gmra.mxu0 %v1325
        %v3755 = vpop.f32.mrf.mxu0
        %v3756 = vadd.f32 %v3343, %v3755
        %v3757 = vpop.f32.mrf.mxu0
        %v3758 = vadd.f32 %v3345, %v3757
        %3759 = vmatprep.mubr.f32.mxu0 0.0
        %3760 = vmatmul.mubr.f32.gmra.mxu0 %v1328
        %v3761 = vpop.f32.mrf.mxu0
        %v3762 = vadd.f32 %v3349, %v3761
        %v3763 = vpop.f32.mrf.mxu0
        %v3764 = vadd.f32 %v3351, %v3763
        %3765 = vmatprep.mubr.f32.mxu0 0.0
        %3766 = vmatmul.mubr.f32.gmra.mxu0 %v1331
        %v3767 = vpop.f32.mrf.mxu0
        %v3768 = vadd.f32 %v3355, %v3767
        %v3769 = vpop.f32.mrf.mxu0
        %v3770 = vadd.f32 %v3357, %v3769
        %3771 = vmatprep.mubr.f32.mxu0 0.0
        %3772 = vmatmul.mubr.f32.gmra.mxu0 %v1334
        %v3773 = vpop.f32.mrf.mxu0
        %v3774 = vadd.f32 %v3361, %v3773
        %v3775 = vpop.f32.mrf.mxu0
        %v3776 = vadd.f32 %v3363, %v3775
        %3777 = vmatprep.mubr.f32.mxu0 0.0
        %3778 = vmatmul.mubr.f32.gmra.mxu0 %v1337
        %v3779 = vpop.f32.mrf.mxu0
        %v3780 = vadd.f32 %v3367, %v3779
        %v3781 = vpop.f32.mrf.mxu0
        %v3782 = vadd.f32 %v3369, %v3781
        %3783 = vmatprep.mubr.f32.mxu0 0.0
        %3784 = vmatmul.mubr.f32.gmra.mxu0 %v1340
        %v3785 = vpop.f32.mrf.mxu0
        %v3786 = vadd.f32 %v3373, %v3785
        %v3787 = vpop.f32.mrf.mxu0
        %v3788 = vadd.f32 %v3375, %v3787
        %3789 = vmatprep.mubr.f32.mxu0 0.0
        %3790 = vmatmul.mubr.f32.gmra.mxu0 %v1343
        %v3791 = vpop.f32.mrf.mxu0
        %v3792 = vadd.f32 %v3379, %v3791
        %v3793 = vpop.f32.mrf.mxu0
        %v3794 = vadd.f32 %v3381, %v3793
        %3795 = vmatprep.mubr.f32.mxu0 0.0
        %3796 = vmatmul.mubr.f32.gmra.mxu0 %v1346
        %v3797 = vpop.f32.mrf.mxu0
        %v3798 = vadd.f32 %v3385, %v3797
        %v3799 = vpop.f32.mrf.mxu0
        %v3800 = vadd.f32 %v3387, %v3799
        %3801 = vmatprep.mubr.f32.mxu0 0.0
        %3802 = vmatmul.mubr.f32.gmra.mxu0 %v1349
        %v3803 = vpop.f32.mrf.mxu0
        %v3804 = vadd.f32 %v3391, %v3803
        %v3805 = vpop.f32.mrf.mxu0
        %v3806 = vadd.f32 %v3393, %v3805
        %3807 = vmatprep.mubr.f32.mxu0 0.0
        %3808 = vmatmul.mubr.f32.gmra.mxu0 %v1352
        %v3809 = vpop.f32.mrf.mxu0
        %v3810 = vadd.f32 %v3397, %v3809
        %v3811 = vpop.f32.mrf.mxu0
        %v3812 = vadd.f32 %v3399, %v3811
        %3813 = vmatprep.mubr.f32.mxu0 0.0
        %3814 = vmatmul.mubr.f32.gmra.mxu0 %v1355
        %v3815 = vpop.f32.mrf.mxu0
        %v3816 = vadd.f32 %v3403, %v3815
        %v3817 = vpop.f32.mrf.mxu0
        %v3818 = vadd.f32 %v3405, %v3817
        %3819 = vmatprep.mubr.f32.mxu0 0.0
        %3820 = vmatmul.mubr.f32.gmra.mxu0 %v1358
        %v3821 = vpop.f32.mrf.mxu0
        %v3822 = vadd.f32 %v3409, %v3821
        %v3823 = vpop.f32.mrf.mxu0
        %v3824 = vadd.f32 %v3411, %v3823
        %3825 = vmatprep.mubr.f32.mxu0 0.0
        %3826 = vmatmul.mubr.f32.gmra.mxu0 %v1361
        %v3827 = vpop.f32.mrf.mxu0
        %v3828 = vadd.f32 %v3415, %v3827
        %v3829 = vpop.f32.mrf.mxu0
        %v3830 = vadd.f32 %v3417, %v3829
        %3831 = vmatprep.mubr.f32.mxu0 0.0
        %3832 = vmatmul.mubr.f32.gmra.mxu0 %v1364
        %v3833 = vpop.f32.mrf.mxu0
        %v3834 = vadd.f32 %v3421, %v3833
        %v3835 = vpop.f32.mrf.mxu0
        %v3836 = vadd.f32 %v3423, %v3835
        %3837 = vmatprep.mubr.f32.mxu0 0.0
        %3838 = vmatmul.mubr.f32.gmra.mxu0 %v1367
        %v3839 = vpop.f32.mrf.mxu0
        %v3840 = vadd.f32 %v3427, %v3839
        %v3841 = vpop.f32.mrf.mxu0
        %v3842 = vadd.f32 %v3429, %v3841
        %3843 = vmatprep.mubr.f32.mxu0 0.0
        %3844 = vmatmul.mubr.f32.gmra.mxu0 %v1370
        %v3845 = vpop.f32.mrf.mxu0
        %v3846 = vadd.f32 %v3433, %v3845
        %v3847 = vpop.f32.mrf.mxu0
        %v3848 = vadd.f32 %v3435, %v3847
        %3849 = vdwg.mxu0
        %3850 = vst [vmem:[%s209] sm:$0xff] %v3504
        %vm3851 = vcmask 556032
        %3852 = vst.msk [vmem:[%s209 + $0x8] sm:$0xff] %vm3851, %v3506
        %3853 = vst [vmem:[%s209 + $0x10] sm:$0xff] %v3510
        %3854 = vst.msk [vmem:[%s209 + $0x18] sm:$0xff] %vm3851, %v3512
        %3855 = vst [vmem:[%s209 + $0x20] sm:$0xff] %v3516
        %3856 = vst.msk [vmem:[%s209 + $0x28] sm:$0xff] %vm3851, %v3518
        %3857 = vst [vmem:[%s209 + $0x30] sm:$0xff] %v3522
        %3858 = vst.msk [vmem:[%s209 + $0x38] sm:$0xff] %vm3851, %v3524
        %3859 = vst [vmem:[%s209 + $0x40] sm:$0xff] %v3528
        %3860 = vst.msk [vmem:[%s209 + $0x48] sm:$0xff] %vm3851, %v3530
        %3861 = vst [vmem:[%s209 + $0x50] sm:$0xff] %v3534
        %3862 = vst.msk [vmem:[%s209 + $0x58] sm:$0xff] %vm3851, %v3536
        %3863 = vst [vmem:[%s209 + $0x60] sm:$0xff] %v3540
        %3864 = vst.msk [vmem:[%s209 + $0x68] sm:$0xff] %vm3851, %v3542
        %3865 = vst [vmem:[%s209 + $0x70] sm:$0xff] %v3546
        %3866 = vst.msk [vmem:[%s209 + $0x78] sm:$0xff] %vm3851, %v3548
        %3867 = vst [vmem:[%s209 + $0x80] sm:$0xff] %v3552
        %3868 = vst.msk [vmem:[%s209 + $0x88] sm:$0xff] %vm3851, %v3554
        %3869 = vst [vmem:[%s209 + $0x90] sm:$0xff] %v3558
        %3870 = vst.msk [vmem:[%s209 + $0x98] sm:$0xff] %vm3851, %v3560
        %3871 = vst [vmem:[%s209 + $0xa0] sm:$0xff] %v3564
        %3872 = vst.msk [vmem:[%s209 + $0xa8] sm:$0xff] %vm3851, %v3566
        %3873 = vst [vmem:[%s209 + $0xb0] sm:$0xff] %v3570
        %3874 = vst.msk [vmem:[%s209 + $0xb8] sm:$0xff] %vm3851, %v3572
        %3875 = vst [vmem:[%s209 + $0xc0] sm:$0xff] %v3576
        %3876 = vst.msk [vmem:[%s209 + $0xc8] sm:$0xff] %vm3851, %v3578
        %3877 = vst [vmem:[%s209 + $0xd0] sm:$0xff] %v3582
        %3878 = vst.msk [vmem:[%s209 + $0xd8] sm:$0xff] %vm3851, %v3584
        %3879 = vst [vmem:[%s209 + $0xe0] sm:$0xff] %v3588
        %3880 = vst.msk [vmem:[%s209 + $0xe8] sm:$0xff] %vm3851, %v3590
        %3881 = vst [vmem:[%s209 + $0xf0] sm:$0xff] %v3594
        %3882 = vst.msk [vmem:[%s209 + $0xf8] sm:$0xff] %vm3851, %v3596
        %3883 = vst [vmem:[%s209 + $0x100] sm:$0xff] %v3600
        %3884 = vst.msk [vmem:[%s209 + $0x108] sm:$0xff] %vm3851, %v3602
        %3885 = vst [vmem:[%s209 + $0x110] sm:$0xff] %v3606
        %3886 = vst.msk [vmem:[%s209 + $0x118] sm:$0xff] %vm3851, %v3608
        %3887 = vst [vmem:[%s209 + $0x120] sm:$0xff] %v3612
        %3888 = vst.msk [vmem:[%s209 + $0x128] sm:$0xff] %vm3851, %v3614
        %3889 = vst [vmem:[%s209 + $0x130] sm:$0xff] %v3618
        %3890 = vst.msk [vmem:[%s209 + $0x138] sm:$0xff] %vm3851, %v3620
        %3891 = vst [vmem:[%s209 + $0x140] sm:$0xff] %v3624
        %3892 = vst.msk [vmem:[%s209 + $0x148] sm:$0xff] %vm3851, %v3626
        %3893 = vst [vmem:[%s209 + $0x150] sm:$0xff] %v3630
        %3894 = vst.msk [vmem:[%s209 + $0x158] sm:$0xff] %vm3851, %v3632
        %3895 = vst [vmem:[%s209 + $0x160] sm:$0xff] %v3636
        %3896 = vst.msk [vmem:[%s209 + $0x168] sm:$0xff] %vm3851, %v3638
        %3897 = vst [vmem:[%s209 + $0x170] sm:$0xff] %v3642
        %3898 = vst.msk [vmem:[%s209 + $0x178] sm:$0xff] %vm3851, %v3644
        %3899 = vst [vmem:[%s209 + $0x180] sm:$0xff] %v3648
        %3900 = vst.msk [vmem:[%s209 + $0x188] sm:$0xff] %vm3851, %v3650
        %3901 = vst [vmem:[%s209 + $0x190] sm:$0xff] %v3654
        %3902 = vst.msk [vmem:[%s209 + $0x198] sm:$0xff] %vm3851, %v3656
        %3903 = vst [vmem:[%s209 + $0x1a0] sm:$0xff] %v3660
        %3904 = vst.msk [vmem:[%s209 + $0x1a8] sm:$0xff] %vm3851, %v3662
        %3905 = vst [vmem:[%s209 + $0x1b0] sm:$0xff] %v3666
        %3906 = vst.msk [vmem:[%s209 + $0x1b8] sm:$0xff] %vm3851, %v3668
        %3907 = vst [vmem:[%s209 + $0x1c0] sm:$0xff] %v3672
        %3908 = vst.msk [vmem:[%s209 + $0x1c8] sm:$0xff] %vm3851, %v3674
        %3909 = vst [vmem:[%s209 + $0x1d0] sm:$0xff] %v3678
        %3910 = vst.msk [vmem:[%s209 + $0x1d8] sm:$0xff] %vm3851, %v3680
        %3911 = vst [vmem:[%s209 + $0x1e0] sm:$0xff] %v3684
        %3912 = vst.msk [vmem:[%s209 + $0x1e8] sm:$0xff] %vm3851, %v3686
        %3913 = vst [vmem:[%s209 + $0x1f0] sm:$0xff] %v3690
        %3914 = vst.msk [vmem:[%s209 + $0x1f8] sm:$0xff] %vm3851, %v3692
        %3915 = vst [vmem:[%s209 + $0x200] sm:$0xff] %v3696
        %3916 = vst.msk [vmem:[%s209 + $0x208] sm:$0xff] %vm3851, %v3698
        %3917 = vst [vmem:[%s209 + $0x210] sm:$0xff] %v3702
        %3918 = vst.msk [vmem:[%s209 + $0x218] sm:$0xff] %vm3851, %v3704
        %3919 = vst [vmem:[%s209 + $0x220] sm:$0xff] %v3708
        %3920 = vst.msk [vmem:[%s209 + $0x228] sm:$0xff] %vm3851, %v3710
        %3921 = vst [vmem:[%s209 + $0x230] sm:$0xff] %v3714
        %3922 = vst.msk [vmem:[%s209 + $0x238] sm:$0xff] %vm3851, %v3716
        %3923 = vst [vmem:[%s209 + $0x240] sm:$0xff] %v3720
        %3924 = vst.msk [vmem:[%s209 + $0x248] sm:$0xff] %vm3851, %v3722
        %3925 = vst [vmem:[%s209 + $0x250] sm:$0xff] %v3726
        %3926 = vst.msk [vmem:[%s209 + $0x258] sm:$0xff] %vm3851, %v3728
        %3927 = vst [vmem:[%s209 + $0x260] sm:$0xff] %v3732
        %3928 = vst.msk [vmem:[%s209 + $0x268] sm:$0xff] %vm3851, %v3734
        %3929 = vst [vmem:[%s209 + $0x270] sm:$0xff] %v3738
        %3930 = vst.msk [vmem:[%s209 + $0x278] sm:$0xff] %vm3851, %v3740
        %3931 = vst [vmem:[%s209 + $0x280] sm:$0xff] %v3744
        %3932 = vst.msk [vmem:[%s209 + $0x288] sm:$0xff] %vm3851, %v3746
        %3933 = vst [vmem:[%s209 + $0x290] sm:$0xff] %v3750
        %3934 = vst.msk [vmem:[%s209 + $0x298] sm:$0xff] %vm3851, %v3752
        %3935 = vst [vmem:[%s209 + $0x2a0] sm:$0xff] %v3756
        %3936 = vst.msk [vmem:[%s209 + $0x2a8] sm:$0xff] %vm3851, %v3758
        %3937 = vst [vmem:[%s209 + $0x2b0] sm:$0xff] %v3762
        %3938 = vst.msk [vmem:[%s209 + $0x2b8] sm:$0xff] %vm3851, %v3764
        %3939 = vst [vmem:[%s209 + $0x2c0] sm:$0xff] %v3768
        %3940 = vst.msk [vmem:[%s209 + $0x2c8] sm:$0xff] %vm3851, %v3770
        %3941 = vst [vmem:[%s209 + $0x2d0] sm:$0xff] %v3774
        %3942 = vst.msk [vmem:[%s209 + $0x2d8] sm:$0xff] %vm3851, %v3776
        %3943 = vst [vmem:[%s209 + $0x2e0] sm:$0xff] %v3780
        %3944 = vst.msk [vmem:[%s209 + $0x2e8] sm:$0xff] %vm3851, %v3782
        %3945 = vst [vmem:[%s209 + $0x2f0] sm:$0xff] %v3786
        %3946 = vst.msk [vmem:[%s209 + $0x2f8] sm:$0xff] %vm3851, %v3788
        %3947 = vst [vmem:[%s209 + $0x300] sm:$0xff] %v3792
        %3948 = vst.msk [vmem:[%s209 + $0x308] sm:$0xff] %vm3851, %v3794
        %3949 = vst [vmem:[%s209 + $0x310] sm:$0xff] %v3798
        %3950 = vst.msk [vmem:[%s209 + $0x318] sm:$0xff] %vm3851, %v3800
        %3951 = vst [vmem:[%s209 + $0x320] sm:$0xff] %v3804
        %3952 = vst.msk [vmem:[%s209 + $0x328] sm:$0xff] %vm3851, %v3806
        %3953 = vst [vmem:[%s209 + $0x330] sm:$0xff] %v3810
        %3954 = vst.msk [vmem:[%s209 + $0x338] sm:$0xff] %vm3851, %v3812
        %3955 = vst [vmem:[%s209 + $0x340] sm:$0xff] %v3816
        %3956 = vst.msk [vmem:[%s209 + $0x348] sm:$0xff] %vm3851, %v3818
        %3957 = vst [vmem:[%s209 + $0x350] sm:$0xff] %v3822
        %3958 = vst.msk [vmem:[%s209 + $0x358] sm:$0xff] %vm3851, %v3824
        %3959 = vst [vmem:[%s209 + $0x360] sm:$0xff] %v3828
        %3960 = vst.msk [vmem:[%s209 + $0x368] sm:$0xff] %vm3851, %v3830
        %3961 = vst [vmem:[%s209 + $0x370] sm:$0xff] %v3834
        %3962 = vst.msk [vmem:[%s209 + $0x378] sm:$0xff] %vm3851, %v3836
        %3963 = vst [vmem:[%s209 + $0x380] sm:$0xff] %v3840
        %3964 = vst.msk [vmem:[%s209 + $0x388] sm:$0xff] %vm3851, %v3842
        %3965 = vst [vmem:[%s209 + $0x390] sm:$0xff] %v3846
        %3966 = vst.msk [vmem:[%s209 + $0x398] sm:$0xff] %vm3851, %v3848
        %s3967 = smul.u32 58, %s21
        %p3968 = scmp.lt.s32.totalorder %s20, 0
        %s3969 = scalar_select %p3968, %s20, 0
        %p3970 = scmp.lt.s32.totalorder %s3967, 173
        %s3971 = scalar_select %p3970, %s3967, 173
        %s3972 = smul.addr %s3971, 2
        %s3973 = smul.addr %s3969, 348
        %s3974 = sadd.s32 %s3972, %s3973
        %s3975 = smul.addr %s3974, 8
        %s3976 = scalar_lea.vmem %s2, %s3975
        // Predicated region
        $region33: #{tpu_custom_call.1} parent=27 // pred_check
          %p3977 = pneg %p100
        $region34: #{tpu_custom_call.1} parent=27 // pred_check_branch
          %3979 = sbr.rel (%p3977) target = $region36
        $region35: #{tpu_custom_call.1} parent=27 // pred_region
          %s3980 = smul.u32 58, %s21
        $region36: #{tpu_custom_call.1} parent=27 // pred_fallthru
          _
      $region28: #{tpu_custom_call.1} parent=5 // pred_fallthru
        _
      %p3981 = scmp.le.s32.totalorder 2, %s11
      // Predicated region
      $region37: #{tpu_custom_call.1} parent=5 // pred_check
        %p3982 = pneg %p3981
      $region38: #{tpu_custom_call.1} parent=5 // pred_check_branch
        %3984 = sbr.rel (%p3982) target = $region40
      $region39: #{tpu_custom_call.1} parent=5 // pred_region
        %s3985 = ssub.s32 %s11, 2
        // Predicated region
        $region41: #{tpu_custom_call.1} parent=39 // pred_check
          %p3986 = pneg %p106
        $region42: #{tpu_custom_call.1} parent=39 // pred_check_branch
          %3988 = sbr.rel (%p3986) target = $region44
        $region43: #{tpu_custom_call.1} parent=39 // pred_region
          %s3989 = smul.u32 58, %s23
          %p3990 = scmp.lt.s32.totalorder %s22, 0
          %s3991 = scalar_select %p3990, %s22, 0
          %p3992 = scmp.lt.s32.totalorder %s3989, 173
          %s3993 = scalar_select %p3992, %s3989, 173
          %s3994 = smul.addr %s3993, 2
          %s3995 = smul.addr %s3991, 348
          %s3996 = sadd.s32 %s3994, %s3995
          %s3997 = smul.addr %s3996, 8
          %s3998 = scalar_lea.vmem %s2, %s3997
        $region44: #{tpu_custom_call.1} parent=39 // pred_fallthru
          _
      $region40: #{tpu_custom_call.1} parent=5 // pred_fallthru
        _
    $region6: #{tpu_custom_call.1} parent=1 // loop_footer
      %s15 = sadd.s32 1, %s11
    $region7: #{tpu_custom_call.1} parent=1 // loop_footer_branch
      %10 = sbr.rel target = $region3
    $region8: #{tpu_custom_call.1} parent=1 // loop_exit
      _
    %3999 = vsyncpa [#allocation3], 1
    %s4000 = scalar_lea.sflag [#allocation3], 1
    %4001 = vsyncpa %s4000, 1

</llo_original>
